<compile_context>
chip_gen: v6e
topology: v6e:2x2x1
jax: 0.10.0
libtpu: 0.0.40
codegen_flags: <defaults>
</compile_context>

<pallas_src>
import math

import jax
import jax.numpy as jnp
from jax.experimental import pallas as pl
from jax.experimental.pallas import tpu as pltpu

FEATURE_NUM = 512
CLS_NUM = 12
CLS_PAD = 128          # class dim padded to one full lane group
BACKBONE_OUT = 1000
BACKBONE_PAD = 1024    # backbone output / K dim padded to a multiple of 128
SUBLANE = 8            # pad batch up to a full sublane group

# FaceNet.forward calls self.arc_softmax(feature, 1, 1) -> s=1, m=1 (static).
S = 1.0
M = 1.0
COS_M = math.cos(M)
SIN_M = math.sin(M)


def facenet_fused_kernel(x_ref, w0_ref, w_fc_ref, w_arc_ref, feat_ref, arc_ref):
    # ---- stand-in backbone: flat image @ W0 -> [Bp, 1024], f32 accumulate ----
    y = jnp.dot(x_ref[...], w0_ref[...], preferred_element_type=jnp.float32)

    # ---- feature_net: LeakyReLU(0.1) then Linear(1024pad -> 512, no bias) ----
    f = jnp.where(y > 0, y, 0.1 * y)
    feat = jnp.dot(f.astype(w_fc_ref.dtype), w_fc_ref[...],
                   preferred_element_type=jnp.float32)
    feat_ref[...] = feat.astype(feat_ref.dtype)

    # ---- Arcsoftmax(feature, s=1, m=1) --------------------------------------
    # x_norm = F.normalize(x, dim=1); w_norm = F.normalize(w, dim=0)
    inv_xn = jax.lax.rsqrt(jnp.sum(feat * feat, axis=1, keepdims=True) + 1e-24)
    x_norm = feat * inv_xn

    w = w_arc_ref[...].astype(jnp.float32)
    inv_wn = jax.lax.rsqrt(jnp.sum(w * w, axis=0, keepdims=True) + 1e-24)
    w_norm = w * inv_wn

    # logits = x_norm @ w_norm ; cosa = logits / 10 (reference quirk kept).
    logits = jnp.dot(x_norm, w_norm, preferred_element_type=jnp.float32)
    cosa = 0.1 * logits
    # cos(acos(cosa) + m) == cosa*cos(m) - sqrt(1 - cosa^2)*sin(m)
    # (exact identity; avoids arccos which has no direct TPU lowering)
    sina = jnp.sqrt(jnp.maximum(1.0 - cosa * cosa, 0.0))
    # e_cos = exp(s*cosa*10) = exp(logits);  e_arc = exp(s*cos(a+m)*10)
    e_cos = jnp.exp(logits)
    e_arc = jnp.exp(logits * COS_M - 10.0 * sina * SIN_M)

    # Exclude zero-padded class columns (cosa == 0 -> e_cos == 1) from the sum.
    col = jax.lax.broadcasted_iota(jnp.int32, e_cos.shape, 1)
    e_cos_valid = jnp.where(col < CLS_NUM, e_cos, 0.0)
    denom = jnp.sum(e_cos_valid, axis=1, keepdims=True) - e_cos + e_arc
    arc_ref[...] = (e_arc * pl.reciprocal(denom, approx=True)).astype(arc_ref.dtype)


@jax.jit
def facenet_forward(x, w0, w_fc, w_arc):
    B = x.shape[0]
    Bp = max(SUBLANE, ((B + SUBLANE - 1) // SUBLANE) * SUBLANE)

    x_flat = x.reshape(B, -1)
    in_dim = x_flat.shape[1]
    in_pad = ((in_dim + 127) // 128) * 128

    # Zero-pad batch / K / class dims to lane- and sublane-aligned shapes and
    # cast the big matmul operands to bf16 (f32 accumulation in the kernel).
    x_p = jnp.zeros((Bp, in_pad), jnp.bfloat16).at[:B, :in_dim].set(
        x_flat.astype(jnp.bfloat16))
    w0_p = jnp.zeros((in_pad, BACKBONE_PAD), jnp.bfloat16).at[
        :in_dim, :BACKBONE_OUT].set(w0.astype(jnp.bfloat16))
    w_fc_p = jnp.zeros((BACKBONE_PAD, FEATURE_NUM), jnp.bfloat16).at[
        :BACKBONE_OUT, :].set(w_fc.astype(jnp.bfloat16))
    w_arc_p = jnp.zeros((FEATURE_NUM, CLS_PAD), jnp.float32).at[
        :, :CLS_NUM].set(w_arc.astype(jnp.float32))

    feat_p, arc_p = pl.pallas_call(
        facenet_fused_kernel,
        out_shape=(
            jax.ShapeDtypeStruct((Bp, FEATURE_NUM), jnp.float32),
            jax.ShapeDtypeStruct((Bp, CLS_PAD), jnp.float32),
        ),
        in_specs=[pl.BlockSpec(memory_space=pltpu.MemorySpace.VMEM)] * 4,
        out_specs=(
            pl.BlockSpec(memory_space=pltpu.MemorySpace.VMEM),
            pl.BlockSpec(memory_space=pltpu.MemorySpace.VMEM),
        ),
    )(x_p, w0_p, w_fc_p, w_arc_p)

    return feat_p[:B], arc_p[:B, :CLS_NUM]


if __name__ == "__main__":
    key = jax.random.PRNGKey(0)
    k_x, k_w0, k_fc, k_arc = jax.random.split(key, 4)

    # Small NCHW image consistent with a conv-backbone input.
    B, C, H, W = 2, 3, 16, 16
    x = jax.random.normal(k_x, (B, C, H, W), dtype=jnp.float32)

    # Deterministic synthetic parameters.
    w0 = 0.02 * jax.random.normal(k_w0, (C * H * W, BACKBONE_OUT), jnp.float32)
    # Linear(1000, 512, bias=False) weight, stored already transposed [1000, 512].
    w_fc = 0.02 * jax.random.normal(k_fc, (BACKBONE_OUT, FEATURE_NUM), jnp.float32)
    # Arcsoftmax.w = randn(feature_num=512, cls_num=12)
    w_arc = jax.random.normal(k_arc, (FEATURE_NUM, CLS_NUM), jnp.float32)

    feature, arcsoftmax = facenet_forward(x, w0, w_fc, w_arc)
    jax.block_until_ready((feature, arcsoftmax))

    assert feature.shape == (B, FEATURE_NUM)
    assert arcsoftmax.shape == (B, CLS_NUM)
    assert bool(jnp.all(jnp.isfinite(feature))) and bool(jnp.all(jnp.isfinite(arcsoftmax)))
    print("KERNEL_OK")
</pallas_src>

<mosaic_0001>
module attributes {stable_mosaic.version = 11 : i64} {
  func.func @facenet_fused_kernel(%arg0: memref<8x768xbf16, #tpu.memory_space<vmem>>, %arg1: memref<768x1024xbf16, #tpu.memory_space<vmem>>, %arg2: memref<1024x512xbf16, #tpu.memory_space<vmem>>, %arg3: memref<512x128xf32, #tpu.memory_space<vmem>>, %arg4: memref<8x512xf32, #tpu.memory_space<vmem>>, %arg5: memref<8x128xf32, #tpu.memory_space<vmem>>) attributes {dimension_semantics = [], scalar_prefetch = 0 : i64, scratch_operands = 0 : i64, tpu.core_type = #tpu.core_type<tc>} {
    %c0 = arith.constant 0 : index
    %c0_0 = arith.constant 0 : index
    %0 = vector.load %arg0[%c0, %c0_0] : memref<8x768xbf16, #tpu.memory_space<vmem>>, vector<8x768xbf16>
    %c0_1 = arith.constant 0 : index
    %c0_2 = arith.constant 0 : index
    %1 = vector.load %arg1[%c0_1, %c0_2] : memref<768x1024xbf16, #tpu.memory_space<vmem>>, vector<768x1024xbf16>
    %cst = arith.constant dense<0.000000e+00> : vector<8x1024xf32>
    %2 = tpu.matmul %0, %1, %cst {dimension_numbers = #tpu.dot_dimension_numbers<[1], [0], [0], [1], [0, 0, 1, 1], [], []>} : vector<8x768xbf16>, vector<768x1024xbf16>, vector<8x1024xf32> -> vector<8x1024xf32>
    %cst_3 = arith.constant 0.000000e+00 : f32
    %3 = vector.broadcast %cst_3 : f32 to vector<8x1024xf32>
    %4 = arith.cmpf ogt, %2, %3 : vector<8x1024xf32>
    %cst_4 = arith.constant 1.000000e-01 : f32
    %5 = vector.broadcast %cst_4 : f32 to vector<8x1024xf32>
    %6 = arith.mulf %5, %2 : vector<8x1024xf32>
    %7 = arith.select %4, %2, %6 : vector<8x1024xi1>, vector<8x1024xf32>
    %8 = arith.truncf %7 : vector<8x1024xf32> to vector<8x1024xbf16>
    %c0_5 = arith.constant 0 : index
    %c0_6 = arith.constant 0 : index
    %9 = vector.load %arg2[%c0_5, %c0_6] : memref<1024x512xbf16, #tpu.memory_space<vmem>>, vector<1024x512xbf16>
    %cst_7 = arith.constant dense<0.000000e+00> : vector<8x512xf32>
    %10 = tpu.matmul %8, %9, %cst_7 {dimension_numbers = #tpu.dot_dimension_numbers<[1], [0], [0], [1], [0, 0, 1, 1], [], []>} : vector<8x1024xbf16>, vector<1024x512xbf16>, vector<8x512xf32> -> vector<8x512xf32>
    %c0_8 = arith.constant 0 : index
    %c0_9 = arith.constant 0 : index
    %11 = vector.load %arg4[%c0_8, %c0_9] : memref<8x512xf32, #tpu.memory_space<vmem>>, vector<8x512xf32>
    tpu.vector_store %arg4[%c0_8, %c0_9], %10 {strides = array<i32>} : memref<8x512xf32, #tpu.memory_space<vmem>>, vector<8x512xf32>,
    %12 = arith.mulf %10, %10 : vector<8x512xf32>
    %cst_10 = arith.constant dense<0.000000e+00> : vector<8xf32>
    %13 = vector.multi_reduction <add>, %12, %cst_10 [1] : vector<8x512xf32> to vector<8xf32>
    %14 = vector.shape_cast %13 : vector<8xf32> to vector<8x1xf32>
    %cst_11 = arith.constant 1.000000e-24 : f32
    %15 = vector.broadcast %cst_11 : f32 to vector<8x1xf32>
    %16 = arith.addf %14, %15 : vector<8x1xf32>
    %17 = math.rsqrt %16 : vector<8x1xf32>
    %18 = vector.broadcast %17 : vector<8x1xf32> to vector<8x512xf32>
    %19 = arith.mulf %10, %18 : vector<8x512xf32>
    %c0_12 = arith.constant 0 : index
    %c0_13 = arith.constant 0 : index
    %20 = vector.load %arg3[%c0_12, %c0_13] : memref<512x128xf32, #tpu.memory_space<vmem>>, vector<512x128xf32>
    %21 = arith.mulf %20, %20 : vector<512x128xf32>
    %cst_14 = arith.constant dense<0.000000e+00> : vector<128xf32>
    %22 = vector.multi_reduction <add>, %21, %cst_14 [0] : vector<512x128xf32> to vector<128xf32>
    %23 = vector.shape_cast %22 : vector<128xf32> to vector<1x128xf32>
    %cst_15 = arith.constant 1.000000e-24 : f32
    %24 = vector.broadcast %cst_15 : f32 to vector<1x128xf32>
    %25 = arith.addf %23, %24 : vector<1x128xf32>
    %26 = math.rsqrt %25 : vector<1x128xf32>
    %27 = vector.broadcast %26 : vector<1x128xf32> to vector<512x128xf32>
    %28 = arith.mulf %20, %27 : vector<512x128xf32>
    %cst_16 = arith.constant dense<0.000000e+00> : vector<8x128xf32>
    %29 = tpu.matmul %19, %28, %cst_16 {dimension_numbers = #tpu.dot_dimension_numbers<[1], [0], [0], [1], [0, 0, 1, 1], [], []>} : vector<8x512xf32>, vector<512x128xf32>, vector<8x128xf32> -> vector<8x128xf32>
    %cst_17 = arith.constant 1.000000e-01 : f32
    %30 = vector.broadcast %cst_17 : f32 to vector<8x128xf32>
    %31 = arith.mulf %30, %29 : vector<8x128xf32>
    %32 = arith.mulf %31, %31 : vector<8x128xf32>
    %cst_18 = arith.constant 1.000000e+00 : f32
    %33 = vector.broadcast %cst_18 : f32 to vector<8x128xf32>
    %34 = arith.subf %33, %32 : vector<8x128xf32>
    %cst_19 = arith.constant 0.000000e+00 : f32
    %35 = vector.broadcast %cst_19 : f32 to vector<8x128xf32>
    %36 = arith.maximumf %34, %35 : vector<8x128xf32>
    %37 = math.sqrt %36 : vector<8x128xf32>
    %38 = math.exp %29 : vector<8x128xf32>
    %cst_20 = arith.constant 0.540302277 : f32
    %39 = vector.broadcast %cst_20 : f32 to vector<8x128xf32>
    %40 = arith.mulf %29, %39 : vector<8x128xf32>
    %cst_21 = arith.constant 1.000000e+01 : f32
    %41 = vector.broadcast %cst_21 : f32 to vector<8x128xf32>
    %42 = arith.mulf %41, %37 : vector<8x128xf32>
    %cst_22 = arith.constant 0.841470957 : f32
    %43 = vector.broadcast %cst_22 : f32 to vector<8x128xf32>
    %44 = arith.mulf %42, %43 : vector<8x128xf32>
    %45 = arith.subf %40, %44 : vector<8x128xf32>
    %46 = math.exp %45 : vector<8x128xf32>
    %47 = tpu.iota {dimensions = array<i32: 1>} : vector<8x128xi32>
    %c12_i32 = arith.constant 12 : i32
    %48 = vector.broadcast %c12_i32 : i32 to vector<8x128xi32>
    %49 = arith.cmpi slt, %47, %48 : vector<8x128xi32>
    %cst_23 = arith.constant 0.000000e+00 : f32
    %50 = vector.broadcast %cst_23 : f32 to vector<8x128xf32>
    %51 = arith.select %49, %38, %50 : vector<8x128xi1>, vector<8x128xf32>
    %cst_24 = arith.constant dense<0.000000e+00> : vector<8xf32>
    %52 = vector.multi_reduction <add>, %51, %cst_24 [1] : vector<8x128xf32> to vector<8xf32>
    %53 = vector.shape_cast %52 : vector<8xf32> to vector<8x1xf32>
    %54 = vector.broadcast %53 : vector<8x1xf32> to vector<8x128xf32>
    %55 = arith.subf %54, %38 : vector<8x128xf32>
    %56 = arith.addf %55, %46 : vector<8x128xf32>
    %57 = tpu.reciprocal %56 {approx = true} : vector<8x128xf32> -> vector<8x128xf32>
    %58 = arith.mulf %46, %57 : vector<8x128xf32>
    %c0_25 = arith.constant 0 : index
    %c0_26 = arith.constant 0 : index
    %59 = vector.load %arg5[%c0_25, %c0_26] : memref<8x128xf32, #tpu.memory_space<vmem>>, vector<8x128xf32>
    tpu.vector_store %arg5[%c0_25, %c0_26], %58 {strides = array<i32>} : memref<8x128xf32, #tpu.memory_space<vmem>>, vector<8x128xf32>,
    return
  }
}

</mosaic_0001>

<llo_original>
// kernel: facenet_forward.1
$region0: #{facenet_forward.1}
  #allocation0 [shape = 'u32[]', space=smem, size = 0x4, offset = 0x4, fixed_abs, tag = 'smem constant byte address 0x4 - core index']
  #allocation1 [shape = 'u32[144,128]{1,0:T(1,128)}', space=vmem, size = 0x12000, scoped, tag = 'internal scratch']
  %s0 = inlined_call_operand.vmem [shape: bf16[8,768], index: 0, kind: input, shape index: {}]
  %s1 = inlined_call_operand.vmem [shape: bf16[768,1024], index: 1, kind: input, shape index: {}]
  %s2 = inlined_call_operand.vmem [shape: bf16[1024,512], index: 2, kind: input, shape index: {}]
  %s3 = inlined_call_operand.vmem [shape: f32[512,128], index: 3, kind: input, shape index: {}]
  %s4 = inlined_call_operand.vmem [shape: f32[8,512], index: 4, kind: output, shape index: {0}]
  %s5 = inlined_call_operand.vmem [shape: f32[8,128], index: 5, kind: output, shape index: {1}]
  %6 = xla_tuple %s4, %s5
  %s7 = sld [smem:[#allocation0]]
  $region34: #{facenet_forward.1} parent=0
    _
  %s9 = ssub.s32 1, %s7
  %s10 = scalar_select 0, %s9, %s7
  // Predicated region
  $region2: #{facenet_forward.1} parent=0 // pred_check
    _
  $region3: #{facenet_forward.1} parent=0 // pred_check_branch
    %12 = sbr.rel (0) target = $region5
  $region4: #{facenet_forward.1} parent=0 // pred_region
    _
  $region5: #{facenet_forward.1} parent=0 // pred_fallthru
    _
  // Predicated region
  $region6: #{facenet_forward.1} parent=0 // pred_check
    _
  $region7: #{facenet_forward.1} parent=0 // pred_check_branch
    %14 = sbr.rel (0) target = $region9
  $region8: #{facenet_forward.1} parent=0 // pred_region
    _
  $region9: #{facenet_forward.1} parent=0 // pred_fallthru
    _
  // Predicated region
  $region10: #{facenet_forward.1} parent=0 // pred_check
    _
  $region11: #{facenet_forward.1} parent=0 // pred_check_branch
    %16 = sbr.rel (0) target = $region13
  $region12: #{facenet_forward.1} parent=0 // pred_region
    _
  $region13: #{facenet_forward.1} parent=0 // pred_fallthru
    _
  // Predicated region
  $region14: #{facenet_forward.1} parent=0 // pred_check
    _
  $region15: #{facenet_forward.1} parent=0 // pred_check_branch
    %18 = sbr.rel (0) target = $region17
  $region16: #{facenet_forward.1} parent=0 // pred_region
    _
  $region17: #{facenet_forward.1} parent=0 // pred_fallthru
    _
  %v19 = vld [vmem:[%s0] sm:$0xff]
  %v20 = vld [vmem:[%s0 + $0x8] sm:$0xff]
  %v21 = vld [vmem:[%s0 + $0x10] sm:$0xff]
  %v22 = vld [vmem:[%s1] sm:$0xff]
  %v23 = vld [vmem:[%s1 + $0x8] sm:$0xff]
  %v24 = vld [vmem:[%s1 + $0x10] sm:$0xff]
  %v25 = vld [vmem:[%s1 + $0x18] sm:$0xff]
  %v26 = vld [vmem:[%s1 + $0x20] sm:$0xff]
  %v27 = vld [vmem:[%s1 + $0x28] sm:$0xff]
  %v28 = vld [vmem:[%s1 + $0x30] sm:$0xff]
  %v29 = vld [vmem:[%s1 + $0x38] sm:$0xff]
  %v30 = vld [vmem:[%s1 + $0x40] sm:$0xff]
  %v31 = vld [vmem:[%s1 + $0x48] sm:$0xff]
  %v32 = vld [vmem:[%s1 + $0x50] sm:$0xff]
  %v33 = vld [vmem:[%s1 + $0x58] sm:$0xff]
  %v34 = vld [vmem:[%s1 + $0x60] sm:$0xff]
  %v35 = vld [vmem:[%s1 + $0x68] sm:$0xff]
  %v36 = vld [vmem:[%s1 + $0x70] sm:$0xff]
  %v37 = vld [vmem:[%s1 + $0x78] sm:$0xff]
  %v38 = vld [vmem:[%s1 + $0x80] sm:$0xff]
  %v39 = vld [vmem:[%s1 + $0x88] sm:$0xff]
  %v40 = vld [vmem:[%s1 + $0x90] sm:$0xff]
  %v41 = vld [vmem:[%s1 + $0x98] sm:$0xff]
  %v42 = vld [vmem:[%s1 + $0xa0] sm:$0xff]
  %v43 = vld [vmem:[%s1 + $0xa8] sm:$0xff]
  %v44 = vld [vmem:[%s1 + $0xb0] sm:$0xff]
  %v45 = vld [vmem:[%s1 + $0xb8] sm:$0xff]
  %v46 = vld [vmem:[%s1 + $0xc0] sm:$0xff]
  %v47 = vld [vmem:[%s1 + $0xc8] sm:$0xff]
  %v48 = vld [vmem:[%s1 + $0xd0] sm:$0xff]
  %v49 = vld [vmem:[%s1 + $0xd8] sm:$0xff]
  %v50 = vld [vmem:[%s1 + $0xe0] sm:$0xff]
  %v51 = vld [vmem:[%s1 + $0xe8] sm:$0xff]
  %v52 = vld [vmem:[%s1 + $0xf0] sm:$0xff]
  %v53 = vld [vmem:[%s1 + $0xf8] sm:$0xff]
  %v54 = vld [vmem:[%s1 + $0x100] sm:$0xff]
  %v55 = vld [vmem:[%s1 + $0x108] sm:$0xff]
  %v56 = vld [vmem:[%s1 + $0x110] sm:$0xff]
  %v57 = vld [vmem:[%s1 + $0x118] sm:$0xff]
  %v58 = vld [vmem:[%s1 + $0x120] sm:$0xff]
  %v59 = vld [vmem:[%s1 + $0x128] sm:$0xff]
  %v60 = vld [vmem:[%s1 + $0x130] sm:$0xff]
  %v61 = vld [vmem:[%s1 + $0x138] sm:$0xff]
  %v62 = vld [vmem:[%s1 + $0x140] sm:$0xff]
  %v63 = vld [vmem:[%s1 + $0x148] sm:$0xff]
  %v64 = vld [vmem:[%s1 + $0x150] sm:$0xff]
  %v65 = vld [vmem:[%s1 + $0x158] sm:$0xff]
  %v66 = vld [vmem:[%s1 + $0x160] sm:$0xff]
  %v67 = vld [vmem:[%s1 + $0x168] sm:$0xff]
  %v68 = vld [vmem:[%s1 + $0x170] sm:$0xff]
  %v69 = vld [vmem:[%s1 + $0x178] sm:$0xff]
  %v70 = vld [vmem:[%s1 + $0x180] sm:$0xff]
  %v71 = vld [vmem:[%s1 + $0x188] sm:$0xff]
  %v72 = vld [vmem:[%s1 + $0x190] sm:$0xff]
  %v73 = vld [vmem:[%s1 + $0x198] sm:$0xff]
  %v74 = vld [vmem:[%s1 + $0x1a0] sm:$0xff]
  %v75 = vld [vmem:[%s1 + $0x1a8] sm:$0xff]
  %v76 = vld [vmem:[%s1 + $0x1b0] sm:$0xff]
  %v77 = vld [vmem:[%s1 + $0x1b8] sm:$0xff]
  %v78 = vld [vmem:[%s1 + $0x1c0] sm:$0xff]
  %v79 = vld [vmem:[%s1 + $0x1c8] sm:$0xff]
  %v80 = vld [vmem:[%s1 + $0x1d0] sm:$0xff]
  %v81 = vld [vmem:[%s1 + $0x1d8] sm:$0xff]
  %v82 = vld [vmem:[%s1 + $0x1e0] sm:$0xff]
  %v83 = vld [vmem:[%s1 + $0x1e8] sm:$0xff]
  %v84 = vld [vmem:[%s1 + $0x1f0] sm:$0xff]
  %v85 = vld [vmem:[%s1 + $0x1f8] sm:$0xff]
  %v86 = vld [vmem:[%s1 + $0x200] sm:$0xff]
  %v87 = vld [vmem:[%s1 + $0x208] sm:$0xff]
  %v88 = vld [vmem:[%s1 + $0x210] sm:$0xff]
  %v89 = vld [vmem:[%s1 + $0x218] sm:$0xff]
  %v90 = vld [vmem:[%s1 + $0x220] sm:$0xff]
  %v91 = vld [vmem:[%s1 + $0x228] sm:$0xff]
  %v92 = vld [vmem:[%s1 + $0x230] sm:$0xff]
  %v93 = vld [vmem:[%s1 + $0x238] sm:$0xff]
  %v94 = vld [vmem:[%s1 + $0x240] sm:$0xff]
  %v95 = vld [vmem:[%s1 + $0x248] sm:$0xff]
  %v96 = vld [vmem:[%s1 + $0x250] sm:$0xff]
  %v97 = vld [vmem:[%s1 + $0x258] sm:$0xff]
  %v98 = vld [vmem:[%s1 + $0x260] sm:$0xff]
  %v99 = vld [vmem:[%s1 + $0x268] sm:$0xff]
  %v100 = vld [vmem:[%s1 + $0x270] sm:$0xff]
  %v101 = vld [vmem:[%s1 + $0x278] sm:$0xff]
  %v102 = vld [vmem:[%s1 + $0x280] sm:$0xff]
  %v103 = vld [vmem:[%s1 + $0x288] sm:$0xff]
  %v104 = vld [vmem:[%s1 + $0x290] sm:$0xff]
  %v105 = vld [vmem:[%s1 + $0x298] sm:$0xff]
  %v106 = vld [vmem:[%s1 + $0x2a0] sm:$0xff]
  %v107 = vld [vmem:[%s1 + $0x2a8] sm:$0xff]
  %v108 = vld [vmem:[%s1 + $0x2b0] sm:$0xff]
  %v109 = vld [vmem:[%s1 + $0x2b8] sm:$0xff]
  %v110 = vld [vmem:[%s1 + $0x2c0] sm:$0xff]
  %v111 = vld [vmem:[%s1 + $0x2c8] sm:$0xff]
  %v112 = vld [vmem:[%s1 + $0x2d0] sm:$0xff]
  %v113 = vld [vmem:[%s1 + $0x2d8] sm:$0xff]
  %v114 = vld [vmem:[%s1 + $0x2e0] sm:$0xff]
  %v115 = vld [vmem:[%s1 + $0x2e8] sm:$0xff]
  %v116 = vld [vmem:[%s1 + $0x2f0] sm:$0xff]
  %v117 = vld [vmem:[%s1 + $0x2f8] sm:$0xff]
  %v118 = vld [vmem:[%s1 + $0x300] sm:$0xff]
  %v119 = vld [vmem:[%s1 + $0x308] sm:$0xff]
  %v120 = vld [vmem:[%s1 + $0x310] sm:$0xff]
  %v121 = vld [vmem:[%s1 + $0x318] sm:$0xff]
  %v122 = vld [vmem:[%s1 + $0x320] sm:$0xff]
  %v123 = vld [vmem:[%s1 + $0x328] sm:$0xff]
  %v124 = vld [vmem:[%s1 + $0x330] sm:$0xff]
  %v125 = vld [vmem:[%s1 + $0x338] sm:$0xff]
  %v126 = vld [vmem:[%s1 + $0x340] sm:$0xff]
  %v127 = vld [vmem:[%s1 + $0x348] sm:$0xff]
  %v128 = vld [vmem:[%s1 + $0x350] sm:$0xff]
  %v129 = vld [vmem:[%s1 + $0x358] sm:$0xff]
  %v130 = vld [vmem:[%s1 + $0x360] sm:$0xff]
  %v131 = vld [vmem:[%s1 + $0x368] sm:$0xff]
  %v132 = vld [vmem:[%s1 + $0x370] sm:$0xff]
  %v133 = vld [vmem:[%s1 + $0x378] sm:$0xff]
  %v134 = vld [vmem:[%s1 + $0x380] sm:$0xff]
  %v135 = vld [vmem:[%s1 + $0x388] sm:$0xff]
  %v136 = vld [vmem:[%s1 + $0x390] sm:$0xff]
  %v137 = vld [vmem:[%s1 + $0x398] sm:$0xff]
  %v138 = vld [vmem:[%s1 + $0x3a0] sm:$0xff]
  %v139 = vld [vmem:[%s1 + $0x3a8] sm:$0xff]
  %v140 = vld [vmem:[%s1 + $0x3b0] sm:$0xff]
  %v141 = vld [vmem:[%s1 + $0x3b8] sm:$0xff]
  %v142 = vld [vmem:[%s1 + $0x3c0] sm:$0xff]
  %v143 = vld [vmem:[%s1 + $0x3c8] sm:$0xff]
  %v144 = vld [vmem:[%s1 + $0x3d0] sm:$0xff]
  %v145 = vld [vmem:[%s1 + $0x3d8] sm:$0xff]
  %v146 = vld [vmem:[%s1 + $0x3e0] sm:$0xff]
  %v147 = vld [vmem:[%s1 + $0x3e8] sm:$0xff]
  %v148 = vld [vmem:[%s1 + $0x3f0] sm:$0xff]
  %v149 = vld [vmem:[%s1 + $0x3f8] sm:$0xff]
  %v150 = vld [vmem:[%s1 + $0x400] sm:$0xff]
  %v151 = vld [vmem:[%s1 + $0x408] sm:$0xff]
  %v152 = vld [vmem:[%s1 + $0x410] sm:$0xff]
  %v153 = vld [vmem:[%s1 + $0x418] sm:$0xff]
  %v154 = vld [vmem:[%s1 + $0x420] sm:$0xff]
  %v155 = vld [vmem:[%s1 + $0x428] sm:$0xff]
  %v156 = vld [vmem:[%s1 + $0x430] sm:$0xff]
  %v157 = vld [vmem:[%s1 + $0x438] sm:$0xff]
  %v158 = vld [vmem:[%s1 + $0x440] sm:$0xff]
  %v159 = vld [vmem:[%s1 + $0x448] sm:$0xff]
  %v160 = vld [vmem:[%s1 + $0x450] sm:$0xff]
  %v161 = vld [vmem:[%s1 + $0x458] sm:$0xff]
  %v162 = vld [vmem:[%s1 + $0x460] sm:$0xff]
  %v163 = vld [vmem:[%s1 + $0x468] sm:$0xff]
  %v164 = vld [vmem:[%s1 + $0x470] sm:$0xff]
  %v165 = vld [vmem:[%s1 + $0x478] sm:$0xff]
  %v166 = vld [vmem:[%s1 + $0x480] sm:$0xff]
  %v167 = vld [vmem:[%s1 + $0x488] sm:$0xff]
  %v168 = vld [vmem:[%s1 + $0x490] sm:$0xff]
  %v169 = vld [vmem:[%s1 + $0x498] sm:$0xff]
  %v170 = vld [vmem:[%s1 + $0x4a0] sm:$0xff]
  %v171 = vld [vmem:[%s1 + $0x4a8] sm:$0xff]
  %v172 = vld [vmem:[%s1 + $0x4b0] sm:$0xff]
  %v173 = vld [vmem:[%s1 + $0x4b8] sm:$0xff]
  %v174 = vld [vmem:[%s1 + $0x4c0] sm:$0xff]
  %v175 = vld [vmem:[%s1 + $0x4c8] sm:$0xff]
  %v176 = vld [vmem:[%s1 + $0x4d0] sm:$0xff]
  %v177 = vld [vmem:[%s1 + $0x4d8] sm:$0xff]
  %v178 = vld [vmem:[%s1 + $0x4e0] sm:$0xff]
  %v179 = vld [vmem:[%s1 + $0x4e8] sm:$0xff]
  %v180 = vld [vmem:[%s1 + $0x4f0] sm:$0xff]
  %v181 = vld [vmem:[%s1 + $0x4f8] sm:$0xff]
  %v182 = vld [vmem:[%s1 + $0x500] sm:$0xff]
  %v183 = vld [vmem:[%s1 + $0x508] sm:$0xff]
  %v184 = vld [vmem:[%s1 + $0x510] sm:$0xff]
  %v185 = vld [vmem:[%s1 + $0x518] sm:$0xff]
  %v186 = vld [vmem:[%s1 + $0x520] sm:$0xff]
  %v187 = vld [vmem:[%s1 + $0x528] sm:$0xff]
  %v188 = vld [vmem:[%s1 + $0x530] sm:$0xff]
  %v189 = vld [vmem:[%s1 + $0x538] sm:$0xff]
  %v190 = vld [vmem:[%s1 + $0x540] sm:$0xff]
  %v191 = vld [vmem:[%s1 + $0x548] sm:$0xff]
  %v192 = vld [vmem:[%s1 + $0x550] sm:$0xff]
  %v193 = vld [vmem:[%s1 + $0x558] sm:$0xff]
  %v194 = vld [vmem:[%s1 + $0x560] sm:$0xff]
  %v195 = vld [vmem:[%s1 + $0x568] sm:$0xff]
  %v196 = vld [vmem:[%s1 + $0x570] sm:$0xff]
  %v197 = vld [vmem:[%s1 + $0x578] sm:$0xff]
  %v198 = vld [vmem:[%s1 + $0x580] sm:$0xff]
  %v199 = vld [vmem:[%s1 + $0x588] sm:$0xff]
  %v200 = vld [vmem:[%s1 + $0x590] sm:$0xff]
  %v201 = vld [vmem:[%s1 + $0x598] sm:$0xff]
  %v202 = vld [vmem:[%s1 + $0x5a0] sm:$0xff]
  %v203 = vld [vmem:[%s1 + $0x5a8] sm:$0xff]
  %v204 = vld [vmem:[%s1 + $0x5b0] sm:$0xff]
  %v205 = vld [vmem:[%s1 + $0x5b8] sm:$0xff]
  %v206 = vld [vmem:[%s1 + $0x5c0] sm:$0xff]
  %v207 = vld [vmem:[%s1 + $0x5c8] sm:$0xff]
  %v208 = vld [vmem:[%s1 + $0x5d0] sm:$0xff]
  %v209 = vld [vmem:[%s1 + $0x5d8] sm:$0xff]
  %v210 = vld [vmem:[%s1 + $0x5e0] sm:$0xff]
  %v211 = vld [vmem:[%s1 + $0x5e8] sm:$0xff]
  %v212 = vld [vmem:[%s1 + $0x5f0] sm:$0xff]
  %v213 = vld [vmem:[%s1 + $0x5f8] sm:$0xff]
  %v214 = vld [vmem:[%s1 + $0x600] sm:$0xff]
  %v215 = vld [vmem:[%s1 + $0x608] sm:$0xff]
  %v216 = vld [vmem:[%s1 + $0x610] sm:$0xff]
  %v217 = vld [vmem:[%s1 + $0x618] sm:$0xff]
  %v218 = vld [vmem:[%s1 + $0x620] sm:$0xff]
  %v219 = vld [vmem:[%s1 + $0x628] sm:$0xff]
  %v220 = vld [vmem:[%s1 + $0x630] sm:$0xff]
  %v221 = vld [vmem:[%s1 + $0x638] sm:$0xff]
  %v222 = vld [vmem:[%s1 + $0x640] sm:$0xff]
  %v223 = vld [vmem:[%s1 + $0x648] sm:$0xff]
  %v224 = vld [vmem:[%s1 + $0x650] sm:$0xff]
  %v225 = vld [vmem:[%s1 + $0x658] sm:$0xff]
  %v226 = vld [vmem:[%s1 + $0x660] sm:$0xff]
  %v227 = vld [vmem:[%s1 + $0x668] sm:$0xff]
  %v228 = vld [vmem:[%s1 + $0x670] sm:$0xff]
  %v229 = vld [vmem:[%s1 + $0x678] sm:$0xff]
  %v230 = vld [vmem:[%s1 + $0x680] sm:$0xff]
  %v231 = vld [vmem:[%s1 + $0x688] sm:$0xff]
  %v232 = vld [vmem:[%s1 + $0x690] sm:$0xff]
  %v233 = vld [vmem:[%s1 + $0x698] sm:$0xff]
  %v234 = vld [vmem:[%s1 + $0x6a0] sm:$0xff]
  %v235 = vld [vmem:[%s1 + $0x6a8] sm:$0xff]
  %v236 = vld [vmem:[%s1 + $0x6b0] sm:$0xff]
  %v237 = vld [vmem:[%s1 + $0x6b8] sm:$0xff]
  %v238 = vld [vmem:[%s1 + $0x6c0] sm:$0xff]
  %v239 = vld [vmem:[%s1 + $0x6c8] sm:$0xff]
  %v240 = vld [vmem:[%s1 + $0x6d0] sm:$0xff]
  %v241 = vld [vmem:[%s1 + $0x6d8] sm:$0xff]
  %v242 = vld [vmem:[%s1 + $0x6e0] sm:$0xff]
  %v243 = vld [vmem:[%s1 + $0x6e8] sm:$0xff]
  %v244 = vld [vmem:[%s1 + $0x6f0] sm:$0xff]
  %v245 = vld [vmem:[%s1 + $0x6f8] sm:$0xff]
  %v246 = vld [vmem:[%s1 + $0x700] sm:$0xff]
  %v247 = vld [vmem:[%s1 + $0x708] sm:$0xff]
  %v248 = vld [vmem:[%s1 + $0x710] sm:$0xff]
  %v249 = vld [vmem:[%s1 + $0x718] sm:$0xff]
  %v250 = vld [vmem:[%s1 + $0x720] sm:$0xff]
  %v251 = vld [vmem:[%s1 + $0x728] sm:$0xff]
  %v252 = vld [vmem:[%s1 + $0x730] sm:$0xff]
  %v253 = vld [vmem:[%s1 + $0x738] sm:$0xff]
  %v254 = vld [vmem:[%s1 + $0x740] sm:$0xff]
  %v255 = vld [vmem:[%s1 + $0x748] sm:$0xff]
  %v256 = vld [vmem:[%s1 + $0x750] sm:$0xff]
  %v257 = vld [vmem:[%s1 + $0x758] sm:$0xff]
  %v258 = vld [vmem:[%s1 + $0x760] sm:$0xff]
  %v259 = vld [vmem:[%s1 + $0x768] sm:$0xff]
  %v260 = vld [vmem:[%s1 + $0x770] sm:$0xff]
  %v261 = vld [vmem:[%s1 + $0x778] sm:$0xff]
  %v262 = vld [vmem:[%s1 + $0x780] sm:$0xff]
  %v263 = vld [vmem:[%s1 + $0x788] sm:$0xff]
  %v264 = vld [vmem:[%s1 + $0x790] sm:$0xff]
  %v265 = vld [vmem:[%s1 + $0x798] sm:$0xff]
  %v266 = vld [vmem:[%s1 + $0x7a0] sm:$0xff]
  %v267 = vld [vmem:[%s1 + $0x7a8] sm:$0xff]
  %v268 = vld [vmem:[%s1 + $0x7b0] sm:$0xff]
  %v269 = vld [vmem:[%s1 + $0x7b8] sm:$0xff]
  %v270 = vld [vmem:[%s1 + $0x7c0] sm:$0xff]
  %v271 = vld [vmem:[%s1 + $0x7c8] sm:$0xff]
  %v272 = vld [vmem:[%s1 + $0x7d0] sm:$0xff]
  %v273 = vld [vmem:[%s1 + $0x7d8] sm:$0xff]
  %v274 = vld [vmem:[%s1 + $0x7e0] sm:$0xff]
  %v275 = vld [vmem:[%s1 + $0x7e8] sm:$0xff]
  %v276 = vld [vmem:[%s1 + $0x7f0] sm:$0xff]
  %v277 = vld [vmem:[%s1 + $0x7f8] sm:$0xff]
  %v278 = vld [vmem:[%s1 + $0x800] sm:$0xff]
  %v279 = vld [vmem:[%s1 + $0x808] sm:$0xff]
  %v280 = vld [vmem:[%s1 + $0x810] sm:$0xff]
  %v281 = vld [vmem:[%s1 + $0x818] sm:$0xff]
  %v282 = vld [vmem:[%s1 + $0x820] sm:$0xff]
  %v283 = vld [vmem:[%s1 + $0x828] sm:$0xff]
  %v284 = vld [vmem:[%s1 + $0x830] sm:$0xff]
  %v285 = vld [vmem:[%s1 + $0x838] sm:$0xff]
  %v286 = vld [vmem:[%s1 + $0x840] sm:$0xff]
  %v287 = vld [vmem:[%s1 + $0x848] sm:$0xff]
  %v288 = vld [vmem:[%s1 + $0x850] sm:$0xff]
  %v289 = vld [vmem:[%s1 + $0x858] sm:$0xff]
  %v290 = vld [vmem:[%s1 + $0x860] sm:$0xff]
  %v291 = vld [vmem:[%s1 + $0x868] sm:$0xff]
  %v292 = vld [vmem:[%s1 + $0x870] sm:$0xff]
  %v293 = vld [vmem:[%s1 + $0x878] sm:$0xff]
  %v294 = vld [vmem:[%s1 + $0x880] sm:$0xff]
  %v295 = vld [vmem:[%s1 + $0x888] sm:$0xff]
  %v296 = vld [vmem:[%s1 + $0x890] sm:$0xff]
  %v297 = vld [vmem:[%s1 + $0x898] sm:$0xff]
  %v298 = vld [vmem:[%s1 + $0x8a0] sm:$0xff]
  %v299 = vld [vmem:[%s1 + $0x8a8] sm:$0xff]
  %v300 = vld [vmem:[%s1 + $0x8b0] sm:$0xff]
  %v301 = vld [vmem:[%s1 + $0x8b8] sm:$0xff]
  %v302 = vld [vmem:[%s1 + $0x8c0] sm:$0xff]
  %v303 = vld [vmem:[%s1 + $0x8c8] sm:$0xff]
  %v304 = vld [vmem:[%s1 + $0x8d0] sm:$0xff]
  %v305 = vld [vmem:[%s1 + $0x8d8] sm:$0xff]
  %v306 = vld [vmem:[%s1 + $0x8e0] sm:$0xff]
  %v307 = vld [vmem:[%s1 + $0x8e8] sm:$0xff]
  %v308 = vld [vmem:[%s1 + $0x8f0] sm:$0xff]
  %v309 = vld [vmem:[%s1 + $0x8f8] sm:$0xff]
  %v310 = vld [vmem:[%s1 + $0x900] sm:$0xff]
  %v311 = vld [vmem:[%s1 + $0x908] sm:$0xff]
  %v312 = vld [vmem:[%s1 + $0x910] sm:$0xff]
  %v313 = vld [vmem:[%s1 + $0x918] sm:$0xff]
  %v314 = vld [vmem:[%s1 + $0x920] sm:$0xff]
  %v315 = vld [vmem:[%s1 + $0x928] sm:$0xff]
  %v316 = vld [vmem:[%s1 + $0x930] sm:$0xff]
  %v317 = vld [vmem:[%s1 + $0x938] sm:$0xff]
  %v318 = vld [vmem:[%s1 + $0x940] sm:$0xff]
  %v319 = vld [vmem:[%s1 + $0x948] sm:$0xff]
  %v320 = vld [vmem:[%s1 + $0x950] sm:$0xff]
  %v321 = vld [vmem:[%s1 + $0x958] sm:$0xff]
  %v322 = vld [vmem:[%s1 + $0x960] sm:$0xff]
  %v323 = vld [vmem:[%s1 + $0x968] sm:$0xff]
  %v324 = vld [vmem:[%s1 + $0x970] sm:$0xff]
  %v325 = vld [vmem:[%s1 + $0x978] sm:$0xff]
  %v326 = vld [vmem:[%s1 + $0x980] sm:$0xff]
  %v327 = vld [vmem:[%s1 + $0x988] sm:$0xff]
  %v328 = vld [vmem:[%s1 + $0x990] sm:$0xff]
  %v329 = vld [vmem:[%s1 + $0x998] sm:$0xff]
  %v330 = vld [vmem:[%s1 + $0x9a0] sm:$0xff]
  %v331 = vld [vmem:[%s1 + $0x9a8] sm:$0xff]
  %v332 = vld [vmem:[%s1 + $0x9b0] sm:$0xff]
  %v333 = vld [vmem:[%s1 + $0x9b8] sm:$0xff]
  %v334 = vld [vmem:[%s1 + $0x9c0] sm:$0xff]
  %v335 = vld [vmem:[%s1 + $0x9c8] sm:$0xff]
  %v336 = vld [vmem:[%s1 + $0x9d0] sm:$0xff]
  %v337 = vld [vmem:[%s1 + $0x9d8] sm:$0xff]
  %v338 = vld [vmem:[%s1 + $0x9e0] sm:$0xff]
  %v339 = vld [vmem:[%s1 + $0x9e8] sm:$0xff]
  %v340 = vld [vmem:[%s1 + $0x9f0] sm:$0xff]
  %v341 = vld [vmem:[%s1 + $0x9f8] sm:$0xff]
  %v342 = vld [vmem:[%s1 + $0xa00] sm:$0xff]
  %v343 = vld [vmem:[%s1 + $0xa08] sm:$0xff]
  %v344 = vld [vmem:[%s1 + $0xa10] sm:$0xff]
  %v345 = vld [vmem:[%s1 + $0xa18] sm:$0xff]
  %v346 = vld [vmem:[%s1 + $0xa20] sm:$0xff]
  %v347 = vld [vmem:[%s1 + $0xa28] sm:$0xff]
  %v348 = vld [vmem:[%s1 + $0xa30] sm:$0xff]
  %v349 = vld [vmem:[%s1 + $0xa38] sm:$0xff]
  %v350 = vld [vmem:[%s1 + $0xa40] sm:$0xff]
  %v351 = vld [vmem:[%s1 + $0xa48] sm:$0xff]
  %v352 = vld [vmem:[%s1 + $0xa50] sm:$0xff]
  %v353 = vld [vmem:[%s1 + $0xa58] sm:$0xff]
  %v354 = vld [vmem:[%s1 + $0xa60] sm:$0xff]
  %v355 = vld [vmem:[%s1 + $0xa68] sm:$0xff]
  %v356 = vld [vmem:[%s1 + $0xa70] sm:$0xff]
  %v357 = vld [vmem:[%s1 + $0xa78] sm:$0xff]
  %v358 = vld [vmem:[%s1 + $0xa80] sm:$0xff]
  %v359 = vld [vmem:[%s1 + $0xa88] sm:$0xff]
  %v360 = vld [vmem:[%s1 + $0xa90] sm:$0xff]
  %v361 = vld [vmem:[%s1 + $0xa98] sm:$0xff]
  %v362 = vld [vmem:[%s1 + $0xaa0] sm:$0xff]
  %v363 = vld [vmem:[%s1 + $0xaa8] sm:$0xff]
  %v364 = vld [vmem:[%s1 + $0xab0] sm:$0xff]
  %v365 = vld [vmem:[%s1 + $0xab8] sm:$0xff]
  %v366 = vld [vmem:[%s1 + $0xac0] sm:$0xff]
  %v367 = vld [vmem:[%s1 + $0xac8] sm:$0xff]
  %v368 = vld [vmem:[%s1 + $0xad0] sm:$0xff]
  %v369 = vld [vmem:[%s1 + $0xad8] sm:$0xff]
  %v370 = vld [vmem:[%s1 + $0xae0] sm:$0xff]
  %v371 = vld [vmem:[%s1 + $0xae8] sm:$0xff]
  %v372 = vld [vmem:[%s1 + $0xaf0] sm:$0xff]
  %v373 = vld [vmem:[%s1 + $0xaf8] sm:$0xff]
  %v374 = vld [vmem:[%s1 + $0xb00] sm:$0xff]
  %v375 = vld [vmem:[%s1 + $0xb08] sm:$0xff]
  %v376 = vld [vmem:[%s1 + $0xb10] sm:$0xff]
  %v377 = vld [vmem:[%s1 + $0xb18] sm:$0xff]
  %v378 = vld [vmem:[%s1 + $0xb20] sm:$0xff]
  %v379 = vld [vmem:[%s1 + $0xb28] sm:$0xff]
  %v380 = vld [vmem:[%s1 + $0xb30] sm:$0xff]
  %v381 = vld [vmem:[%s1 + $0xb38] sm:$0xff]
  %v382 = vld [vmem:[%s1 + $0xb40] sm:$0xff]
  %v383 = vld [vmem:[%s1 + $0xb48] sm:$0xff]
  %v384 = vld [vmem:[%s1 + $0xb50] sm:$0xff]
  %v385 = vld [vmem:[%s1 + $0xb58] sm:$0xff]
  %v386 = vld [vmem:[%s1 + $0xb60] sm:$0xff]
  %v387 = vld [vmem:[%s1 + $0xb68] sm:$0xff]
  %v388 = vld [vmem:[%s1 + $0xb70] sm:$0xff]
  %v389 = vld [vmem:[%s1 + $0xb78] sm:$0xff]
  %v390 = vld [vmem:[%s1 + $0xb80] sm:$0xff]
  %v391 = vld [vmem:[%s1 + $0xb88] sm:$0xff]
  %v392 = vld [vmem:[%s1 + $0xb90] sm:$0xff]
  %v393 = vld [vmem:[%s1 + $0xb98] sm:$0xff]
  %v394 = vld [vmem:[%s1 + $0xba0] sm:$0xff]
  %v395 = vld [vmem:[%s1 + $0xba8] sm:$0xff]
  %v396 = vld [vmem:[%s1 + $0xbb0] sm:$0xff]
  %v397 = vld [vmem:[%s1 + $0xbb8] sm:$0xff]
  %v398 = vld [vmem:[%s1 + $0xbc0] sm:$0xff]
  %v399 = vld [vmem:[%s1 + $0xbc8] sm:$0xff]
  %v400 = vld [vmem:[%s1 + $0xbd0] sm:$0xff]
  %v401 = vld [vmem:[%s1 + $0xbd8] sm:$0xff]
  %v402 = vld [vmem:[%s1 + $0xbe0] sm:$0xff]
  %v403 = vld [vmem:[%s1 + $0xbe8] sm:$0xff]
  %v404 = vld [vmem:[%s1 + $0xbf0] sm:$0xff]
  %v405 = vld [vmem:[%s1 + $0xbf8] sm:$0xff]
  %v409 = vunpack.c.l.b16 %v19
  %v410 = vunpack.c.h.b16 %v19
  %v411 = vunpack.c.l.b16 %v20
  %v412 = vunpack.c.h.b16 %v20
  %v413 = vunpack.c.l.b16 %v21
  %v414 = vunpack.c.h.b16 %v21
  %v415 = vpack.c.b16 %v409, %v409
  %v416 = vpack.c.b16 %v410, %v410
  %v417 = vpack.c.b16 %v411, %v411
  %v418 = vpack.c.b16 %v412, %v412
  %v419 = vpack.c.b16 %v413, %v413
  %v420 = vpack.c.b16 %v414, %v414
  %v811 = vunpack.c.l.b16 %v22
  %v812 = vunpack.c.h.b16 %v22
  %v813 = vunpack.c.l.b16 %v23
  %v814 = vunpack.c.h.b16 %v23
  %v815 = vunpack.c.l.b16 %v24
  %v816 = vunpack.c.h.b16 %v24
  %v817 = vunpack.c.l.b16 %v25
  %v818 = vunpack.c.h.b16 %v25
  %v819 = vunpack.c.l.b16 %v26
  %v820 = vunpack.c.h.b16 %v26
  %v821 = vunpack.c.l.b16 %v27
  %v822 = vunpack.c.h.b16 %v27
  %v823 = vunpack.c.l.b16 %v28
  %v824 = vunpack.c.h.b16 %v28
  %v825 = vunpack.c.l.b16 %v29
  %v826 = vunpack.c.h.b16 %v29
  %v827 = vunpack.c.l.b16 %v30
  %v828 = vunpack.c.h.b16 %v30
  %v829 = vunpack.c.l.b16 %v31
  %v830 = vunpack.c.h.b16 %v31
  %v831 = vunpack.c.l.b16 %v32
  %v832 = vunpack.c.h.b16 %v32
  %v833 = vunpack.c.l.b16 %v33
  %v834 = vunpack.c.h.b16 %v33
  %v835 = vunpack.c.l.b16 %v34
  %v836 = vunpack.c.h.b16 %v34
  %v837 = vunpack.c.l.b16 %v35
  %v838 = vunpack.c.h.b16 %v35
  %v839 = vunpack.c.l.b16 %v36
  %v840 = vunpack.c.h.b16 %v36
  %v841 = vunpack.c.l.b16 %v37
  %v842 = vunpack.c.h.b16 %v37
  %v843 = vunpack.c.l.b16 %v38
  %v844 = vunpack.c.h.b16 %v38
  %v845 = vunpack.c.l.b16 %v39
  %v846 = vunpack.c.h.b16 %v39
  %v847 = vunpack.c.l.b16 %v40
  %v848 = vunpack.c.h.b16 %v40
  %v849 = vunpack.c.l.b16 %v41
  %v850 = vunpack.c.h.b16 %v41
  %v851 = vunpack.c.l.b16 %v42
  %v852 = vunpack.c.h.b16 %v42
  %v853 = vunpack.c.l.b16 %v43
  %v854 = vunpack.c.h.b16 %v43
  %v855 = vunpack.c.l.b16 %v44
  %v856 = vunpack.c.h.b16 %v44
  %v857 = vunpack.c.l.b16 %v45
  %v858 = vunpack.c.h.b16 %v45
  %v859 = vunpack.c.l.b16 %v46
  %v860 = vunpack.c.h.b16 %v46
  %v861 = vunpack.c.l.b16 %v47
  %v862 = vunpack.c.h.b16 %v47
  %v863 = vunpack.c.l.b16 %v48
  %v864 = vunpack.c.h.b16 %v48
  %v865 = vunpack.c.l.b16 %v49
  %v866 = vunpack.c.h.b16 %v49
  %v867 = vunpack.c.l.b16 %v50
  %v868 = vunpack.c.h.b16 %v50
  %v869 = vunpack.c.l.b16 %v51
  %v870 = vunpack.c.h.b16 %v51
  %v871 = vunpack.c.l.b16 %v52
  %v872 = vunpack.c.h.b16 %v52
  %v873 = vunpack.c.l.b16 %v53
  %v874 = vunpack.c.h.b16 %v53
  %v875 = vunpack.c.l.b16 %v54
  %v876 = vunpack.c.h.b16 %v54
  %v877 = vunpack.c.l.b16 %v55
  %v878 = vunpack.c.h.b16 %v55
  %v879 = vunpack.c.l.b16 %v56
  %v880 = vunpack.c.h.b16 %v56
  %v881 = vunpack.c.l.b16 %v57
  %v882 = vunpack.c.h.b16 %v57
  %v883 = vunpack.c.l.b16 %v58
  %v884 = vunpack.c.h.b16 %v58
  %v885 = vunpack.c.l.b16 %v59
  %v886 = vunpack.c.h.b16 %v59
  %v887 = vunpack.c.l.b16 %v60
  %v888 = vunpack.c.h.b16 %v60
  %v889 = vunpack.c.l.b16 %v61
  %v890 = vunpack.c.h.b16 %v61
  %v891 = vunpack.c.l.b16 %v62
  %v892 = vunpack.c.h.b16 %v62
  %v893 = vunpack.c.l.b16 %v63
  %v894 = vunpack.c.h.b16 %v63
  %v895 = vunpack.c.l.b16 %v64
  %v896 = vunpack.c.h.b16 %v64
  %v897 = vunpack.c.l.b16 %v65
  %v898 = vunpack.c.h.b16 %v65
  %v899 = vunpack.c.l.b16 %v66
  %v900 = vunpack.c.h.b16 %v66
  %v901 = vunpack.c.l.b16 %v67
  %v902 = vunpack.c.h.b16 %v67
  %v903 = vunpack.c.l.b16 %v68
  %v904 = vunpack.c.h.b16 %v68
  %v905 = vunpack.c.l.b16 %v69
  %v906 = vunpack.c.h.b16 %v69
  %v907 = vunpack.c.l.b16 %v70
  %v908 = vunpack.c.h.b16 %v70
  %v909 = vunpack.c.l.b16 %v71
  %v910 = vunpack.c.h.b16 %v71
  %v911 = vunpack.c.l.b16 %v72
  %v912 = vunpack.c.h.b16 %v72
  %v913 = vunpack.c.l.b16 %v73
  %v914 = vunpack.c.h.b16 %v73
  %v915 = vunpack.c.l.b16 %v74
  %v916 = vunpack.c.h.b16 %v74
  %v917 = vunpack.c.l.b16 %v75
  %v918 = vunpack.c.h.b16 %v75
  %v919 = vunpack.c.l.b16 %v76
  %v920 = vunpack.c.h.b16 %v76
  %v921 = vunpack.c.l.b16 %v77
  %v922 = vunpack.c.h.b16 %v77
  %v923 = vunpack.c.l.b16 %v78
  %v924 = vunpack.c.h.b16 %v78
  %v925 = vunpack.c.l.b16 %v79
  %v926 = vunpack.c.h.b16 %v79
  %v927 = vunpack.c.l.b16 %v80
  %v928 = vunpack.c.h.b16 %v80
  %v929 = vunpack.c.l.b16 %v81
  %v930 = vunpack.c.h.b16 %v81
  %v931 = vunpack.c.l.b16 %v82
  %v932 = vunpack.c.h.b16 %v82
  %v933 = vunpack.c.l.b16 %v83
  %v934 = vunpack.c.h.b16 %v83
  %v935 = vunpack.c.l.b16 %v84
  %v936 = vunpack.c.h.b16 %v84
  %v937 = vunpack.c.l.b16 %v85
  %v938 = vunpack.c.h.b16 %v85
  %v939 = vunpack.c.l.b16 %v86
  %v940 = vunpack.c.h.b16 %v86
  %v941 = vunpack.c.l.b16 %v87
  %v942 = vunpack.c.h.b16 %v87
  %v943 = vunpack.c.l.b16 %v88
  %v944 = vunpack.c.h.b16 %v88
  %v945 = vunpack.c.l.b16 %v89
  %v946 = vunpack.c.h.b16 %v89
  %v947 = vunpack.c.l.b16 %v90
  %v948 = vunpack.c.h.b16 %v90
  %v949 = vunpack.c.l.b16 %v91
  %v950 = vunpack.c.h.b16 %v91
  %v951 = vunpack.c.l.b16 %v92
  %v952 = vunpack.c.h.b16 %v92
  %v953 = vunpack.c.l.b16 %v93
  %v954 = vunpack.c.h.b16 %v93
  %v955 = vunpack.c.l.b16 %v94
  %v956 = vunpack.c.h.b16 %v94
  %v957 = vunpack.c.l.b16 %v95
  %v958 = vunpack.c.h.b16 %v95
  %v959 = vunpack.c.l.b16 %v96
  %v960 = vunpack.c.h.b16 %v96
  %v961 = vunpack.c.l.b16 %v97
  %v962 = vunpack.c.h.b16 %v97
  %v963 = vunpack.c.l.b16 %v98
  %v964 = vunpack.c.h.b16 %v98
  %v965 = vunpack.c.l.b16 %v99
  %v966 = vunpack.c.h.b16 %v99
  %v967 = vunpack.c.l.b16 %v100
  %v968 = vunpack.c.h.b16 %v100
  %v969 = vunpack.c.l.b16 %v101
  %v970 = vunpack.c.h.b16 %v101
  %v971 = vunpack.c.l.b16 %v102
  %v972 = vunpack.c.h.b16 %v102
  %v973 = vunpack.c.l.b16 %v103
  %v974 = vunpack.c.h.b16 %v103
  %v975 = vunpack.c.l.b16 %v104
  %v976 = vunpack.c.h.b16 %v104
  %v977 = vunpack.c.l.b16 %v105
  %v978 = vunpack.c.h.b16 %v105
  %v979 = vunpack.c.l.b16 %v106
  %v980 = vunpack.c.h.b16 %v106
  %v981 = vunpack.c.l.b16 %v107
  %v982 = vunpack.c.h.b16 %v107
  %v983 = vunpack.c.l.b16 %v108
  %v984 = vunpack.c.h.b16 %v108
  %v985 = vunpack.c.l.b16 %v109
  %v986 = vunpack.c.h.b16 %v109
  %v987 = vunpack.c.l.b16 %v110
  %v988 = vunpack.c.h.b16 %v110
  %v989 = vunpack.c.l.b16 %v111
  %v990 = vunpack.c.h.b16 %v111
  %v991 = vunpack.c.l.b16 %v112
  %v992 = vunpack.c.h.b16 %v112
  %v993 = vunpack.c.l.b16 %v113
  %v994 = vunpack.c.h.b16 %v113
  %v995 = vunpack.c.l.b16 %v114
  %v996 = vunpack.c.h.b16 %v114
  %v997 = vunpack.c.l.b16 %v115
  %v998 = vunpack.c.h.b16 %v115
  %v999 = vunpack.c.l.b16 %v116
  %v1000 = vunpack.c.h.b16 %v116
  %v1001 = vunpack.c.l.b16 %v117
  %v1002 = vunpack.c.h.b16 %v117
  %v1003 = vunpack.c.l.b16 %v118
  %v1004 = vunpack.c.h.b16 %v118
  %v1005 = vunpack.c.l.b16 %v119
  %v1006 = vunpack.c.h.b16 %v119
  %v1007 = vunpack.c.l.b16 %v120
  %v1008 = vunpack.c.h.b16 %v120
  %v1009 = vunpack.c.l.b16 %v121
  %v1010 = vunpack.c.h.b16 %v121
  %v1011 = vunpack.c.l.b16 %v122
  %v1012 = vunpack.c.h.b16 %v122
  %v1013 = vunpack.c.l.b16 %v123
  %v1014 = vunpack.c.h.b16 %v123
  %v1015 = vunpack.c.l.b16 %v124
  %v1016 = vunpack.c.h.b16 %v124
  %v1017 = vunpack.c.l.b16 %v125
  %v1018 = vunpack.c.h.b16 %v125
  %v1019 = vunpack.c.l.b16 %v126
  %v1020 = vunpack.c.h.b16 %v126
  %v1021 = vunpack.c.l.b16 %v127
  %v1022 = vunpack.c.h.b16 %v127
  %v1023 = vunpack.c.l.b16 %v128
  %v1024 = vunpack.c.h.b16 %v128
  %v1025 = vunpack.c.l.b16 %v129
  %v1026 = vunpack.c.h.b16 %v129
  %v1027 = vunpack.c.l.b16 %v130
  %v1028 = vunpack.c.h.b16 %v130
  %v1029 = vunpack.c.l.b16 %v131
  %v1030 = vunpack.c.h.b16 %v131
  %v1031 = vunpack.c.l.b16 %v132
  %v1032 = vunpack.c.h.b16 %v132
  %v1033 = vunpack.c.l.b16 %v133
  %v1034 = vunpack.c.h.b16 %v133
  %v1035 = vunpack.c.l.b16 %v134
  %v1036 = vunpack.c.h.b16 %v134
  %v1037 = vunpack.c.l.b16 %v135
  %v1038 = vunpack.c.h.b16 %v135
  %v1039 = vunpack.c.l.b16 %v136
  %v1040 = vunpack.c.h.b16 %v136
  %v1041 = vunpack.c.l.b16 %v137
  %v1042 = vunpack.c.h.b16 %v137
  %v1043 = vunpack.c.l.b16 %v138
  %v1044 = vunpack.c.h.b16 %v138
  %v1045 = vunpack.c.l.b16 %v139
  %v1046 = vunpack.c.h.b16 %v139
  %v1047 = vunpack.c.l.b16 %v140
  %v1048 = vunpack.c.h.b16 %v140
  %v1049 = vunpack.c.l.b16 %v141
  %v1050 = vunpack.c.h.b16 %v141
  %v1051 = vunpack.c.l.b16 %v142
  %v1052 = vunpack.c.h.b16 %v142
  %v1053 = vunpack.c.l.b16 %v143
  %v1054 = vunpack.c.h.b16 %v143
  %v1055 = vunpack.c.l.b16 %v144
  %v1056 = vunpack.c.h.b16 %v144
  %v1057 = vunpack.c.l.b16 %v145
  %v1058 = vunpack.c.h.b16 %v145
  %v1059 = vunpack.c.l.b16 %v146
  %v1060 = vunpack.c.h.b16 %v146
  %v1061 = vunpack.c.l.b16 %v147
  %v1062 = vunpack.c.h.b16 %v147
  %v1063 = vunpack.c.l.b16 %v148
  %v1064 = vunpack.c.h.b16 %v148
  %v1065 = vunpack.c.l.b16 %v149
  %v1066 = vunpack.c.h.b16 %v149
  %v1067 = vunpack.c.l.b16 %v150
  %v1068 = vunpack.c.h.b16 %v150
  %v1069 = vunpack.c.l.b16 %v151
  %v1070 = vunpack.c.h.b16 %v151
  %v1071 = vunpack.c.l.b16 %v152
  %v1072 = vunpack.c.h.b16 %v152
  %v1073 = vunpack.c.l.b16 %v153
  %v1074 = vunpack.c.h.b16 %v153
  %v1075 = vunpack.c.l.b16 %v154
  %v1076 = vunpack.c.h.b16 %v154
  %v1077 = vunpack.c.l.b16 %v155
  %v1078 = vunpack.c.h.b16 %v155
  %v1079 = vunpack.c.l.b16 %v156
  %v1080 = vunpack.c.h.b16 %v156
  %v1081 = vunpack.c.l.b16 %v157
  %v1082 = vunpack.c.h.b16 %v157
  %v1083 = vunpack.c.l.b16 %v158
  %v1084 = vunpack.c.h.b16 %v158
  %v1085 = vunpack.c.l.b16 %v159
  %v1086 = vunpack.c.h.b16 %v159
  %v1087 = vunpack.c.l.b16 %v160
  %v1088 = vunpack.c.h.b16 %v160
  %v1089 = vunpack.c.l.b16 %v161
  %v1090 = vunpack.c.h.b16 %v161
  %v1091 = vunpack.c.l.b16 %v162
  %v1092 = vunpack.c.h.b16 %v162
  %v1093 = vunpack.c.l.b16 %v163
  %v1094 = vunpack.c.h.b16 %v163
  %v1095 = vunpack.c.l.b16 %v164
  %v1096 = vunpack.c.h.b16 %v164
  %v1097 = vunpack.c.l.b16 %v165
  %v1098 = vunpack.c.h.b16 %v165
  %v1099 = vunpack.c.l.b16 %v166
  %v1100 = vunpack.c.h.b16 %v166
  %v1101 = vunpack.c.l.b16 %v167
  %v1102 = vunpack.c.h.b16 %v167
  %v1103 = vunpack.c.l.b16 %v168
  %v1104 = vunpack.c.h.b16 %v168
  %v1105 = vunpack.c.l.b16 %v169
  %v1106 = vunpack.c.h.b16 %v169
  %v1107 = vunpack.c.l.b16 %v170
  %v1108 = vunpack.c.h.b16 %v170
  %v1109 = vunpack.c.l.b16 %v171
  %v1110 = vunpack.c.h.b16 %v171
  %v1111 = vunpack.c.l.b16 %v172
  %v1112 = vunpack.c.h.b16 %v172
  %v1113 = vunpack.c.l.b16 %v173
  %v1114 = vunpack.c.h.b16 %v173
  %v1115 = vunpack.c.l.b16 %v174
  %v1116 = vunpack.c.h.b16 %v174
  %v1117 = vunpack.c.l.b16 %v175
  %v1118 = vunpack.c.h.b16 %v175
  %v1119 = vunpack.c.l.b16 %v176
  %v1120 = vunpack.c.h.b16 %v176
  %v1121 = vunpack.c.l.b16 %v177
  %v1122 = vunpack.c.h.b16 %v177
  %v1123 = vunpack.c.l.b16 %v178
  %v1124 = vunpack.c.h.b16 %v178
  %v1125 = vunpack.c.l.b16 %v179
  %v1126 = vunpack.c.h.b16 %v179
  %v1127 = vunpack.c.l.b16 %v180
  %v1128 = vunpack.c.h.b16 %v180
  %v1129 = vunpack.c.l.b16 %v181
  %v1130 = vunpack.c.h.b16 %v181
  %v1131 = vunpack.c.l.b16 %v182
  %v1132 = vunpack.c.h.b16 %v182
  %v1133 = vunpack.c.l.b16 %v183
  %v1134 = vunpack.c.h.b16 %v183
  %v1135 = vunpack.c.l.b16 %v184
  %v1136 = vunpack.c.h.b16 %v184
  %v1137 = vunpack.c.l.b16 %v185
  %v1138 = vunpack.c.h.b16 %v185
  %v1139 = vunpack.c.l.b16 %v186
  %v1140 = vunpack.c.h.b16 %v186
  %v1141 = vunpack.c.l.b16 %v187
  %v1142 = vunpack.c.h.b16 %v187
  %v1143 = vunpack.c.l.b16 %v188
  %v1144 = vunpack.c.h.b16 %v188
  %v1145 = vunpack.c.l.b16 %v189
  %v1146 = vunpack.c.h.b16 %v189
  %v1147 = vunpack.c.l.b16 %v190
  %v1148 = vunpack.c.h.b16 %v190
  %v1149 = vunpack.c.l.b16 %v191
  %v1150 = vunpack.c.h.b16 %v191
  %v1151 = vunpack.c.l.b16 %v192
  %v1152 = vunpack.c.h.b16 %v192
  %v1153 = vunpack.c.l.b16 %v193
  %v1154 = vunpack.c.h.b16 %v193
  %v1155 = vunpack.c.l.b16 %v194
  %v1156 = vunpack.c.h.b16 %v194
  %v1157 = vunpack.c.l.b16 %v195
  %v1158 = vunpack.c.h.b16 %v195
  %v1159 = vunpack.c.l.b16 %v196
  %v1160 = vunpack.c.h.b16 %v196
  %v1161 = vunpack.c.l.b16 %v197
  %v1162 = vunpack.c.h.b16 %v197
  %v1163 = vunpack.c.l.b16 %v198
  %v1164 = vunpack.c.h.b16 %v198
  %v1165 = vunpack.c.l.b16 %v199
  %v1166 = vunpack.c.h.b16 %v199
  %v1167 = vunpack.c.l.b16 %v200
  %v1168 = vunpack.c.h.b16 %v200
  %v1169 = vunpack.c.l.b16 %v201
  %v1170 = vunpack.c.h.b16 %v201
  %v1171 = vunpack.c.l.b16 %v202
  %v1172 = vunpack.c.h.b16 %v202
  %v1173 = vunpack.c.l.b16 %v203
  %v1174 = vunpack.c.h.b16 %v203
  %v1175 = vunpack.c.l.b16 %v204
  %v1176 = vunpack.c.h.b16 %v204
  %v1177 = vunpack.c.l.b16 %v205
  %v1178 = vunpack.c.h.b16 %v205
  %v1179 = vunpack.c.l.b16 %v206
  %v1180 = vunpack.c.h.b16 %v206
  %v1181 = vunpack.c.l.b16 %v207
  %v1182 = vunpack.c.h.b16 %v207
  %v1183 = vunpack.c.l.b16 %v208
  %v1184 = vunpack.c.h.b16 %v208
  %v1185 = vunpack.c.l.b16 %v209
  %v1186 = vunpack.c.h.b16 %v209
  %v1187 = vunpack.c.l.b16 %v210
  %v1188 = vunpack.c.h.b16 %v210
  %v1189 = vunpack.c.l.b16 %v211
  %v1190 = vunpack.c.h.b16 %v211
  %v1191 = vunpack.c.l.b16 %v212
  %v1192 = vunpack.c.h.b16 %v212
  %v1193 = vunpack.c.l.b16 %v213
  %v1194 = vunpack.c.h.b16 %v213
  %v1195 = vunpack.c.l.b16 %v214
  %v1196 = vunpack.c.h.b16 %v214
  %v1197 = vunpack.c.l.b16 %v215
  %v1198 = vunpack.c.h.b16 %v215
  %v1199 = vunpack.c.l.b16 %v216
  %v1200 = vunpack.c.h.b16 %v216
  %v1201 = vunpack.c.l.b16 %v217
  %v1202 = vunpack.c.h.b16 %v217
  %v1203 = vunpack.c.l.b16 %v218
  %v1204 = vunpack.c.h.b16 %v218
  %v1205 = vunpack.c.l.b16 %v219
  %v1206 = vunpack.c.h.b16 %v219
  %v1207 = vunpack.c.l.b16 %v220
  %v1208 = vunpack.c.h.b16 %v220
  %v1209 = vunpack.c.l.b16 %v221
  %v1210 = vunpack.c.h.b16 %v221
  %v1211 = vunpack.c.l.b16 %v222
  %v1212 = vunpack.c.h.b16 %v222
  %v1213 = vunpack.c.l.b16 %v223
  %v1214 = vunpack.c.h.b16 %v223
  %v1215 = vunpack.c.l.b16 %v224
  %v1216 = vunpack.c.h.b16 %v224
  %v1217 = vunpack.c.l.b16 %v225
  %v1218 = vunpack.c.h.b16 %v225
  %v1219 = vunpack.c.l.b16 %v226
  %v1220 = vunpack.c.h.b16 %v226
  %v1221 = vunpack.c.l.b16 %v227
  %v1222 = vunpack.c.h.b16 %v227
  %v1223 = vunpack.c.l.b16 %v228
  %v1224 = vunpack.c.h.b16 %v228
  %v1225 = vunpack.c.l.b16 %v229
  %v1226 = vunpack.c.h.b16 %v229
  %v1227 = vunpack.c.l.b16 %v230
  %v1228 = vunpack.c.h.b16 %v230
  %v1229 = vunpack.c.l.b16 %v231
  %v1230 = vunpack.c.h.b16 %v231
  %v1231 = vunpack.c.l.b16 %v232
  %v1232 = vunpack.c.h.b16 %v232
  %v1233 = vunpack.c.l.b16 %v233
  %v1234 = vunpack.c.h.b16 %v233
  %v1235 = vunpack.c.l.b16 %v234
  %v1236 = vunpack.c.h.b16 %v234
  %v1237 = vunpack.c.l.b16 %v235
  %v1238 = vunpack.c.h.b16 %v235
  %v1239 = vunpack.c.l.b16 %v236
  %v1240 = vunpack.c.h.b16 %v236
  %v1241 = vunpack.c.l.b16 %v237
  %v1242 = vunpack.c.h.b16 %v237
  %v1243 = vunpack.c.l.b16 %v238
  %v1244 = vunpack.c.h.b16 %v238
  %v1245 = vunpack.c.l.b16 %v239
  %v1246 = vunpack.c.h.b16 %v239
  %v1247 = vunpack.c.l.b16 %v240
  %v1248 = vunpack.c.h.b16 %v240
  %v1249 = vunpack.c.l.b16 %v241
  %v1250 = vunpack.c.h.b16 %v241
  %v1251 = vunpack.c.l.b16 %v242
  %v1252 = vunpack.c.h.b16 %v242
  %v1253 = vunpack.c.l.b16 %v243
  %v1254 = vunpack.c.h.b16 %v243
  %v1255 = vunpack.c.l.b16 %v244
  %v1256 = vunpack.c.h.b16 %v244
  %v1257 = vunpack.c.l.b16 %v245
  %v1258 = vunpack.c.h.b16 %v245
  %v1259 = vunpack.c.l.b16 %v246
  %v1260 = vunpack.c.h.b16 %v246
  %v1261 = vunpack.c.l.b16 %v247
  %v1262 = vunpack.c.h.b16 %v247
  %v1263 = vunpack.c.l.b16 %v248
  %v1264 = vunpack.c.h.b16 %v248
  %v1265 = vunpack.c.l.b16 %v249
  %v1266 = vunpack.c.h.b16 %v249
  %v1267 = vunpack.c.l.b16 %v250
  %v1268 = vunpack.c.h.b16 %v250
  %v1269 = vunpack.c.l.b16 %v251
  %v1270 = vunpack.c.h.b16 %v251
  %v1271 = vunpack.c.l.b16 %v252
  %v1272 = vunpack.c.h.b16 %v252
  %v1273 = vunpack.c.l.b16 %v253
  %v1274 = vunpack.c.h.b16 %v253
  %v1275 = vunpack.c.l.b16 %v254
  %v1276 = vunpack.c.h.b16 %v254
  %v1277 = vunpack.c.l.b16 %v255
  %v1278 = vunpack.c.h.b16 %v255
  %v1279 = vunpack.c.l.b16 %v256
  %v1280 = vunpack.c.h.b16 %v256
  %v1281 = vunpack.c.l.b16 %v257
  %v1282 = vunpack.c.h.b16 %v257
  %v1283 = vunpack.c.l.b16 %v258
  %v1284 = vunpack.c.h.b16 %v258
  %v1285 = vunpack.c.l.b16 %v259
  %v1286 = vunpack.c.h.b16 %v259
  %v1287 = vunpack.c.l.b16 %v260
  %v1288 = vunpack.c.h.b16 %v260
  %v1289 = vunpack.c.l.b16 %v261
  %v1290 = vunpack.c.h.b16 %v261
  %v1291 = vunpack.c.l.b16 %v262
  %v1292 = vunpack.c.h.b16 %v262
  %v1293 = vunpack.c.l.b16 %v263
  %v1294 = vunpack.c.h.b16 %v263
  %v1295 = vunpack.c.l.b16 %v264
  %v1296 = vunpack.c.h.b16 %v264
  %v1297 = vunpack.c.l.b16 %v265
  %v1298 = vunpack.c.h.b16 %v265
  %v1299 = vunpack.c.l.b16 %v266
  %v1300 = vunpack.c.h.b16 %v266
  %v1301 = vunpack.c.l.b16 %v267
  %v1302 = vunpack.c.h.b16 %v267
  %v1303 = vunpack.c.l.b16 %v268
  %v1304 = vunpack.c.h.b16 %v268
  %v1305 = vunpack.c.l.b16 %v269
  %v1306 = vunpack.c.h.b16 %v269
  %v1307 = vunpack.c.l.b16 %v270
  %v1308 = vunpack.c.h.b16 %v270
  %v1309 = vunpack.c.l.b16 %v271
  %v1310 = vunpack.c.h.b16 %v271
  %v1311 = vunpack.c.l.b16 %v272
  %v1312 = vunpack.c.h.b16 %v272
  %v1313 = vunpack.c.l.b16 %v273
  %v1314 = vunpack.c.h.b16 %v273
  %v1315 = vunpack.c.l.b16 %v274
  %v1316 = vunpack.c.h.b16 %v274
  %v1317 = vunpack.c.l.b16 %v275
  %v1318 = vunpack.c.h.b16 %v275
  %v1319 = vunpack.c.l.b16 %v276
  %v1320 = vunpack.c.h.b16 %v276
  %v1321 = vunpack.c.l.b16 %v277
  %v1322 = vunpack.c.h.b16 %v277
  %v1323 = vunpack.c.l.b16 %v278
  %v1324 = vunpack.c.h.b16 %v278
  %v1325 = vunpack.c.l.b16 %v279
  %v1326 = vunpack.c.h.b16 %v279
  %v1327 = vunpack.c.l.b16 %v280
  %v1328 = vunpack.c.h.b16 %v280
  %v1329 = vunpack.c.l.b16 %v281
  %v1330 = vunpack.c.h.b16 %v281
  %v1331 = vunpack.c.l.b16 %v282
  %v1332 = vunpack.c.h.b16 %v282
  %v1333 = vunpack.c.l.b16 %v283
  %v1334 = vunpack.c.h.b16 %v283
  %v1335 = vunpack.c.l.b16 %v284
  %v1336 = vunpack.c.h.b16 %v284
  %v1337 = vunpack.c.l.b16 %v285
  %v1338 = vunpack.c.h.b16 %v285
  %v1339 = vunpack.c.l.b16 %v286
  %v1340 = vunpack.c.h.b16 %v286
  %v1341 = vunpack.c.l.b16 %v287
  %v1342 = vunpack.c.h.b16 %v287
  %v1343 = vunpack.c.l.b16 %v288
  %v1344 = vunpack.c.h.b16 %v288
  %v1345 = vunpack.c.l.b16 %v289
  %v1346 = vunpack.c.h.b16 %v289
  %v1347 = vunpack.c.l.b16 %v290
  %v1348 = vunpack.c.h.b16 %v290
  %v1349 = vunpack.c.l.b16 %v291
  %v1350 = vunpack.c.h.b16 %v291
  %v1351 = vunpack.c.l.b16 %v292
  %v1352 = vunpack.c.h.b16 %v292
  %v1353 = vunpack.c.l.b16 %v293
  %v1354 = vunpack.c.h.b16 %v293
  %v1355 = vunpack.c.l.b16 %v294
  %v1356 = vunpack.c.h.b16 %v294
  %v1357 = vunpack.c.l.b16 %v295
  %v1358 = vunpack.c.h.b16 %v295
  %v1359 = vunpack.c.l.b16 %v296
  %v1360 = vunpack.c.h.b16 %v296
  %v1361 = vunpack.c.l.b16 %v297
  %v1362 = vunpack.c.h.b16 %v297
  %v1363 = vunpack.c.l.b16 %v298
  %v1364 = vunpack.c.h.b16 %v298
  %v1365 = vunpack.c.l.b16 %v299
  %v1366 = vunpack.c.h.b16 %v299
  %v1367 = vunpack.c.l.b16 %v300
  %v1368 = vunpack.c.h.b16 %v300
  %v1369 = vunpack.c.l.b16 %v301
  %v1370 = vunpack.c.h.b16 %v301
  %v1371 = vunpack.c.l.b16 %v302
  %v1372 = vunpack.c.h.b16 %v302
  %v1373 = vunpack.c.l.b16 %v303
  %v1374 = vunpack.c.h.b16 %v303
  %v1375 = vunpack.c.l.b16 %v304
  %v1376 = vunpack.c.h.b16 %v304
  %v1377 = vunpack.c.l.b16 %v305
  %v1378 = vunpack.c.h.b16 %v305
  %v1379 = vunpack.c.l.b16 %v306
  %v1380 = vunpack.c.h.b16 %v306
  %v1381 = vunpack.c.l.b16 %v307
  %v1382 = vunpack.c.h.b16 %v307
  %v1383 = vunpack.c.l.b16 %v308
  %v1384 = vunpack.c.h.b16 %v308
  %v1385 = vunpack.c.l.b16 %v309
  %v1386 = vunpack.c.h.b16 %v309
  %v1387 = vunpack.c.l.b16 %v310
  %v1388 = vunpack.c.h.b16 %v310
  %v1389 = vunpack.c.l.b16 %v311
  %v1390 = vunpack.c.h.b16 %v311
  %v1391 = vunpack.c.l.b16 %v312
  %v1392 = vunpack.c.h.b16 %v312
  %v1393 = vunpack.c.l.b16 %v313
  %v1394 = vunpack.c.h.b16 %v313
  %v1395 = vunpack.c.l.b16 %v314
  %v1396 = vunpack.c.h.b16 %v314
  %v1397 = vunpack.c.l.b16 %v315
  %v1398 = vunpack.c.h.b16 %v315
  %v1399 = vunpack.c.l.b16 %v316
  %v1400 = vunpack.c.h.b16 %v316
  %v1401 = vunpack.c.l.b16 %v317
  %v1402 = vunpack.c.h.b16 %v317
  %v1403 = vunpack.c.l.b16 %v318
  %v1404 = vunpack.c.h.b16 %v318
  %v1405 = vunpack.c.l.b16 %v319
  %v1406 = vunpack.c.h.b16 %v319
  %v1407 = vunpack.c.l.b16 %v320
  %v1408 = vunpack.c.h.b16 %v320
  %v1409 = vunpack.c.l.b16 %v321
  %v1410 = vunpack.c.h.b16 %v321
  %v1411 = vunpack.c.l.b16 %v322
  %v1412 = vunpack.c.h.b16 %v322
  %v1413 = vunpack.c.l.b16 %v323
  %v1414 = vunpack.c.h.b16 %v323
  %v1415 = vunpack.c.l.b16 %v324
  %v1416 = vunpack.c.h.b16 %v324
  %v1417 = vunpack.c.l.b16 %v325
  %v1418 = vunpack.c.h.b16 %v325
  %v1419 = vunpack.c.l.b16 %v326
  %v1420 = vunpack.c.h.b16 %v326
  %v1421 = vunpack.c.l.b16 %v327
  %v1422 = vunpack.c.h.b16 %v327
  %v1423 = vunpack.c.l.b16 %v328
  %v1424 = vunpack.c.h.b16 %v328
  %v1425 = vunpack.c.l.b16 %v329
  %v1426 = vunpack.c.h.b16 %v329
  %v1427 = vunpack.c.l.b16 %v330
  %v1428 = vunpack.c.h.b16 %v330
  %v1429 = vunpack.c.l.b16 %v331
  %v1430 = vunpack.c.h.b16 %v331
  %v1431 = vunpack.c.l.b16 %v332
  %v1432 = vunpack.c.h.b16 %v332
  %v1433 = vunpack.c.l.b16 %v333
  %v1434 = vunpack.c.h.b16 %v333
  %v1435 = vunpack.c.l.b16 %v334
  %v1436 = vunpack.c.h.b16 %v334
  %v1437 = vunpack.c.l.b16 %v335
  %v1438 = vunpack.c.h.b16 %v335
  %v1439 = vunpack.c.l.b16 %v336
  %v1440 = vunpack.c.h.b16 %v336
  %v1441 = vunpack.c.l.b16 %v337
  %v1442 = vunpack.c.h.b16 %v337
  %v1443 = vunpack.c.l.b16 %v338
  %v1444 = vunpack.c.h.b16 %v338
  %v1445 = vunpack.c.l.b16 %v339
  %v1446 = vunpack.c.h.b16 %v339
  %v1447 = vunpack.c.l.b16 %v340
  %v1448 = vunpack.c.h.b16 %v340
  %v1449 = vunpack.c.l.b16 %v341
  %v1450 = vunpack.c.h.b16 %v341
  %v1451 = vunpack.c.l.b16 %v342
  %v1452 = vunpack.c.h.b16 %v342
  %v1453 = vunpack.c.l.b16 %v343
  %v1454 = vunpack.c.h.b16 %v343
  %v1455 = vunpack.c.l.b16 %v344
  %v1456 = vunpack.c.h.b16 %v344
  %v1457 = vunpack.c.l.b16 %v345
  %v1458 = vunpack.c.h.b16 %v345
  %v1459 = vunpack.c.l.b16 %v346
  %v1460 = vunpack.c.h.b16 %v346
  %v1461 = vunpack.c.l.b16 %v347
  %v1462 = vunpack.c.h.b16 %v347
  %v1463 = vunpack.c.l.b16 %v348
  %v1464 = vunpack.c.h.b16 %v348
  %v1465 = vunpack.c.l.b16 %v349
  %v1466 = vunpack.c.h.b16 %v349
  %v1467 = vunpack.c.l.b16 %v350
  %v1468 = vunpack.c.h.b16 %v350
  %v1469 = vunpack.c.l.b16 %v351
  %v1470 = vunpack.c.h.b16 %v351
  %v1471 = vunpack.c.l.b16 %v352
  %v1472 = vunpack.c.h.b16 %v352
  %v1473 = vunpack.c.l.b16 %v353
  %v1474 = vunpack.c.h.b16 %v353
  %v1475 = vunpack.c.l.b16 %v354
  %v1476 = vunpack.c.h.b16 %v354
  %v1477 = vunpack.c.l.b16 %v355
  %v1478 = vunpack.c.h.b16 %v355
  %v1479 = vunpack.c.l.b16 %v356
  %v1480 = vunpack.c.h.b16 %v356
  %v1481 = vunpack.c.l.b16 %v357
  %v1482 = vunpack.c.h.b16 %v357
  %v1483 = vunpack.c.l.b16 %v358
  %v1484 = vunpack.c.h.b16 %v358
  %v1485 = vunpack.c.l.b16 %v359
  %v1486 = vunpack.c.h.b16 %v359
  %v1487 = vunpack.c.l.b16 %v360
  %v1488 = vunpack.c.h.b16 %v360
  %v1489 = vunpack.c.l.b16 %v361
  %v1490 = vunpack.c.h.b16 %v361
  %v1491 = vunpack.c.l.b16 %v362
  %v1492 = vunpack.c.h.b16 %v362
  %v1493 = vunpack.c.l.b16 %v363
  %v1494 = vunpack.c.h.b16 %v363
  %v1495 = vunpack.c.l.b16 %v364
  %v1496 = vunpack.c.h.b16 %v364
  %v1497 = vunpack.c.l.b16 %v365
  %v1498 = vunpack.c.h.b16 %v365
  %v1499 = vunpack.c.l.b16 %v366
  %v1500 = vunpack.c.h.b16 %v366
  %v1501 = vunpack.c.l.b16 %v367
  %v1502 = vunpack.c.h.b16 %v367
  %v1503 = vunpack.c.l.b16 %v368
  %v1504 = vunpack.c.h.b16 %v368
  %v1505 = vunpack.c.l.b16 %v369
  %v1506 = vunpack.c.h.b16 %v369
  %v1507 = vunpack.c.l.b16 %v370
  %v1508 = vunpack.c.h.b16 %v370
  %v1509 = vunpack.c.l.b16 %v371
  %v1510 = vunpack.c.h.b16 %v371
  %v1511 = vunpack.c.l.b16 %v372
  %v1512 = vunpack.c.h.b16 %v372
  %v1513 = vunpack.c.l.b16 %v373
  %v1514 = vunpack.c.h.b16 %v373
  %v1515 = vunpack.c.l.b16 %v374
  %v1516 = vunpack.c.h.b16 %v374
  %v1517 = vunpack.c.l.b16 %v375
  %v1518 = vunpack.c.h.b16 %v375
  %v1519 = vunpack.c.l.b16 %v376
  %v1520 = vunpack.c.h.b16 %v376
  %v1521 = vunpack.c.l.b16 %v377
  %v1522 = vunpack.c.h.b16 %v377
  %v1523 = vunpack.c.l.b16 %v378
  %v1524 = vunpack.c.h.b16 %v378
  %v1525 = vunpack.c.l.b16 %v379
  %v1526 = vunpack.c.h.b16 %v379
  %v1527 = vunpack.c.l.b16 %v380
  %v1528 = vunpack.c.h.b16 %v380
  %v1529 = vunpack.c.l.b16 %v381
  %v1530 = vunpack.c.h.b16 %v381
  %v1531 = vunpack.c.l.b16 %v382
  %v1532 = vunpack.c.h.b16 %v382
  %v1533 = vunpack.c.l.b16 %v383
  %v1534 = vunpack.c.h.b16 %v383
  %v1535 = vunpack.c.l.b16 %v384
  %v1536 = vunpack.c.h.b16 %v384
  %v1537 = vunpack.c.l.b16 %v385
  %v1538 = vunpack.c.h.b16 %v385
  %v1539 = vunpack.c.l.b16 %v386
  %v1540 = vunpack.c.h.b16 %v386
  %v1541 = vunpack.c.l.b16 %v387
  %v1542 = vunpack.c.h.b16 %v387
  %v1543 = vunpack.c.l.b16 %v388
  %v1544 = vunpack.c.h.b16 %v388
  %v1545 = vunpack.c.l.b16 %v389
  %v1546 = vunpack.c.h.b16 %v389
  %v1547 = vunpack.c.l.b16 %v390
  %v1548 = vunpack.c.h.b16 %v390
  %v1549 = vunpack.c.l.b16 %v391
  %v1550 = vunpack.c.h.b16 %v391
  %v1551 = vunpack.c.l.b16 %v392
  %v1552 = vunpack.c.h.b16 %v392
  %v1553 = vunpack.c.l.b16 %v393
  %v1554 = vunpack.c.h.b16 %v393
  %v1555 = vunpack.c.l.b16 %v394
  %v1556 = vunpack.c.h.b16 %v394
  %v1557 = vunpack.c.l.b16 %v395
  %v1558 = vunpack.c.h.b16 %v395
  %v1559 = vunpack.c.l.b16 %v396
  %v1560 = vunpack.c.h.b16 %v396
  %v1561 = vunpack.c.l.b16 %v397
  %v1562 = vunpack.c.h.b16 %v397
  %v1563 = vunpack.c.l.b16 %v398
  %v1564 = vunpack.c.h.b16 %v398
  %v1565 = vunpack.c.l.b16 %v399
  %v1566 = vunpack.c.h.b16 %v399
  %v1567 = vunpack.c.l.b16 %v400
  %v1568 = vunpack.c.h.b16 %v400
  %v1569 = vunpack.c.l.b16 %v401
  %v1570 = vunpack.c.h.b16 %v401
  %v1571 = vunpack.c.l.b16 %v402
  %v1572 = vunpack.c.h.b16 %v402
  %v1573 = vunpack.c.l.b16 %v403
  %v1574 = vunpack.c.h.b16 %v403
  %v1575 = vunpack.c.l.b16 %v404
  %v1576 = vunpack.c.h.b16 %v404
  %v1577 = vunpack.c.l.b16 %v405
  %v1578 = vunpack.c.h.b16 %v405
  %v1579 = vpack.c.b16 %v819, %v811
  %v1580 = vpack.c.b16 %v820, %v812
  %v1581 = vpack.c.b16 %v821, %v813
  %v1582 = vpack.c.b16 %v822, %v814
  %v1583 = vpack.c.b16 %v823, %v815
  %v1584 = vpack.c.b16 %v824, %v816
  %v1585 = vpack.c.b16 %v825, %v817
  %v1586 = vpack.c.b16 %v826, %v818
  %v1587 = vpack.c.b16 %v835, %v827
  %v1588 = vpack.c.b16 %v836, %v828
  %v1589 = vpack.c.b16 %v837, %v829
  %v1590 = vpack.c.b16 %v838, %v830
  %v1591 = vpack.c.b16 %v839, %v831
  %v1592 = vpack.c.b16 %v840, %v832
  %v1593 = vpack.c.b16 %v841, %v833
  %v1594 = vpack.c.b16 %v842, %v834
  %v1595 = vpack.c.b16 %v851, %v843
  %v1596 = vpack.c.b16 %v852, %v844
  %v1597 = vpack.c.b16 %v853, %v845
  %v1598 = vpack.c.b16 %v854, %v846
  %v1599 = vpack.c.b16 %v855, %v847
  %v1600 = vpack.c.b16 %v856, %v848
  %v1601 = vpack.c.b16 %v857, %v849
  %v1602 = vpack.c.b16 %v858, %v850
  %v1603 = vpack.c.b16 %v867, %v859
  %v1604 = vpack.c.b16 %v868, %v860
  %v1605 = vpack.c.b16 %v869, %v861
  %v1606 = vpack.c.b16 %v870, %v862
  %v1607 = vpack.c.b16 %v871, %v863
  %v1608 = vpack.c.b16 %v872, %v864
  %v1609 = vpack.c.b16 %v873, %v865
  %v1610 = vpack.c.b16 %v874, %v866
  %v1611 = vpack.c.b16 %v883, %v875
  %v1612 = vpack.c.b16 %v884, %v876
  %v1613 = vpack.c.b16 %v885, %v877
  %v1614 = vpack.c.b16 %v886, %v878
  %v1615 = vpack.c.b16 %v887, %v879
  %v1616 = vpack.c.b16 %v888, %v880
  %v1617 = vpack.c.b16 %v889, %v881
  %v1618 = vpack.c.b16 %v890, %v882
  %v1619 = vpack.c.b16 %v899, %v891
  %v1620 = vpack.c.b16 %v900, %v892
  %v1621 = vpack.c.b16 %v901, %v893
  %v1622 = vpack.c.b16 %v902, %v894
  %v1623 = vpack.c.b16 %v903, %v895
  %v1624 = vpack.c.b16 %v904, %v896
  %v1625 = vpack.c.b16 %v905, %v897
  %v1626 = vpack.c.b16 %v906, %v898
  %v1627 = vpack.c.b16 %v915, %v907
  %v1628 = vpack.c.b16 %v916, %v908
  %v1629 = vpack.c.b16 %v917, %v909
  %v1630 = vpack.c.b16 %v918, %v910
  %v1631 = vpack.c.b16 %v919, %v911
  %v1632 = vpack.c.b16 %v920, %v912
  %v1633 = vpack.c.b16 %v921, %v913
  %v1634 = vpack.c.b16 %v922, %v914
  %v1635 = vpack.c.b16 %v931, %v923
  %v1636 = vpack.c.b16 %v932, %v924
  %v1637 = vpack.c.b16 %v933, %v925
  %v1638 = vpack.c.b16 %v934, %v926
  %v1639 = vpack.c.b16 %v935, %v927
  %v1640 = vpack.c.b16 %v936, %v928
  %v1641 = vpack.c.b16 %v937, %v929
  %v1642 = vpack.c.b16 %v938, %v930
  %v1643 = vpack.c.b16 %v947, %v939
  %v1644 = vpack.c.b16 %v948, %v940
  %v1645 = vpack.c.b16 %v949, %v941
  %v1646 = vpack.c.b16 %v950, %v942
  %v1647 = vpack.c.b16 %v951, %v943
  %v1648 = vpack.c.b16 %v952, %v944
  %v1649 = vpack.c.b16 %v953, %v945
  %v1650 = vpack.c.b16 %v954, %v946
  %v1651 = vpack.c.b16 %v963, %v955
  %v1652 = vpack.c.b16 %v964, %v956
  %v1653 = vpack.c.b16 %v965, %v957
  %v1654 = vpack.c.b16 %v966, %v958
  %v1655 = vpack.c.b16 %v967, %v959
  %v1656 = vpack.c.b16 %v968, %v960
  %v1657 = vpack.c.b16 %v969, %v961
  %v1658 = vpack.c.b16 %v970, %v962
  %v1659 = vpack.c.b16 %v979, %v971
  %v1660 = vpack.c.b16 %v980, %v972
  %v1661 = vpack.c.b16 %v981, %v973
  %v1662 = vpack.c.b16 %v982, %v974
  %v1663 = vpack.c.b16 %v983, %v975
  %v1664 = vpack.c.b16 %v984, %v976
  %v1665 = vpack.c.b16 %v985, %v977
  %v1666 = vpack.c.b16 %v986, %v978
  %v1667 = vpack.c.b16 %v995, %v987
  %v1668 = vpack.c.b16 %v996, %v988
  %v1669 = vpack.c.b16 %v997, %v989
  %v1670 = vpack.c.b16 %v998, %v990
  %v1671 = vpack.c.b16 %v999, %v991
  %v1672 = vpack.c.b16 %v1000, %v992
  %v1673 = vpack.c.b16 %v1001, %v993
  %v1674 = vpack.c.b16 %v1002, %v994
  %v1675 = vpack.c.b16 %v1011, %v1003
  %v1676 = vpack.c.b16 %v1012, %v1004
  %v1677 = vpack.c.b16 %v1013, %v1005
  %v1678 = vpack.c.b16 %v1014, %v1006
  %v1679 = vpack.c.b16 %v1015, %v1007
  %v1680 = vpack.c.b16 %v1016, %v1008
  %v1681 = vpack.c.b16 %v1017, %v1009
  %v1682 = vpack.c.b16 %v1018, %v1010
  %v1683 = vpack.c.b16 %v1027, %v1019
  %v1684 = vpack.c.b16 %v1028, %v1020
  %v1685 = vpack.c.b16 %v1029, %v1021
  %v1686 = vpack.c.b16 %v1030, %v1022
  %v1687 = vpack.c.b16 %v1031, %v1023
  %v1688 = vpack.c.b16 %v1032, %v1024
  %v1689 = vpack.c.b16 %v1033, %v1025
  %v1690 = vpack.c.b16 %v1034, %v1026
  %v1691 = vpack.c.b16 %v1043, %v1035
  %v1692 = vpack.c.b16 %v1044, %v1036
  %v1693 = vpack.c.b16 %v1045, %v1037
  %v1694 = vpack.c.b16 %v1046, %v1038
  %v1695 = vpack.c.b16 %v1047, %v1039
  %v1696 = vpack.c.b16 %v1048, %v1040
  %v1697 = vpack.c.b16 %v1049, %v1041
  %v1698 = vpack.c.b16 %v1050, %v1042
  %v1699 = vpack.c.b16 %v1059, %v1051
  %v1700 = vpack.c.b16 %v1060, %v1052
  %v1701 = vpack.c.b16 %v1061, %v1053
  %v1702 = vpack.c.b16 %v1062, %v1054
  %v1703 = vpack.c.b16 %v1063, %v1055
  %v1704 = vpack.c.b16 %v1064, %v1056
  %v1705 = vpack.c.b16 %v1065, %v1057
  %v1706 = vpack.c.b16 %v1066, %v1058
  %v1707 = vpack.c.b16 %v1075, %v1067
  %v1708 = vpack.c.b16 %v1076, %v1068
  %v1709 = vpack.c.b16 %v1077, %v1069
  %v1710 = vpack.c.b16 %v1078, %v1070
  %v1711 = vpack.c.b16 %v1079, %v1071
  %v1712 = vpack.c.b16 %v1080, %v1072
  %v1713 = vpack.c.b16 %v1081, %v1073
  %v1714 = vpack.c.b16 %v1082, %v1074
  %v1715 = vpack.c.b16 %v1091, %v1083
  %v1716 = vpack.c.b16 %v1092, %v1084
  %v1717 = vpack.c.b16 %v1093, %v1085
  %v1718 = vpack.c.b16 %v1094, %v1086
  %v1719 = vpack.c.b16 %v1095, %v1087
  %v1720 = vpack.c.b16 %v1096, %v1088
  %v1721 = vpack.c.b16 %v1097, %v1089
  %v1722 = vpack.c.b16 %v1098, %v1090
  %v1723 = vpack.c.b16 %v1107, %v1099
  %v1724 = vpack.c.b16 %v1108, %v1100
  %v1725 = vpack.c.b16 %v1109, %v1101
  %v1726 = vpack.c.b16 %v1110, %v1102
  %v1727 = vpack.c.b16 %v1111, %v1103
  %v1728 = vpack.c.b16 %v1112, %v1104
  %v1729 = vpack.c.b16 %v1113, %v1105
  %v1730 = vpack.c.b16 %v1114, %v1106
  %v1731 = vpack.c.b16 %v1123, %v1115
  %v1732 = vpack.c.b16 %v1124, %v1116
  %v1733 = vpack.c.b16 %v1125, %v1117
  %v1734 = vpack.c.b16 %v1126, %v1118
  %v1735 = vpack.c.b16 %v1127, %v1119
  %v1736 = vpack.c.b16 %v1128, %v1120
  %v1737 = vpack.c.b16 %v1129, %v1121
  %v1738 = vpack.c.b16 %v1130, %v1122
  %v1739 = vpack.c.b16 %v1139, %v1131
  %v1740 = vpack.c.b16 %v1140, %v1132
  %v1741 = vpack.c.b16 %v1141, %v1133
  %v1742 = vpack.c.b16 %v1142, %v1134
  %v1743 = vpack.c.b16 %v1143, %v1135
  %v1744 = vpack.c.b16 %v1144, %v1136
  %v1745 = vpack.c.b16 %v1145, %v1137
  %v1746 = vpack.c.b16 %v1146, %v1138
  %v1747 = vpack.c.b16 %v1155, %v1147
  %v1748 = vpack.c.b16 %v1156, %v1148
  %v1749 = vpack.c.b16 %v1157, %v1149
  %v1750 = vpack.c.b16 %v1158, %v1150
  %v1751 = vpack.c.b16 %v1159, %v1151
  %v1752 = vpack.c.b16 %v1160, %v1152
  %v1753 = vpack.c.b16 %v1161, %v1153
  %v1754 = vpack.c.b16 %v1162, %v1154
  %v1755 = vpack.c.b16 %v1171, %v1163
  %v1756 = vpack.c.b16 %v1172, %v1164
  %v1757 = vpack.c.b16 %v1173, %v1165
  %v1758 = vpack.c.b16 %v1174, %v1166
  %v1759 = vpack.c.b16 %v1175, %v1167
  %v1760 = vpack.c.b16 %v1176, %v1168
  %v1761 = vpack.c.b16 %v1177, %v1169
  %v1762 = vpack.c.b16 %v1178, %v1170
  %v1763 = vpack.c.b16 %v1187, %v1179
  %v1764 = vpack.c.b16 %v1188, %v1180
  %v1765 = vpack.c.b16 %v1189, %v1181
  %v1766 = vpack.c.b16 %v1190, %v1182
  %v1767 = vpack.c.b16 %v1191, %v1183
  %v1768 = vpack.c.b16 %v1192, %v1184
  %v1769 = vpack.c.b16 %v1193, %v1185
  %v1770 = vpack.c.b16 %v1194, %v1186
  %v1771 = vpack.c.b16 %v1203, %v1195
  %v1772 = vpack.c.b16 %v1204, %v1196
  %v1773 = vpack.c.b16 %v1205, %v1197
  %v1774 = vpack.c.b16 %v1206, %v1198
  %v1775 = vpack.c.b16 %v1207, %v1199
  %v1776 = vpack.c.b16 %v1208, %v1200
  %v1777 = vpack.c.b16 %v1209, %v1201
  %v1778 = vpack.c.b16 %v1210, %v1202
  %v1779 = vpack.c.b16 %v1219, %v1211
  %v1780 = vpack.c.b16 %v1220, %v1212
  %v1781 = vpack.c.b16 %v1221, %v1213
  %v1782 = vpack.c.b16 %v1222, %v1214
  %v1783 = vpack.c.b16 %v1223, %v1215
  %v1784 = vpack.c.b16 %v1224, %v1216
  %v1785 = vpack.c.b16 %v1225, %v1217
  %v1786 = vpack.c.b16 %v1226, %v1218
  %v1787 = vpack.c.b16 %v1235, %v1227
  %v1788 = vpack.c.b16 %v1236, %v1228
  %v1789 = vpack.c.b16 %v1237, %v1229
  %v1790 = vpack.c.b16 %v1238, %v1230
  %v1791 = vpack.c.b16 %v1239, %v1231
  %v1792 = vpack.c.b16 %v1240, %v1232
  %v1793 = vpack.c.b16 %v1241, %v1233
  %v1794 = vpack.c.b16 %v1242, %v1234
  %v1795 = vpack.c.b16 %v1251, %v1243
  %v1796 = vpack.c.b16 %v1252, %v1244
  %v1797 = vpack.c.b16 %v1253, %v1245
  %v1798 = vpack.c.b16 %v1254, %v1246
  %v1799 = vpack.c.b16 %v1255, %v1247
  %v1800 = vpack.c.b16 %v1256, %v1248
  %v1801 = vpack.c.b16 %v1257, %v1249
  %v1802 = vpack.c.b16 %v1258, %v1250
  %v1803 = vpack.c.b16 %v1267, %v1259
  %v1804 = vpack.c.b16 %v1268, %v1260
  %v1805 = vpack.c.b16 %v1269, %v1261
  %v1806 = vpack.c.b16 %v1270, %v1262
  %v1807 = vpack.c.b16 %v1271, %v1263
  %v1808 = vpack.c.b16 %v1272, %v1264
  %v1809 = vpack.c.b16 %v1273, %v1265
  %v1810 = vpack.c.b16 %v1274, %v1266
  %v1811 = vpack.c.b16 %v1283, %v1275
  %v1812 = vpack.c.b16 %v1284, %v1276
  %v1813 = vpack.c.b16 %v1285, %v1277
  %v1814 = vpack.c.b16 %v1286, %v1278
  %v1815 = vpack.c.b16 %v1287, %v1279
  %v1816 = vpack.c.b16 %v1288, %v1280
  %v1817 = vpack.c.b16 %v1289, %v1281
  %v1818 = vpack.c.b16 %v1290, %v1282
  %v1819 = vpack.c.b16 %v1299, %v1291
  %v1820 = vpack.c.b16 %v1300, %v1292
  %v1821 = vpack.c.b16 %v1301, %v1293
  %v1822 = vpack.c.b16 %v1302, %v1294
  %v1823 = vpack.c.b16 %v1303, %v1295
  %v1824 = vpack.c.b16 %v1304, %v1296
  %v1825 = vpack.c.b16 %v1305, %v1297
  %v1826 = vpack.c.b16 %v1306, %v1298
  %v1827 = vpack.c.b16 %v1315, %v1307
  %v1828 = vpack.c.b16 %v1316, %v1308
  %v1829 = vpack.c.b16 %v1317, %v1309
  %v1830 = vpack.c.b16 %v1318, %v1310
  %v1831 = vpack.c.b16 %v1319, %v1311
  %v1832 = vpack.c.b16 %v1320, %v1312
  %v1833 = vpack.c.b16 %v1321, %v1313
  %v1834 = vpack.c.b16 %v1322, %v1314
  %v1835 = vpack.c.b16 %v1331, %v1323
  %v1836 = vpack.c.b16 %v1332, %v1324
  %v1837 = vpack.c.b16 %v1333, %v1325
  %v1838 = vpack.c.b16 %v1334, %v1326
  %v1839 = vpack.c.b16 %v1335, %v1327
  %v1840 = vpack.c.b16 %v1336, %v1328
  %v1841 = vpack.c.b16 %v1337, %v1329
  %v1842 = vpack.c.b16 %v1338, %v1330
  %v1843 = vpack.c.b16 %v1347, %v1339
  %v1844 = vpack.c.b16 %v1348, %v1340
  %v1845 = vpack.c.b16 %v1349, %v1341
  %v1846 = vpack.c.b16 %v1350, %v1342
  %v1847 = vpack.c.b16 %v1351, %v1343
  %v1848 = vpack.c.b16 %v1352, %v1344
  %v1849 = vpack.c.b16 %v1353, %v1345
  %v1850 = vpack.c.b16 %v1354, %v1346
  %v1851 = vpack.c.b16 %v1363, %v1355
  %v1852 = vpack.c.b16 %v1364, %v1356
  %v1853 = vpack.c.b16 %v1365, %v1357
  %v1854 = vpack.c.b16 %v1366, %v1358
  %v1855 = vpack.c.b16 %v1367, %v1359
  %v1856 = vpack.c.b16 %v1368, %v1360
  %v1857 = vpack.c.b16 %v1369, %v1361
  %v1858 = vpack.c.b16 %v1370, %v1362
  %v1859 = vpack.c.b16 %v1379, %v1371
  %v1860 = vpack.c.b16 %v1380, %v1372
  %v1861 = vpack.c.b16 %v1381, %v1373
  %v1862 = vpack.c.b16 %v1382, %v1374
  %v1863 = vpack.c.b16 %v1383, %v1375
  %v1864 = vpack.c.b16 %v1384, %v1376
  %v1865 = vpack.c.b16 %v1385, %v1377
  %v1866 = vpack.c.b16 %v1386, %v1378
  %v1867 = vpack.c.b16 %v1395, %v1387
  %v1868 = vpack.c.b16 %v1396, %v1388
  %v1869 = vpack.c.b16 %v1397, %v1389
  %v1870 = vpack.c.b16 %v1398, %v1390
  %v1871 = vpack.c.b16 %v1399, %v1391
  %v1872 = vpack.c.b16 %v1400, %v1392
  %v1873 = vpack.c.b16 %v1401, %v1393
  %v1874 = vpack.c.b16 %v1402, %v1394
  %v1875 = vpack.c.b16 %v1411, %v1403
  %v1876 = vpack.c.b16 %v1412, %v1404
  %v1877 = vpack.c.b16 %v1413, %v1405
  %v1878 = vpack.c.b16 %v1414, %v1406
  %v1879 = vpack.c.b16 %v1415, %v1407
  %v1880 = vpack.c.b16 %v1416, %v1408
  %v1881 = vpack.c.b16 %v1417, %v1409
  %v1882 = vpack.c.b16 %v1418, %v1410
  %v1883 = vpack.c.b16 %v1427, %v1419
  %v1884 = vpack.c.b16 %v1428, %v1420
  %v1885 = vpack.c.b16 %v1429, %v1421
  %v1886 = vpack.c.b16 %v1430, %v1422
  %v1887 = vpack.c.b16 %v1431, %v1423
  %v1888 = vpack.c.b16 %v1432, %v1424
  %v1889 = vpack.c.b16 %v1433, %v1425
  %v1890 = vpack.c.b16 %v1434, %v1426
  %v1891 = vpack.c.b16 %v1443, %v1435
  %v1892 = vpack.c.b16 %v1444, %v1436
  %v1893 = vpack.c.b16 %v1445, %v1437
  %v1894 = vpack.c.b16 %v1446, %v1438
  %v1895 = vpack.c.b16 %v1447, %v1439
  %v1896 = vpack.c.b16 %v1448, %v1440
  %v1897 = vpack.c.b16 %v1449, %v1441
  %v1898 = vpack.c.b16 %v1450, %v1442
  %v1899 = vpack.c.b16 %v1459, %v1451
  %v1900 = vpack.c.b16 %v1460, %v1452
  %v1901 = vpack.c.b16 %v1461, %v1453
  %v1902 = vpack.c.b16 %v1462, %v1454
  %v1903 = vpack.c.b16 %v1463, %v1455
  %v1904 = vpack.c.b16 %v1464, %v1456
  %v1905 = vpack.c.b16 %v1465, %v1457
  %v1906 = vpack.c.b16 %v1466, %v1458
  %v1907 = vpack.c.b16 %v1475, %v1467
  %v1908 = vpack.c.b16 %v1476, %v1468
  %v1909 = vpack.c.b16 %v1477, %v1469
  %v1910 = vpack.c.b16 %v1478, %v1470
  %v1911 = vpack.c.b16 %v1479, %v1471
  %v1912 = vpack.c.b16 %v1480, %v1472
  %v1913 = vpack.c.b16 %v1481, %v1473
  %v1914 = vpack.c.b16 %v1482, %v1474
  %v1915 = vpack.c.b16 %v1491, %v1483
  %v1916 = vpack.c.b16 %v1492, %v1484
  %v1917 = vpack.c.b16 %v1493, %v1485
  %v1918 = vpack.c.b16 %v1494, %v1486
  %v1919 = vpack.c.b16 %v1495, %v1487
  %v1920 = vpack.c.b16 %v1496, %v1488
  %v1921 = vpack.c.b16 %v1497, %v1489
  %v1922 = vpack.c.b16 %v1498, %v1490
  %v1923 = vpack.c.b16 %v1507, %v1499
  %v1924 = vpack.c.b16 %v1508, %v1500
  %v1925 = vpack.c.b16 %v1509, %v1501
  %v1926 = vpack.c.b16 %v1510, %v1502
  %v1927 = vpack.c.b16 %v1511, %v1503
  %v1928 = vpack.c.b16 %v1512, %v1504
  %v1929 = vpack.c.b16 %v1513, %v1505
  %v1930 = vpack.c.b16 %v1514, %v1506
  %v1931 = vpack.c.b16 %v1523, %v1515
  %v1932 = vpack.c.b16 %v1524, %v1516
  %v1933 = vpack.c.b16 %v1525, %v1517
  %v1934 = vpack.c.b16 %v1526, %v1518
  %v1935 = vpack.c.b16 %v1527, %v1519
  %v1936 = vpack.c.b16 %v1528, %v1520
  %v1937 = vpack.c.b16 %v1529, %v1521
  %v1938 = vpack.c.b16 %v1530, %v1522
  %v1939 = vpack.c.b16 %v1539, %v1531
  %v1940 = vpack.c.b16 %v1540, %v1532
  %v1941 = vpack.c.b16 %v1541, %v1533
  %v1942 = vpack.c.b16 %v1542, %v1534
  %v1943 = vpack.c.b16 %v1543, %v1535
  %v1944 = vpack.c.b16 %v1544, %v1536
  %v1945 = vpack.c.b16 %v1545, %v1537
  %v1946 = vpack.c.b16 %v1546, %v1538
  %v1947 = vpack.c.b16 %v1555, %v1547
  %v1948 = vpack.c.b16 %v1556, %v1548
  %v1949 = vpack.c.b16 %v1557, %v1549
  %v1950 = vpack.c.b16 %v1558, %v1550
  %v1951 = vpack.c.b16 %v1559, %v1551
  %v1952 = vpack.c.b16 %v1560, %v1552
  %v1953 = vpack.c.b16 %v1561, %v1553
  %v1954 = vpack.c.b16 %v1562, %v1554
  %v1955 = vpack.c.b16 %v1571, %v1563
  %v1956 = vpack.c.b16 %v1572, %v1564
  %v1957 = vpack.c.b16 %v1573, %v1565
  %v1958 = vpack.c.b16 %v1574, %v1566
  %v1959 = vpack.c.b16 %v1575, %v1567
  %v1960 = vpack.c.b16 %v1576, %v1568
  %v1961 = vpack.c.b16 %v1577, %v1569
  %v1962 = vpack.c.b16 %v1578, %v1570
  %2347 = vmatprep.subr.bf16.mxu0 %v1636
  %2348 = vmatpush1.bf16.msra.mxu0 %v1635
  %2349 = vmatprep.subr.bf16.mxu0 %v1628
  %2350 = vmatpush1.bf16.msra.mxu0 %v1627
  %2351 = vmatprep.subr.bf16.mxu0 %v1620
  %2352 = vmatpush1.bf16.msra.mxu0 %v1619
  %2353 = vmatprep.subr.bf16.mxu0 %v1612
  %2354 = vmatpush1.bf16.msra.mxu0 %v1611
  %2355 = vmatprep.subr.bf16.mxu0 %v1604
  %2356 = vmatpush1.bf16.msra.mxu0 %v1603
  %2357 = vmatprep.subr.bf16.mxu0 %v1596
  %2358 = vmatpush1.bf16.msra.mxu0 %v1595
  %2359 = vmatprep.subr.bf16.mxu0 %v1588
  %2360 = vmatpush1.bf16.msra.mxu0 %v1587
  %2361 = vmatprep.subr.bf16.mxu0 %v1580
  %2362 = vmatpush1.bf16.msra.mxu0 %v1579
  %2363 = vmatprep.subr.bf16.mxu0 %v1700
  %2364 = vmatpush2.bf16.msra.mxu0 %v1699
  %2365 = vmatprep.subr.bf16.mxu0 %v1692
  %2366 = vmatpush2.bf16.msra.mxu0 %v1691
  %2367 = vmatprep.subr.bf16.mxu0 %v1684
  %2368 = vmatpush2.bf16.msra.mxu0 %v1683
  %2369 = vmatprep.subr.bf16.mxu0 %v1676
  %2370 = vmatpush2.bf16.msra.mxu0 %v1675
  %2371 = vmatprep.subr.bf16.mxu0 %v1668
  %2372 = vmatpush2.bf16.msra.mxu0 %v1667
  %2373 = vmatprep.subr.bf16.mxu0 %v1660
  %2374 = vmatpush2.bf16.msra.mxu0 %v1659
  %2375 = vmatprep.subr.bf16.mxu0 %v1652
  %2376 = vmatpush2.bf16.msra.mxu0 %v1651
  %2377 = vmatprep.subr.bf16.mxu0 %v1644
  %2378 = vmatpush2.bf16.msra.mxu0 %v1643
  %2379 = vmatprep.mubr.bf16.mxu0 %v416
  %2380 = vmatmul.mubr.bf16.gmra.mxu0 %v415
  %v2381 = vpop.f32.mrf.mxu0
  %v2382 = vadd.f32 0.0, %v2381
  %v2383 = vpop.f32.mrf.mxu0
  %v2384 = vadd.f32 0.0, %v2383
  %v2385 = vpop.f32.mrf.mxu0
  %v2386 = vpop.f32.mrf.mxu0
  %2387 = vdwg.mxu0
  %2388 = vmatprep.subr.bf16.mxu0 %v1764
  %2389 = vmatpush1.bf16.msra.mxu0 %v1763
  %2390 = vmatprep.subr.bf16.mxu0 %v1756
  %2391 = vmatpush1.bf16.msra.mxu0 %v1755
  %2392 = vmatprep.subr.bf16.mxu0 %v1748
  %2393 = vmatpush1.bf16.msra.mxu0 %v1747
  %2394 = vmatprep.subr.bf16.mxu0 %v1740
  %2395 = vmatpush1.bf16.msra.mxu0 %v1739
  %2396 = vmatprep.subr.bf16.mxu0 %v1732
  %2397 = vmatpush1.bf16.msra.mxu0 %v1731
  %2398 = vmatprep.subr.bf16.mxu0 %v1724
  %2399 = vmatpush1.bf16.msra.mxu0 %v1723
  %2400 = vmatprep.subr.bf16.mxu0 %v1716
  %2401 = vmatpush1.bf16.msra.mxu0 %v1715
  %2402 = vmatprep.subr.bf16.mxu0 %v1708
  %2403 = vmatpush1.bf16.msra.mxu0 %v1707
  %2404 = vmatprep.subr.bf16.mxu0 %v1828
  %2405 = vmatpush2.bf16.msra.mxu0 %v1827
  %2406 = vmatprep.subr.bf16.mxu0 %v1820
  %2407 = vmatpush2.bf16.msra.mxu0 %v1819
  %2408 = vmatprep.subr.bf16.mxu0 %v1812
  %2409 = vmatpush2.bf16.msra.mxu0 %v1811
  %2410 = vmatprep.subr.bf16.mxu0 %v1804
  %2411 = vmatpush2.bf16.msra.mxu0 %v1803
  %2412 = vmatprep.subr.bf16.mxu0 %v1796
  %2413 = vmatpush2.bf16.msra.mxu0 %v1795
  %2414 = vmatprep.subr.bf16.mxu0 %v1788
  %2415 = vmatpush2.bf16.msra.mxu0 %v1787
  %2416 = vmatprep.subr.bf16.mxu0 %v1780
  %2417 = vmatpush2.bf16.msra.mxu0 %v1779
  %2418 = vmatprep.subr.bf16.mxu0 %v1772
  %2419 = vmatpush2.bf16.msra.mxu0 %v1771
  %2420 = vmatprep.mubr.bf16.mxu0 %v418
  %2421 = vmatmul.mubr.bf16.gmra.mxu0 %v417
  %v2422 = vpop.f32.mrf.mxu0
  %v2423 = vadd.f32 %v2382, %v2422
  %v2424 = vpop.f32.mrf.mxu0
  %v2425 = vadd.f32 %v2384, %v2424
  %v2426 = vpop.f32.mrf.mxu0
  %v2427 = vpop.f32.mrf.mxu0
  %2428 = vdwg.mxu0
  %2429 = vmatprep.subr.bf16.mxu0 %v1892
  %2430 = vmatpush1.bf16.msra.mxu0 %v1891
  %2431 = vmatprep.subr.bf16.mxu0 %v1884
  %2432 = vmatpush1.bf16.msra.mxu0 %v1883
  %2433 = vmatprep.subr.bf16.mxu0 %v1876
  %2434 = vmatpush1.bf16.msra.mxu0 %v1875
  %2435 = vmatprep.subr.bf16.mxu0 %v1868
  %2436 = vmatpush1.bf16.msra.mxu0 %v1867
  %2437 = vmatprep.subr.bf16.mxu0 %v1860
  %2438 = vmatpush1.bf16.msra.mxu0 %v1859
  %2439 = vmatprep.subr.bf16.mxu0 %v1852
  %2440 = vmatpush1.bf16.msra.mxu0 %v1851
  %2441 = vmatprep.subr.bf16.mxu0 %v1844
  %2442 = vmatpush1.bf16.msra.mxu0 %v1843
  %2443 = vmatprep.subr.bf16.mxu0 %v1836
  %2444 = vmatpush1.bf16.msra.mxu0 %v1835
  %2445 = vmatprep.subr.bf16.mxu0 %v1956
  %2446 = vmatpush2.bf16.msra.mxu0 %v1955
  %2447 = vmatprep.subr.bf16.mxu0 %v1948
  %2448 = vmatpush2.bf16.msra.mxu0 %v1947
  %2449 = vmatprep.subr.bf16.mxu0 %v1940
  %2450 = vmatpush2.bf16.msra.mxu0 %v1939
  %2451 = vmatprep.subr.bf16.mxu0 %v1932
  %2452 = vmatpush2.bf16.msra.mxu0 %v1931
  %2453 = vmatprep.subr.bf16.mxu0 %v1924
  %2454 = vmatpush2.bf16.msra.mxu0 %v1923
  %2455 = vmatprep.subr.bf16.mxu0 %v1916
  %2456 = vmatpush2.bf16.msra.mxu0 %v1915
  %2457 = vmatprep.subr.bf16.mxu0 %v1908
  %2458 = vmatpush2.bf16.msra.mxu0 %v1907
  %2459 = vmatprep.subr.bf16.mxu0 %v1900
  %2460 = vmatpush2.bf16.msra.mxu0 %v1899
  %2461 = vmatprep.mubr.bf16.mxu0 %v420
  %2462 = vmatmul.mubr.bf16.gmra.mxu0 %v419
  %v2463 = vpop.f32.mrf.mxu0
  %v2464 = vadd.f32 %v2423, %v2463
  %v2465 = vpop.f32.mrf.mxu0
  %v2466 = vadd.f32 %v2425, %v2465
  %v2467 = vpop.f32.mrf.mxu0
  %v2468 = vpop.f32.mrf.mxu0
  %2469 = vdwg.mxu0
  %2470 = vmatprep.subr.bf16.mxu0 %v1638
  %2471 = vmatpush1.bf16.msra.mxu0 %v1637
  %2472 = vmatprep.subr.bf16.mxu0 %v1630
  %2473 = vmatpush1.bf16.msra.mxu0 %v1629
  %2474 = vmatprep.subr.bf16.mxu0 %v1622
  %2475 = vmatpush1.bf16.msra.mxu0 %v1621
  %2476 = vmatprep.subr.bf16.mxu0 %v1614
  %2477 = vmatpush1.bf16.msra.mxu0 %v1613
  %2478 = vmatprep.subr.bf16.mxu0 %v1606
  %2479 = vmatpush1.bf16.msra.mxu0 %v1605
  %2480 = vmatprep.subr.bf16.mxu0 %v1598
  %2481 = vmatpush1.bf16.msra.mxu0 %v1597
  %2482 = vmatprep.subr.bf16.mxu0 %v1590
  %2483 = vmatpush1.bf16.msra.mxu0 %v1589
  %2484 = vmatprep.subr.bf16.mxu0 %v1582
  %2485 = vmatpush1.bf16.msra.mxu0 %v1581
  %2486 = vmatprep.subr.bf16.mxu0 %v1702
  %2487 = vmatpush2.bf16.msra.mxu0 %v1701
  %2488 = vmatprep.subr.bf16.mxu0 %v1694
  %2489 = vmatpush2.bf16.msra.mxu0 %v1693
  %2490 = vmatprep.subr.bf16.mxu0 %v1686
  %2491 = vmatpush2.bf16.msra.mxu0 %v1685
  %2492 = vmatprep.subr.bf16.mxu0 %v1678
  %2493 = vmatpush2.bf16.msra.mxu0 %v1677
  %2494 = vmatprep.subr.bf16.mxu0 %v1670
  %2495 = vmatpush2.bf16.msra.mxu0 %v1669
  %2496 = vmatprep.subr.bf16.mxu0 %v1662
  %2497 = vmatpush2.bf16.msra.mxu0 %v1661
  %2498 = vmatprep.subr.bf16.mxu0 %v1654
  %2499 = vmatpush2.bf16.msra.mxu0 %v1653
  %2500 = vmatprep.subr.bf16.mxu0 %v1646
  %2501 = vmatpush2.bf16.msra.mxu0 %v1645
  %2502 = vmatprep.mubr.bf16.mxu0 %v416
  %2503 = vmatmul.mubr.bf16.gmra.mxu0 %v415
  %v2504 = vpop.f32.mrf.mxu0
  %v2505 = vadd.f32 0.0, %v2504
  %v2506 = vpop.f32.mrf.mxu0
  %v2507 = vadd.f32 0.0, %v2506
  %v2508 = vpop.f32.mrf.mxu0
  %v2509 = vpop.f32.mrf.mxu0
  %2510 = vdwg.mxu0
  %2511 = vmatprep.subr.bf16.mxu0 %v1766
  %2512 = vmatpush1.bf16.msra.mxu0 %v1765
  %2513 = vmatprep.subr.bf16.mxu0 %v1758
  %2514 = vmatpush1.bf16.msra.mxu0 %v1757
  %2515 = vmatprep.subr.bf16.mxu0 %v1750
  %2516 = vmatpush1.bf16.msra.mxu0 %v1749
  %2517 = vmatprep.subr.bf16.mxu0 %v1742
  %2518 = vmatpush1.bf16.msra.mxu0 %v1741
  %2519 = vmatprep.subr.bf16.mxu0 %v1734
  %2520 = vmatpush1.bf16.msra.mxu0 %v1733
  %2521 = vmatprep.subr.bf16.mxu0 %v1726
  %2522 = vmatpush1.bf16.msra.mxu0 %v1725
  %2523 = vmatprep.subr.bf16.mxu0 %v1718
  %2524 = vmatpush1.bf16.msra.mxu0 %v1717
  %2525 = vmatprep.subr.bf16.mxu0 %v1710
  %2526 = vmatpush1.bf16.msra.mxu0 %v1709
  %2527 = vmatprep.subr.bf16.mxu0 %v1830
  %2528 = vmatpush2.bf16.msra.mxu0 %v1829
  %2529 = vmatprep.subr.bf16.mxu0 %v1822
  %2530 = vmatpush2.bf16.msra.mxu0 %v1821
  %2531 = vmatprep.subr.bf16.mxu0 %v1814
  %2532 = vmatpush2.bf16.msra.mxu0 %v1813
  %2533 = vmatprep.subr.bf16.mxu0 %v1806
  %2534 = vmatpush2.bf16.msra.mxu0 %v1805
  %2535 = vmatprep.subr.bf16.mxu0 %v1798
  %2536 = vmatpush2.bf16.msra.mxu0 %v1797
  %2537 = vmatprep.subr.bf16.mxu0 %v1790
  %2538 = vmatpush2.bf16.msra.mxu0 %v1789
  %2539 = vmatprep.subr.bf16.mxu0 %v1782
  %2540 = vmatpush2.bf16.msra.mxu0 %v1781
  %2541 = vmatprep.subr.bf16.mxu0 %v1774
  %2542 = vmatpush2.bf16.msra.mxu0 %v1773
  %2543 = vmatprep.mubr.bf16.mxu0 %v418
  %2544 = vmatmul.mubr.bf16.gmra.mxu0 %v417
  %v2545 = vpop.f32.mrf.mxu0
  %v2546 = vadd.f32 %v2505, %v2545
  %v2547 = vpop.f32.mrf.mxu0
  %v2548 = vadd.f32 %v2507, %v2547
  %v2549 = vpop.f32.mrf.mxu0
  %v2550 = vpop.f32.mrf.mxu0
  %2551 = vdwg.mxu0
  %2552 = vmatprep.subr.bf16.mxu0 %v1894
  %2553 = vmatpush1.bf16.msra.mxu0 %v1893
  %2554 = vmatprep.subr.bf16.mxu0 %v1886
  %2555 = vmatpush1.bf16.msra.mxu0 %v1885
  %2556 = vmatprep.subr.bf16.mxu0 %v1878
  %2557 = vmatpush1.bf16.msra.mxu0 %v1877
  %2558 = vmatprep.subr.bf16.mxu0 %v1870
  %2559 = vmatpush1.bf16.msra.mxu0 %v1869
  %2560 = vmatprep.subr.bf16.mxu0 %v1862
  %2561 = vmatpush1.bf16.msra.mxu0 %v1861
  %2562 = vmatprep.subr.bf16.mxu0 %v1854
  %2563 = vmatpush1.bf16.msra.mxu0 %v1853
  %2564 = vmatprep.subr.bf16.mxu0 %v1846
  %2565 = vmatpush1.bf16.msra.mxu0 %v1845
  %2566 = vmatprep.subr.bf16.mxu0 %v1838
  %2567 = vmatpush1.bf16.msra.mxu0 %v1837
  %2568 = vmatprep.subr.bf16.mxu0 %v1958
  %2569 = vmatpush2.bf16.msra.mxu0 %v1957
  %2570 = vmatprep.subr.bf16.mxu0 %v1950
  %2571 = vmatpush2.bf16.msra.mxu0 %v1949
  %2572 = vmatprep.subr.bf16.mxu0 %v1942
  %2573 = vmatpush2.bf16.msra.mxu0 %v1941
  %2574 = vmatprep.subr.bf16.mxu0 %v1934
  %2575 = vmatpush2.bf16.msra.mxu0 %v1933
  %2576 = vmatprep.subr.bf16.mxu0 %v1926
  %2577 = vmatpush2.bf16.msra.mxu0 %v1925
  %2578 = vmatprep.subr.bf16.mxu0 %v1918
  %2579 = vmatpush2.bf16.msra.mxu0 %v1917
  %2580 = vmatprep.subr.bf16.mxu0 %v1910
  %2581 = vmatpush2.bf16.msra.mxu0 %v1909
  %2582 = vmatprep.subr.bf16.mxu0 %v1902
  %2583 = vmatpush2.bf16.msra.mxu0 %v1901
  %2584 = vmatprep.mubr.bf16.mxu0 %v420
  %2585 = vmatmul.mubr.bf16.gmra.mxu0 %v419
  %v2586 = vpop.f32.mrf.mxu0
  %v2587 = vadd.f32 %v2546, %v2586
  %v2588 = vpop.f32.mrf.mxu0
  %v2589 = vadd.f32 %v2548, %v2588
  %v2590 = vpop.f32.mrf.mxu0
  %v2591 = vpop.f32.mrf.mxu0
  %2592 = vdwg.mxu0
  %2593 = vmatprep.subr.bf16.mxu0 %v1640
  %2594 = vmatpush1.bf16.msra.mxu0 %v1639
  %2595 = vmatprep.subr.bf16.mxu0 %v1632
  %2596 = vmatpush1.bf16.msra.mxu0 %v1631
  %2597 = vmatprep.subr.bf16.mxu0 %v1624
  %2598 = vmatpush1.bf16.msra.mxu0 %v1623
  %2599 = vmatprep.subr.bf16.mxu0 %v1616
  %2600 = vmatpush1.bf16.msra.mxu0 %v1615
  %2601 = vmatprep.subr.bf16.mxu0 %v1608
  %2602 = vmatpush1.bf16.msra.mxu0 %v1607
  %2603 = vmatprep.subr.bf16.mxu0 %v1600
  %2604 = vmatpush1.bf16.msra.mxu0 %v1599
  %2605 = vmatprep.subr.bf16.mxu0 %v1592
  %2606 = vmatpush1.bf16.msra.mxu0 %v1591
  %2607 = vmatprep.subr.bf16.mxu0 %v1584
  %2608 = vmatpush1.bf16.msra.mxu0 %v1583
  %2609 = vmatprep.subr.bf16.mxu0 %v1704
  %2610 = vmatpush2.bf16.msra.mxu0 %v1703
  %2611 = vmatprep.subr.bf16.mxu0 %v1696
  %2612 = vmatpush2.bf16.msra.mxu0 %v1695
  %2613 = vmatprep.subr.bf16.mxu0 %v1688
  %2614 = vmatpush2.bf16.msra.mxu0 %v1687
  %2615 = vmatprep.subr.bf16.mxu0 %v1680
  %2616 = vmatpush2.bf16.msra.mxu0 %v1679
  %2617 = vmatprep.subr.bf16.mxu0 %v1672
  %2618 = vmatpush2.bf16.msra.mxu0 %v1671
  %2619 = vmatprep.subr.bf16.mxu0 %v1664
  %2620 = vmatpush2.bf16.msra.mxu0 %v1663
  %2621 = vmatprep.subr.bf16.mxu0 %v1656
  %2622 = vmatpush2.bf16.msra.mxu0 %v1655
  %2623 = vmatprep.subr.bf16.mxu0 %v1648
  %2624 = vmatpush2.bf16.msra.mxu0 %v1647
  %2625 = vmatprep.mubr.bf16.mxu0 %v416
  %2626 = vmatmul.mubr.bf16.gmra.mxu0 %v415
  %v2627 = vpop.f32.mrf.mxu0
  %v2628 = vadd.f32 0.0, %v2627
  %v2629 = vpop.f32.mrf.mxu0
  %v2630 = vadd.f32 0.0, %v2629
  %v2631 = vpop.f32.mrf.mxu0
  %v2632 = vpop.f32.mrf.mxu0
  %2633 = vdwg.mxu0
  %2634 = vmatprep.subr.bf16.mxu0 %v1768
  %2635 = vmatpush1.bf16.msra.mxu0 %v1767
  %2636 = vmatprep.subr.bf16.mxu0 %v1760
  %2637 = vmatpush1.bf16.msra.mxu0 %v1759
  %2638 = vmatprep.subr.bf16.mxu0 %v1752
  %2639 = vmatpush1.bf16.msra.mxu0 %v1751
  %2640 = vmatprep.subr.bf16.mxu0 %v1744
  %2641 = vmatpush1.bf16.msra.mxu0 %v1743
  %2642 = vmatprep.subr.bf16.mxu0 %v1736
  %2643 = vmatpush1.bf16.msra.mxu0 %v1735
  %2644 = vmatprep.subr.bf16.mxu0 %v1728
  %2645 = vmatpush1.bf16.msra.mxu0 %v1727
  %2646 = vmatprep.subr.bf16.mxu0 %v1720
  %2647 = vmatpush1.bf16.msra.mxu0 %v1719
  %2648 = vmatprep.subr.bf16.mxu0 %v1712
  %2649 = vmatpush1.bf16.msra.mxu0 %v1711
  %2650 = vmatprep.subr.bf16.mxu0 %v1832
  %2651 = vmatpush2.bf16.msra.mxu0 %v1831
  %2652 = vmatprep.subr.bf16.mxu0 %v1824
  %2653 = vmatpush2.bf16.msra.mxu0 %v1823
  %2654 = vmatprep.subr.bf16.mxu0 %v1816
  %2655 = vmatpush2.bf16.msra.mxu0 %v1815
  %2656 = vmatprep.subr.bf16.mxu0 %v1808
  %2657 = vmatpush2.bf16.msra.mxu0 %v1807
  %2658 = vmatprep.subr.bf16.mxu0 %v1800
  %2659 = vmatpush2.bf16.msra.mxu0 %v1799
  %2660 = vmatprep.subr.bf16.mxu0 %v1792
  %2661 = vmatpush2.bf16.msra.mxu0 %v1791
  %2662 = vmatprep.subr.bf16.mxu0 %v1784
  %2663 = vmatpush2.bf16.msra.mxu0 %v1783
  %2664 = vmatprep.subr.bf16.mxu0 %v1776
  %2665 = vmatpush2.bf16.msra.mxu0 %v1775
  %2666 = vmatprep.mubr.bf16.mxu0 %v418
  %2667 = vmatmul.mubr.bf16.gmra.mxu0 %v417
  %v2668 = vpop.f32.mrf.mxu0
  %v2669 = vadd.f32 %v2628, %v2668
  %v2670 = vpop.f32.mrf.mxu0
  %v2671 = vadd.f32 %v2630, %v2670
  %v2672 = vpop.f32.mrf.mxu0
  %v2673 = vpop.f32.mrf.mxu0
  %2674 = vdwg.mxu0
  %2675 = vmatprep.subr.bf16.mxu0 %v1896
  %2676 = vmatpush1.bf16.msra.mxu0 %v1895
  %2677 = vmatprep.subr.bf16.mxu0 %v1888
  %2678 = vmatpush1.bf16.msra.mxu0 %v1887
  %2679 = vmatprep.subr.bf16.mxu0 %v1880
  %2680 = vmatpush1.bf16.msra.mxu0 %v1879
  %2681 = vmatprep.subr.bf16.mxu0 %v1872
  %2682 = vmatpush1.bf16.msra.mxu0 %v1871
  %2683 = vmatprep.subr.bf16.mxu0 %v1864
  %2684 = vmatpush1.bf16.msra.mxu0 %v1863
  %2685 = vmatprep.subr.bf16.mxu0 %v1856
  %2686 = vmatpush1.bf16.msra.mxu0 %v1855
  %2687 = vmatprep.subr.bf16.mxu0 %v1848
  %2688 = vmatpush1.bf16.msra.mxu0 %v1847
  %2689 = vmatprep.subr.bf16.mxu0 %v1840
  %2690 = vmatpush1.bf16.msra.mxu0 %v1839
  %2691 = vmatprep.subr.bf16.mxu0 %v1960
  %2692 = vmatpush2.bf16.msra.mxu0 %v1959
  %2693 = vmatprep.subr.bf16.mxu0 %v1952
  %2694 = vmatpush2.bf16.msra.mxu0 %v1951
  %2695 = vmatprep.subr.bf16.mxu0 %v1944
  %2696 = vmatpush2.bf16.msra.mxu0 %v1943
  %2697 = vmatprep.subr.bf16.mxu0 %v1936
  %2698 = vmatpush2.bf16.msra.mxu0 %v1935
  %2699 = vmatprep.subr.bf16.mxu0 %v1928
  %2700 = vmatpush2.bf16.msra.mxu0 %v1927
  %2701 = vmatprep.subr.bf16.mxu0 %v1920
  %2702 = vmatpush2.bf16.msra.mxu0 %v1919
  %2703 = vmatprep.subr.bf16.mxu0 %v1912
  %2704 = vmatpush2.bf16.msra.mxu0 %v1911
  %2705 = vmatprep.subr.bf16.mxu0 %v1904
  %2706 = vmatpush2.bf16.msra.mxu0 %v1903
  %2707 = vmatprep.mubr.bf16.mxu0 %v420
  %2708 = vmatmul.mubr.bf16.gmra.mxu0 %v419
  %v2709 = vpop.f32.mrf.mxu0
  %v2710 = vadd.f32 %v2669, %v2709
  %v2711 = vpop.f32.mrf.mxu0
  %v2712 = vadd.f32 %v2671, %v2711
  %v2713 = vpop.f32.mrf.mxu0
  %v2714 = vpop.f32.mrf.mxu0
  %2715 = vdwg.mxu0
  %2716 = vmatprep.subr.bf16.mxu0 %v1642
  %2717 = vmatpush1.bf16.msra.mxu0 %v1641
  %2718 = vmatprep.subr.bf16.mxu0 %v1634
  %2719 = vmatpush1.bf16.msra.mxu0 %v1633
  %2720 = vmatprep.subr.bf16.mxu0 %v1626
  %2721 = vmatpush1.bf16.msra.mxu0 %v1625
  %2722 = vmatprep.subr.bf16.mxu0 %v1618
  %2723 = vmatpush1.bf16.msra.mxu0 %v1617
  %2724 = vmatprep.subr.bf16.mxu0 %v1610
  %2725 = vmatpush1.bf16.msra.mxu0 %v1609
  %2726 = vmatprep.subr.bf16.mxu0 %v1602
  %2727 = vmatpush1.bf16.msra.mxu0 %v1601
  %2728 = vmatprep.subr.bf16.mxu0 %v1594
  %2729 = vmatpush1.bf16.msra.mxu0 %v1593
  %2730 = vmatprep.subr.bf16.mxu0 %v1586
  %2731 = vmatpush1.bf16.msra.mxu0 %v1585
  %2732 = vmatprep.subr.bf16.mxu0 %v1706
  %2733 = vmatpush2.bf16.msra.mxu0 %v1705
  %2734 = vmatprep.subr.bf16.mxu0 %v1698
  %2735 = vmatpush2.bf16.msra.mxu0 %v1697
  %2736 = vmatprep.subr.bf16.mxu0 %v1690
  %2737 = vmatpush2.bf16.msra.mxu0 %v1689
  %2738 = vmatprep.subr.bf16.mxu0 %v1682
  %2739 = vmatpush2.bf16.msra.mxu0 %v1681
  %2740 = vmatprep.subr.bf16.mxu0 %v1674
  %2741 = vmatpush2.bf16.msra.mxu0 %v1673
  %2742 = vmatprep.subr.bf16.mxu0 %v1666
  %2743 = vmatpush2.bf16.msra.mxu0 %v1665
  %2744 = vmatprep.subr.bf16.mxu0 %v1658
  %2745 = vmatpush2.bf16.msra.mxu0 %v1657
  %2746 = vmatprep.subr.bf16.mxu0 %v1650
  %2747 = vmatpush2.bf16.msra.mxu0 %v1649
  %2748 = vmatprep.mubr.bf16.mxu0 %v416
  %2749 = vmatmul.mubr.bf16.gmra.mxu0 %v415
  %v2750 = vpop.f32.mrf.mxu0
  %v2751 = vadd.f32 0.0, %v2750
  %v2752 = vpop.f32.mrf.mxu0
  %v2753 = vadd.f32 0.0, %v2752
  %v2754 = vpop.f32.mrf.mxu0
  %v2755 = vpop.f32.mrf.mxu0
  %2756 = vdwg.mxu0
  %2757 = vmatprep.subr.bf16.mxu0 %v1770
  %2758 = vmatpush1.bf16.msra.mxu0 %v1769
  %2759 = vmatprep.subr.bf16.mxu0 %v1762
  %2760 = vmatpush1.bf16.msra.mxu0 %v1761
  %2761 = vmatprep.subr.bf16.mxu0 %v1754
  %2762 = vmatpush1.bf16.msra.mxu0 %v1753
  %2763 = vmatprep.subr.bf16.mxu0 %v1746
  %2764 = vmatpush1.bf16.msra.mxu0 %v1745
  %2765 = vmatprep.subr.bf16.mxu0 %v1738
  %2766 = vmatpush1.bf16.msra.mxu0 %v1737
  %2767 = vmatprep.subr.bf16.mxu0 %v1730
  %2768 = vmatpush1.bf16.msra.mxu0 %v1729
  %2769 = vmatprep.subr.bf16.mxu0 %v1722
  %2770 = vmatpush1.bf16.msra.mxu0 %v1721
  %2771 = vmatprep.subr.bf16.mxu0 %v1714
  %2772 = vmatpush1.bf16.msra.mxu0 %v1713
  %2773 = vmatprep.subr.bf16.mxu0 %v1834
  %2774 = vmatpush2.bf16.msra.mxu0 %v1833
  %2775 = vmatprep.subr.bf16.mxu0 %v1826
  %2776 = vmatpush2.bf16.msra.mxu0 %v1825
  %2777 = vmatprep.subr.bf16.mxu0 %v1818
  %2778 = vmatpush2.bf16.msra.mxu0 %v1817
  %2779 = vmatprep.subr.bf16.mxu0 %v1810
  %2780 = vmatpush2.bf16.msra.mxu0 %v1809
  %2781 = vmatprep.subr.bf16.mxu0 %v1802
  %2782 = vmatpush2.bf16.msra.mxu0 %v1801
  %2783 = vmatprep.subr.bf16.mxu0 %v1794
  %2784 = vmatpush2.bf16.msra.mxu0 %v1793
  %2785 = vmatprep.subr.bf16.mxu0 %v1786
  %2786 = vmatpush2.bf16.msra.mxu0 %v1785
  %2787 = vmatprep.subr.bf16.mxu0 %v1778
  %2788 = vmatpush2.bf16.msra.mxu0 %v1777
  %2789 = vmatprep.mubr.bf16.mxu0 %v418
  %2790 = vmatmul.mubr.bf16.gmra.mxu0 %v417
  %v2791 = vpop.f32.mrf.mxu0
  %v2792 = vadd.f32 %v2751, %v2791
  %v2793 = vpop.f32.mrf.mxu0
  %v2794 = vadd.f32 %v2753, %v2793
  %v2795 = vpop.f32.mrf.mxu0
  %v2796 = vpop.f32.mrf.mxu0
  %2797 = vdwg.mxu0
  %2798 = vmatprep.subr.bf16.mxu0 %v1898
  %2799 = vmatpush1.bf16.msra.mxu0 %v1897
  %2800 = vmatprep.subr.bf16.mxu0 %v1890
  %2801 = vmatpush1.bf16.msra.mxu0 %v1889
  %2802 = vmatprep.subr.bf16.mxu0 %v1882
  %2803 = vmatpush1.bf16.msra.mxu0 %v1881
  %2804 = vmatprep.subr.bf16.mxu0 %v1874
  %2805 = vmatpush1.bf16.msra.mxu0 %v1873
  %2806 = vmatprep.subr.bf16.mxu0 %v1866
  %2807 = vmatpush1.bf16.msra.mxu0 %v1865
  %2808 = vmatprep.subr.bf16.mxu0 %v1858
  %2809 = vmatpush1.bf16.msra.mxu0 %v1857
  %2810 = vmatprep.subr.bf16.mxu0 %v1850
  %2811 = vmatpush1.bf16.msra.mxu0 %v1849
  %2812 = vmatprep.subr.bf16.mxu0 %v1842
  %2813 = vmatpush1.bf16.msra.mxu0 %v1841
  %2814 = vmatprep.subr.bf16.mxu0 %v1962
  %2815 = vmatpush2.bf16.msra.mxu0 %v1961
  %2816 = vmatprep.subr.bf16.mxu0 %v1954
  %2817 = vmatpush2.bf16.msra.mxu0 %v1953
  %2818 = vmatprep.subr.bf16.mxu0 %v1946
  %2819 = vmatpush2.bf16.msra.mxu0 %v1945
  %2820 = vmatprep.subr.bf16.mxu0 %v1938
  %2821 = vmatpush2.bf16.msra.mxu0 %v1937
  %2822 = vmatprep.subr.bf16.mxu0 %v1930
  %2823 = vmatpush2.bf16.msra.mxu0 %v1929
  %2824 = vmatprep.subr.bf16.mxu0 %v1922
  %2825 = vmatpush2.bf16.msra.mxu0 %v1921
  %2826 = vmatprep.subr.bf16.mxu0 %v1914
  %2827 = vmatpush2.bf16.msra.mxu0 %v1913
  %2828 = vmatprep.subr.bf16.mxu0 %v1906
  %2829 = vmatpush2.bf16.msra.mxu0 %v1905
  %2830 = vmatprep.mubr.bf16.mxu0 %v420
  %2831 = vmatmul.mubr.bf16.gmra.mxu0 %v419
  %v2832 = vpop.f32.mrf.mxu0
  %v2833 = vadd.f32 %v2792, %v2832
  %v2834 = vpop.f32.mrf.mxu0
  %v2835 = vadd.f32 %v2794, %v2834
  %v2836 = vpop.f32.mrf.mxu0
  %v2837 = vpop.f32.mrf.mxu0
  %2838 = vdwg.mxu0
  %vm2839 = vcmp.gt.f32.partialorder %v2464, 0.0
  %vm2840 = vcmp.gt.f32.partialorder %v2466, 0.0
  %vm2841 = vcmp.gt.f32.partialorder %v2587, 0.0
  %vm2842 = vcmp.gt.f32.partialorder %v2589, 0.0
  %vm2843 = vcmp.gt.f32.partialorder %v2710, 0.0
  %vm2844 = vcmp.gt.f32.partialorder %v2712, 0.0
  %vm2845 = vcmp.gt.f32.partialorder %v2833, 0.0
  %vm2846 = vcmp.gt.f32.partialorder %v2835, 0.0
  %v2847 = vmul.f32 %v2464, 0.1
  %v2848 = vmul.f32 %v2466, 0.1
  %v2849 = vmul.f32 %v2587, 0.1
  %v2850 = vmul.f32 %v2589, 0.1
  %v2851 = vmul.f32 %v2710, 0.1
  %v2852 = vmul.f32 %v2712, 0.1
  %v2853 = vmul.f32 %v2833, 0.1
  %v2854 = vmul.f32 %v2835, 0.1
  %v2855 = vsel %vm2839, %v2464, %v2847
  %v2856 = vsel %vm2840, %v2466, %v2848
  %v2857 = vsel %vm2841, %v2587, %v2849
  %v2858 = vsel %vm2842, %v2589, %v2850
  %v2859 = vsel %vm2843, %v2710, %v2851
  %v2860 = vsel %vm2844, %v2712, %v2852
  %v2861 = vsel %vm2845, %v2833, %v2853
  %v2862 = vsel %vm2846, %v2835, %v2854
  %v2863 = vpack.c.bf16 %v2855, %v2855
  %v2864 = vpack.c.bf16 %v2856, %v2856
  %v2865 = vpack.c.bf16 %v2857, %v2857
  %v2866 = vpack.c.bf16 %v2858, %v2858
  %v2867 = vpack.c.bf16 %v2859, %v2859
  %v2868 = vpack.c.bf16 %v2860, %v2860
  %v2869 = vpack.c.bf16 %v2861, %v2861
  %v2870 = vpack.c.bf16 %v2862, %v2862
  %v2871 = vld [vmem:[%s2] sm:$0xff]
  %v2872 = vld [vmem:[%s2 + $0x8] sm:$0xff]
  %v2873 = vld [vmem:[%s2 + $0x10] sm:$0xff]
  %v2874 = vld [vmem:[%s2 + $0x18] sm:$0xff]
  %v2875 = vld [vmem:[%s2 + $0x20] sm:$0xff]
  %v2876 = vld [vmem:[%s2 + $0x28] sm:$0xff]
  %v2877 = vld [vmem:[%s2 + $0x30] sm:$0xff]
  %v2878 = vld [vmem:[%s2 + $0x38] sm:$0xff]
  %v2879 = vld [vmem:[%s2 + $0x40] sm:$0xff]
  %v2880 = vld [vmem:[%s2 + $0x48] sm:$0xff]
  %v2881 = vld [vmem:[%s2 + $0x50] sm:$0xff]
  %v2882 = vld [vmem:[%s2 + $0x58] sm:$0xff]
  %v2883 = vld [vmem:[%s2 + $0x60] sm:$0xff]
  %v2884 = vld [vmem:[%s2 + $0x68] sm:$0xff]
  %v2885 = vld [vmem:[%s2 + $0x70] sm:$0xff]
  %v2886 = vld [vmem:[%s2 + $0x78] sm:$0xff]
  %v2887 = vld [vmem:[%s2 + $0x80] sm:$0xff]
  %v2888 = vld [vmem:[%s2 + $0x88] sm:$0xff]
  %v2889 = vld [vmem:[%s2 + $0x90] sm:$0xff]
  %v2890 = vld [vmem:[%s2 + $0x98] sm:$0xff]
  %v2891 = vld [vmem:[%s2 + $0xa0] sm:$0xff]
  %v2892 = vld [vmem:[%s2 + $0xa8] sm:$0xff]
  %v2893 = vld [vmem:[%s2 + $0xb0] sm:$0xff]
  %v2894 = vld [vmem:[%s2 + $0xb8] sm:$0xff]
  %v2895 = vld [vmem:[%s2 + $0xc0] sm:$0xff]
  %v2896 = vld [vmem:[%s2 + $0xc8] sm:$0xff]
  %v2897 = vld [vmem:[%s2 + $0xd0] sm:$0xff]
  %v2898 = vld [vmem:[%s2 + $0xd8] sm:$0xff]
  %v2899 = vld [vmem:[%s2 + $0xe0] sm:$0xff]
  %v2900 = vld [vmem:[%s2 + $0xe8] sm:$0xff]
  %v2901 = vld [vmem:[%s2 + $0xf0] sm:$0xff]
  %v2902 = vld [vmem:[%s2 + $0xf8] sm:$0xff]
  %v2903 = vld [vmem:[%s2 + $0x100] sm:$0xff]
  %v2904 = vld [vmem:[%s2 + $0x108] sm:$0xff]
  %v2905 = vld [vmem:[%s2 + $0x110] sm:$0xff]
  %v2906 = vld [vmem:[%s2 + $0x118] sm:$0xff]
  %v2907 = vld [vmem:[%s2 + $0x120] sm:$0xff]
  %v2908 = vld [vmem:[%s2 + $0x128] sm:$0xff]
  %v2909 = vld [vmem:[%s2 + $0x130] sm:$0xff]
  %v2910 = vld [vmem:[%s2 + $0x138] sm:$0xff]
  %v2911 = vld [vmem:[%s2 + $0x140] sm:$0xff]
  %v2912 = vld [vmem:[%s2 + $0x148] sm:$0xff]
  %v2913 = vld [vmem:[%s2 + $0x150] sm:$0xff]
  %v2914 = vld [vmem:[%s2 + $0x158] sm:$0xff]
  %v2915 = vld [vmem:[%s2 + $0x160] sm:$0xff]
  %v2916 = vld [vmem:[%s2 + $0x168] sm:$0xff]
  %v2917 = vld [vmem:[%s2 + $0x170] sm:$0xff]
  %v2918 = vld [vmem:[%s2 + $0x178] sm:$0xff]
  %v2919 = vld [vmem:[%s2 + $0x180] sm:$0xff]
  %v2920 = vld [vmem:[%s2 + $0x188] sm:$0xff]
  %v2921 = vld [vmem:[%s2 + $0x190] sm:$0xff]
  %v2922 = vld [vmem:[%s2 + $0x198] sm:$0xff]
  %v2923 = vld [vmem:[%s2 + $0x1a0] sm:$0xff]
  %v2924 = vld [vmem:[%s2 + $0x1a8] sm:$0xff]
  %v2925 = vld [vmem:[%s2 + $0x1b0] sm:$0xff]
  %v2926 = vld [vmem:[%s2 + $0x1b8] sm:$0xff]
  %v2927 = vld [vmem:[%s2 + $0x1c0] sm:$0xff]
  %v2928 = vld [vmem:[%s2 + $0x1c8] sm:$0xff]
  %v2929 = vld [vmem:[%s2 + $0x1d0] sm:$0xff]
  %v2930 = vld [vmem:[%s2 + $0x1d8] sm:$0xff]
  %v2931 = vld [vmem:[%s2 + $0x1e0] sm:$0xff]
  %v2932 = vld [vmem:[%s2 + $0x1e8] sm:$0xff]
  %v2933 = vld [vmem:[%s2 + $0x1f0] sm:$0xff]
  %v2934 = vld [vmem:[%s2 + $0x1f8] sm:$0xff]
  %v2935 = vld [vmem:[%s2 + $0x200] sm:$0xff]
  %v2936 = vld [vmem:[%s2 + $0x208] sm:$0xff]
  %v2937 = vld [vmem:[%s2 + $0x210] sm:$0xff]
  %v2938 = vld [vmem:[%s2 + $0x218] sm:$0xff]
  %v2939 = vld [vmem:[%s2 + $0x220] sm:$0xff]
  %v2940 = vld [vmem:[%s2 + $0x228] sm:$0xff]
  %v2941 = vld [vmem:[%s2 + $0x230] sm:$0xff]
  %v2942 = vld [vmem:[%s2 + $0x238] sm:$0xff]
  %v2943 = vld [vmem:[%s2 + $0x240] sm:$0xff]
  %v2944 = vld [vmem:[%s2 + $0x248] sm:$0xff]
  %v2945 = vld [vmem:[%s2 + $0x250] sm:$0xff]
  %v2946 = vld [vmem:[%s2 + $0x258] sm:$0xff]
  %v2947 = vld [vmem:[%s2 + $0x260] sm:$0xff]
  %v2948 = vld [vmem:[%s2 + $0x268] sm:$0xff]
  %v2949 = vld [vmem:[%s2 + $0x270] sm:$0xff]
  %v2950 = vld [vmem:[%s2 + $0x278] sm:$0xff]
  %v2951 = vld [vmem:[%s2 + $0x280] sm:$0xff]
  %v2952 = vld [vmem:[%s2 + $0x288] sm:$0xff]
  %v2953 = vld [vmem:[%s2 + $0x290] sm:$0xff]
  %v2954 = vld [vmem:[%s2 + $0x298] sm:$0xff]
  %v2955 = vld [vmem:[%s2 + $0x2a0] sm:$0xff]
  %v2956 = vld [vmem:[%s2 + $0x2a8] sm:$0xff]
  %v2957 = vld [vmem:[%s2 + $0x2b0] sm:$0xff]
  %v2958 = vld [vmem:[%s2 + $0x2b8] sm:$0xff]
  %v2959 = vld [vmem:[%s2 + $0x2c0] sm:$0xff]
  %v2960 = vld [vmem:[%s2 + $0x2c8] sm:$0xff]
  %v2961 = vld [vmem:[%s2 + $0x2d0] sm:$0xff]
  %v2962 = vld [vmem:[%s2 + $0x2d8] sm:$0xff]
  %v2963 = vld [vmem:[%s2 + $0x2e0] sm:$0xff]
  %v2964 = vld [vmem:[%s2 + $0x2e8] sm:$0xff]
  %v2965 = vld [vmem:[%s2 + $0x2f0] sm:$0xff]
  %v2966 = vld [vmem:[%s2 + $0x2f8] sm:$0xff]
  %v2967 = vld [vmem:[%s2 + $0x300] sm:$0xff]
  %v2968 = vld [vmem:[%s2 + $0x308] sm:$0xff]
  %v2969 = vld [vmem:[%s2 + $0x310] sm:$0xff]
  %v2970 = vld [vmem:[%s2 + $0x318] sm:$0xff]
  %v2971 = vld [vmem:[%s2 + $0x320] sm:$0xff]
  %v2972 = vld [vmem:[%s2 + $0x328] sm:$0xff]
  %v2973 = vld [vmem:[%s2 + $0x330] sm:$0xff]
  %v2974 = vld [vmem:[%s2 + $0x338] sm:$0xff]
  %v2975 = vld [vmem:[%s2 + $0x340] sm:$0xff]
  %v2976 = vld [vmem:[%s2 + $0x348] sm:$0xff]
  %v2977 = vld [vmem:[%s2 + $0x350] sm:$0xff]
  %v2978 = vld [vmem:[%s2 + $0x358] sm:$0xff]
  %v2979 = vld [vmem:[%s2 + $0x360] sm:$0xff]
  %v2980 = vld [vmem:[%s2 + $0x368] sm:$0xff]
  %v2981 = vld [vmem:[%s2 + $0x370] sm:$0xff]
  %v2982 = vld [vmem:[%s2 + $0x378] sm:$0xff]
  %v2983 = vld [vmem:[%s2 + $0x380] sm:$0xff]
  %v2984 = vld [vmem:[%s2 + $0x388] sm:$0xff]
  %v2985 = vld [vmem:[%s2 + $0x390] sm:$0xff]
  %v2986 = vld [vmem:[%s2 + $0x398] sm:$0xff]
  %v2987 = vld [vmem:[%s2 + $0x3a0] sm:$0xff]
  %v2988 = vld [vmem:[%s2 + $0x3a8] sm:$0xff]
  %v2989 = vld [vmem:[%s2 + $0x3b0] sm:$0xff]
  %v2990 = vld [vmem:[%s2 + $0x3b8] sm:$0xff]
  %v2991 = vld [vmem:[%s2 + $0x3c0] sm:$0xff]
  %v2992 = vld [vmem:[%s2 + $0x3c8] sm:$0xff]
  %v2993 = vld [vmem:[%s2 + $0x3d0] sm:$0xff]
  %v2994 = vld [vmem:[%s2 + $0x3d8] sm:$0xff]
  %v2995 = vld [vmem:[%s2 + $0x3e0] sm:$0xff]
  %v2996 = vld [vmem:[%s2 + $0x3e8] sm:$0xff]
  %v2997 = vld [vmem:[%s2 + $0x3f0] sm:$0xff]
  %v2998 = vld [vmem:[%s2 + $0x3f8] sm:$0xff]
  %v2999 = vld [vmem:[%s2 + $0x400] sm:$0xff]
  %v3000 = vld [vmem:[%s2 + $0x408] sm:$0xff]
  %v3001 = vld [vmem:[%s2 + $0x410] sm:$0xff]
  %v3002 = vld [vmem:[%s2 + $0x418] sm:$0xff]
  %v3003 = vld [vmem:[%s2 + $0x420] sm:$0xff]
  %v3004 = vld [vmem:[%s2 + $0x428] sm:$0xff]
  %v3005 = vld [vmem:[%s2 + $0x430] sm:$0xff]
  %v3006 = vld [vmem:[%s2 + $0x438] sm:$0xff]
  %v3007 = vld [vmem:[%s2 + $0x440] sm:$0xff]
  %v3008 = vld [vmem:[%s2 + $0x448] sm:$0xff]
  %v3009 = vld [vmem:[%s2 + $0x450] sm:$0xff]
  %v3010 = vld [vmem:[%s2 + $0x458] sm:$0xff]
  %v3011 = vld [vmem:[%s2 + $0x460] sm:$0xff]
  %v3012 = vld [vmem:[%s2 + $0x468] sm:$0xff]
  %v3013 = vld [vmem:[%s2 + $0x470] sm:$0xff]
  %v3014 = vld [vmem:[%s2 + $0x478] sm:$0xff]
  %v3015 = vld [vmem:[%s2 + $0x480] sm:$0xff]
  %v3016 = vld [vmem:[%s2 + $0x488] sm:$0xff]
  %v3017 = vld [vmem:[%s2 + $0x490] sm:$0xff]
  %v3018 = vld [vmem:[%s2 + $0x498] sm:$0xff]
  %v3019 = vld [vmem:[%s2 + $0x4a0] sm:$0xff]
  %v3020 = vld [vmem:[%s2 + $0x4a8] sm:$0xff]
  %v3021 = vld [vmem:[%s2 + $0x4b0] sm:$0xff]
  %v3022 = vld [vmem:[%s2 + $0x4b8] sm:$0xff]
  %v3023 = vld [vmem:[%s2 + $0x4c0] sm:$0xff]
  %v3024 = vld [vmem:[%s2 + $0x4c8] sm:$0xff]
  %v3025 = vld [vmem:[%s2 + $0x4d0] sm:$0xff]
  %v3026 = vld [vmem:[%s2 + $0x4d8] sm:$0xff]
  %v3027 = vld [vmem:[%s2 + $0x4e0] sm:$0xff]
  %v3028 = vld [vmem:[%s2 + $0x4e8] sm:$0xff]
  %v3029 = vld [vmem:[%s2 + $0x4f0] sm:$0xff]
  %v3030 = vld [vmem:[%s2 + $0x4f8] sm:$0xff]
  %v3031 = vld [vmem:[%s2 + $0x500] sm:$0xff]
  %v3032 = vld [vmem:[%s2 + $0x508] sm:$0xff]
  %v3033 = vld [vmem:[%s2 + $0x510] sm:$0xff]
  %v3034 = vld [vmem:[%s2 + $0x518] sm:$0xff]
  %v3035 = vld [vmem:[%s2 + $0x520] sm:$0xff]
  %v3036 = vld [vmem:[%s2 + $0x528] sm:$0xff]
  %v3037 = vld [vmem:[%s2 + $0x530] sm:$0xff]
  %v3038 = vld [vmem:[%s2 + $0x538] sm:$0xff]
  %v3039 = vld [vmem:[%s2 + $0x540] sm:$0xff]
  %v3040 = vld [vmem:[%s2 + $0x548] sm:$0xff]
  %v3041 = vld [vmem:[%s2 + $0x550] sm:$0xff]
  %v3042 = vld [vmem:[%s2 + $0x558] sm:$0xff]
  %v3043 = vld [vmem:[%s2 + $0x560] sm:$0xff]
  %v3044 = vld [vmem:[%s2 + $0x568] sm:$0xff]
  %v3045 = vld [vmem:[%s2 + $0x570] sm:$0xff]
  %v3046 = vld [vmem:[%s2 + $0x578] sm:$0xff]
  %v3047 = vld [vmem:[%s2 + $0x580] sm:$0xff]
  %v3048 = vld [vmem:[%s2 + $0x588] sm:$0xff]
  %v3049 = vld [vmem:[%s2 + $0x590] sm:$0xff]
  %v3050 = vld [vmem:[%s2 + $0x598] sm:$0xff]
  %v3051 = vld [vmem:[%s2 + $0x5a0] sm:$0xff]
  %v3052 = vld [vmem:[%s2 + $0x5a8] sm:$0xff]
  %v3053 = vld [vmem:[%s2 + $0x5b0] sm:$0xff]
  %v3054 = vld [vmem:[%s2 + $0x5b8] sm:$0xff]
  %v3055 = vld [vmem:[%s2 + $0x5c0] sm:$0xff]
  %v3056 = vld [vmem:[%s2 + $0x5c8] sm:$0xff]
  %v3057 = vld [vmem:[%s2 + $0x5d0] sm:$0xff]
  %v3058 = vld [vmem:[%s2 + $0x5d8] sm:$0xff]
  %v3059 = vld [vmem:[%s2 + $0x5e0] sm:$0xff]
  %v3060 = vld [vmem:[%s2 + $0x5e8] sm:$0xff]
  %v3061 = vld [vmem:[%s2 + $0x5f0] sm:$0xff]
  %v3062 = vld [vmem:[%s2 + $0x5f8] sm:$0xff]
  %v3063 = vld [vmem:[%s2 + $0x600] sm:$0xff]
  %v3064 = vld [vmem:[%s2 + $0x608] sm:$0xff]
  %v3065 = vld [vmem:[%s2 + $0x610] sm:$0xff]
  %v3066 = vld [vmem:[%s2 + $0x618] sm:$0xff]
  %v3067 = vld [vmem:[%s2 + $0x620] sm:$0xff]
  %v3068 = vld [vmem:[%s2 + $0x628] sm:$0xff]
  %v3069 = vld [vmem:[%s2 + $0x630] sm:$0xff]
  %v3070 = vld [vmem:[%s2 + $0x638] sm:$0xff]
  %v3071 = vld [vmem:[%s2 + $0x640] sm:$0xff]
  %v3072 = vld [vmem:[%s2 + $0x648] sm:$0xff]
  %v3073 = vld [vmem:[%s2 + $0x650] sm:$0xff]
  %v3074 = vld [vmem:[%s2 + $0x658] sm:$0xff]
  %v3075 = vld [vmem:[%s2 + $0x660] sm:$0xff]
  %v3076 = vld [vmem:[%s2 + $0x668] sm:$0xff]
  %v3077 = vld [vmem:[%s2 + $0x670] sm:$0xff]
  %v3078 = vld [vmem:[%s2 + $0x678] sm:$0xff]
  %v3079 = vld [vmem:[%s2 + $0x680] sm:$0xff]
  %v3080 = vld [vmem:[%s2 + $0x688] sm:$0xff]
  %v3081 = vld [vmem:[%s2 + $0x690] sm:$0xff]
  %v3082 = vld [vmem:[%s2 + $0x698] sm:$0xff]
  %v3083 = vld [vmem:[%s2 + $0x6a0] sm:$0xff]
  %v3084 = vld [vmem:[%s2 + $0x6a8] sm:$0xff]
  %v3085 = vld [vmem:[%s2 + $0x6b0] sm:$0xff]
  %v3086 = vld [vmem:[%s2 + $0x6b8] sm:$0xff]
  %v3087 = vld [vmem:[%s2 + $0x6c0] sm:$0xff]
  %v3088 = vld [vmem:[%s2 + $0x6c8] sm:$0xff]
  %v3089 = vld [vmem:[%s2 + $0x6d0] sm:$0xff]
  %v3090 = vld [vmem:[%s2 + $0x6d8] sm:$0xff]
  %v3091 = vld [vmem:[%s2 + $0x6e0] sm:$0xff]
  %v3092 = vld [vmem:[%s2 + $0x6e8] sm:$0xff]
  %v3093 = vld [vmem:[%s2 + $0x6f0] sm:$0xff]
  %v3094 = vld [vmem:[%s2 + $0x6f8] sm:$0xff]
  %v3095 = vld [vmem:[%s2 + $0x700] sm:$0xff]
  %v3096 = vld [vmem:[%s2 + $0x708] sm:$0xff]
  %v3097 = vld [vmem:[%s2 + $0x710] sm:$0xff]
  %v3098 = vld [vmem:[%s2 + $0x718] sm:$0xff]
  %v3099 = vld [vmem:[%s2 + $0x720] sm:$0xff]
  %v3100 = vld [vmem:[%s2 + $0x728] sm:$0xff]
  %v3101 = vld [vmem:[%s2 + $0x730] sm:$0xff]
  %v3102 = vld [vmem:[%s2 + $0x738] sm:$0xff]
  %v3103 = vld [vmem:[%s2 + $0x740] sm:$0xff]
  %v3104 = vld [vmem:[%s2 + $0x748] sm:$0xff]
  %v3105 = vld [vmem:[%s2 + $0x750] sm:$0xff]
  %v3106 = vld [vmem:[%s2 + $0x758] sm:$0xff]
  %v3107 = vld [vmem:[%s2 + $0x760] sm:$0xff]
  %v3108 = vld [vmem:[%s2 + $0x768] sm:$0xff]
  %v3109 = vld [vmem:[%s2 + $0x770] sm:$0xff]
  %v3110 = vld [vmem:[%s2 + $0x778] sm:$0xff]
  %v3111 = vld [vmem:[%s2 + $0x780] sm:$0xff]
  %v3112 = vld [vmem:[%s2 + $0x788] sm:$0xff]
  %v3113 = vld [vmem:[%s2 + $0x790] sm:$0xff]
  %v3114 = vld [vmem:[%s2 + $0x798] sm:$0xff]
  %v3115 = vld [vmem:[%s2 + $0x7a0] sm:$0xff]
  %v3116 = vld [vmem:[%s2 + $0x7a8] sm:$0xff]
  %v3117 = vld [vmem:[%s2 + $0x7b0] sm:$0xff]
  %v3118 = vld [vmem:[%s2 + $0x7b8] sm:$0xff]
  %v3119 = vld [vmem:[%s2 + $0x7c0] sm:$0xff]
  %v3120 = vld [vmem:[%s2 + $0x7c8] sm:$0xff]
  %v3121 = vld [vmem:[%s2 + $0x7d0] sm:$0xff]
  %v3122 = vld [vmem:[%s2 + $0x7d8] sm:$0xff]
  %v3123 = vld [vmem:[%s2 + $0x7e0] sm:$0xff]
  %v3124 = vld [vmem:[%s2 + $0x7e8] sm:$0xff]
  %v3125 = vld [vmem:[%s2 + $0x7f0] sm:$0xff]
  %v3126 = vld [vmem:[%s2 + $0x7f8] sm:$0xff]
  %v3383 = vunpack.c.l.b16 %v2871
  %v3384 = vunpack.c.h.b16 %v2871
  %v3385 = vunpack.c.l.b16 %v2872
  %v3386 = vunpack.c.h.b16 %v2872
  %v3387 = vunpack.c.l.b16 %v2873
  %v3388 = vunpack.c.h.b16 %v2873
  %v3389 = vunpack.c.l.b16 %v2874
  %v3390 = vunpack.c.h.b16 %v2874
  %v3391 = vunpack.c.l.b16 %v2875
  %v3392 = vunpack.c.h.b16 %v2875
  %v3393 = vunpack.c.l.b16 %v2876
  %v3394 = vunpack.c.h.b16 %v2876
  %v3395 = vunpack.c.l.b16 %v2877
  %v3396 = vunpack.c.h.b16 %v2877
  %v3397 = vunpack.c.l.b16 %v2878
  %v3398 = vunpack.c.h.b16 %v2878
  %v3399 = vunpack.c.l.b16 %v2879
  %v3400 = vunpack.c.h.b16 %v2879
  %v3401 = vunpack.c.l.b16 %v2880
  %v3402 = vunpack.c.h.b16 %v2880
  %v3403 = vunpack.c.l.b16 %v2881
  %v3404 = vunpack.c.h.b16 %v2881
  %v3405 = vunpack.c.l.b16 %v2882
  %v3406 = vunpack.c.h.b16 %v2882
  %v3407 = vunpack.c.l.b16 %v2883
  %v3408 = vunpack.c.h.b16 %v2883
  %v3409 = vunpack.c.l.b16 %v2884
  %v3410 = vunpack.c.h.b16 %v2884
  %v3411 = vunpack.c.l.b16 %v2885
  %v3412 = vunpack.c.h.b16 %v2885
  %v3413 = vunpack.c.l.b16 %v2886
  %v3414 = vunpack.c.h.b16 %v2886
  %v3415 = vunpack.c.l.b16 %v2887
  %v3416 = vunpack.c.h.b16 %v2887
  %v3417 = vunpack.c.l.b16 %v2888
  %v3418 = vunpack.c.h.b16 %v2888
  %v3419 = vunpack.c.l.b16 %v2889
  %v3420 = vunpack.c.h.b16 %v2889
  %v3421 = vunpack.c.l.b16 %v2890
  %v3422 = vunpack.c.h.b16 %v2890
  %v3423 = vunpack.c.l.b16 %v2891
  %v3424 = vunpack.c.h.b16 %v2891
  %v3425 = vunpack.c.l.b16 %v2892
  %v3426 = vunpack.c.h.b16 %v2892
  %v3427 = vunpack.c.l.b16 %v2893
  %v3428 = vunpack.c.h.b16 %v2893
  %v3429 = vunpack.c.l.b16 %v2894
  %v3430 = vunpack.c.h.b16 %v2894
  %v3431 = vunpack.c.l.b16 %v2895
  %v3432 = vunpack.c.h.b16 %v2895
  %v3433 = vunpack.c.l.b16 %v2896
  %v3434 = vunpack.c.h.b16 %v2896
  %v3435 = vunpack.c.l.b16 %v2897
  %v3436 = vunpack.c.h.b16 %v2897
  %v3437 = vunpack.c.l.b16 %v2898
  %v3438 = vunpack.c.h.b16 %v2898
  %v3439 = vunpack.c.l.b16 %v2899
  %v3440 = vunpack.c.h.b16 %v2899
  %v3441 = vunpack.c.l.b16 %v2900
  %v3442 = vunpack.c.h.b16 %v2900
  %v3443 = vunpack.c.l.b16 %v2901
  %v3444 = vunpack.c.h.b16 %v2901
  %v3445 = vunpack.c.l.b16 %v2902
  %v3446 = vunpack.c.h.b16 %v2902
  %v3447 = vunpack.c.l.b16 %v2903
  %v3448 = vunpack.c.h.b16 %v2903
  %v3449 = vunpack.c.l.b16 %v2904
  %v3450 = vunpack.c.h.b16 %v2904
  %v3451 = vunpack.c.l.b16 %v2905
  %v3452 = vunpack.c.h.b16 %v2905
  %v3453 = vunpack.c.l.b16 %v2906
  %v3454 = vunpack.c.h.b16 %v2906
  %v3455 = vunpack.c.l.b16 %v2907
  %v3456 = vunpack.c.h.b16 %v2907
  %v3457 = vunpack.c.l.b16 %v2908
  %v3458 = vunpack.c.h.b16 %v2908
  %v3459 = vunpack.c.l.b16 %v2909
  %v3460 = vunpack.c.h.b16 %v2909
  %v3461 = vunpack.c.l.b16 %v2910
  %v3462 = vunpack.c.h.b16 %v2910
  %v3463 = vunpack.c.l.b16 %v2911
  %v3464 = vunpack.c.h.b16 %v2911
  %v3465 = vunpack.c.l.b16 %v2912
  %v3466 = vunpack.c.h.b16 %v2912
  %v3467 = vunpack.c.l.b16 %v2913
  %v3468 = vunpack.c.h.b16 %v2913
  %v3469 = vunpack.c.l.b16 %v2914
  %v3470 = vunpack.c.h.b16 %v2914
  %v3471 = vunpack.c.l.b16 %v2915
  %v3472 = vunpack.c.h.b16 %v2915
  %v3473 = vunpack.c.l.b16 %v2916
  %v3474 = vunpack.c.h.b16 %v2916
  %v3475 = vunpack.c.l.b16 %v2917
  %v3476 = vunpack.c.h.b16 %v2917
  %v3477 = vunpack.c.l.b16 %v2918
  %v3478 = vunpack.c.h.b16 %v2918
  %v3479 = vunpack.c.l.b16 %v2919
  %v3480 = vunpack.c.h.b16 %v2919
  %v3481 = vunpack.c.l.b16 %v2920
  %v3482 = vunpack.c.h.b16 %v2920
  %v3483 = vunpack.c.l.b16 %v2921
  %v3484 = vunpack.c.h.b16 %v2921
  %v3485 = vunpack.c.l.b16 %v2922
  %v3486 = vunpack.c.h.b16 %v2922
  %v3487 = vunpack.c.l.b16 %v2923
  %v3488 = vunpack.c.h.b16 %v2923
  %v3489 = vunpack.c.l.b16 %v2924
  %v3490 = vunpack.c.h.b16 %v2924
  %v3491 = vunpack.c.l.b16 %v2925
  %v3492 = vunpack.c.h.b16 %v2925
  %v3493 = vunpack.c.l.b16 %v2926
  %v3494 = vunpack.c.h.b16 %v2926
  %v3495 = vunpack.c.l.b16 %v2927
  %v3496 = vunpack.c.h.b16 %v2927
  %v3497 = vunpack.c.l.b16 %v2928
  %v3498 = vunpack.c.h.b16 %v2928
  %v3499 = vunpack.c.l.b16 %v2929
  %v3500 = vunpack.c.h.b16 %v2929
  %v3501 = vunpack.c.l.b16 %v2930
  %v3502 = vunpack.c.h.b16 %v2930
  %v3503 = vunpack.c.l.b16 %v2931
  %v3504 = vunpack.c.h.b16 %v2931
  %v3505 = vunpack.c.l.b16 %v2932
  %v3506 = vunpack.c.h.b16 %v2932
  %v3507 = vunpack.c.l.b16 %v2933
  %v3508 = vunpack.c.h.b16 %v2933
  %v3509 = vunpack.c.l.b16 %v2934
  %v3510 = vunpack.c.h.b16 %v2934
  %v3511 = vunpack.c.l.b16 %v2935
  %v3512 = vunpack.c.h.b16 %v2935
  %v3513 = vunpack.c.l.b16 %v2936
  %v3514 = vunpack.c.h.b16 %v2936
  %v3515 = vunpack.c.l.b16 %v2937
  %v3516 = vunpack.c.h.b16 %v2937
  %v3517 = vunpack.c.l.b16 %v2938
  %v3518 = vunpack.c.h.b16 %v2938
  %v3519 = vunpack.c.l.b16 %v2939
  %v3520 = vunpack.c.h.b16 %v2939
  %v3521 = vunpack.c.l.b16 %v2940
  %v3522 = vunpack.c.h.b16 %v2940
  %v3523 = vunpack.c.l.b16 %v2941
  %v3524 = vunpack.c.h.b16 %v2941
  %v3525 = vunpack.c.l.b16 %v2942
  %v3526 = vunpack.c.h.b16 %v2942
  %v3527 = vunpack.c.l.b16 %v2943
  %v3528 = vunpack.c.h.b16 %v2943
  %v3529 = vunpack.c.l.b16 %v2944
  %v3530 = vunpack.c.h.b16 %v2944
  %v3531 = vunpack.c.l.b16 %v2945
  %v3532 = vunpack.c.h.b16 %v2945
  %v3533 = vunpack.c.l.b16 %v2946
  %v3534 = vunpack.c.h.b16 %v2946
  %v3535 = vunpack.c.l.b16 %v2947
  %v3536 = vunpack.c.h.b16 %v2947
  %v3537 = vunpack.c.l.b16 %v2948
  %v3538 = vunpack.c.h.b16 %v2948
  %v3539 = vunpack.c.l.b16 %v2949
  %v3540 = vunpack.c.h.b16 %v2949
  %v3541 = vunpack.c.l.b16 %v2950
  %v3542 = vunpack.c.h.b16 %v2950
  %v3543 = vunpack.c.l.b16 %v2951
  %v3544 = vunpack.c.h.b16 %v2951
  %v3545 = vunpack.c.l.b16 %v2952
  %v3546 = vunpack.c.h.b16 %v2952
  %v3547 = vunpack.c.l.b16 %v2953
  %v3548 = vunpack.c.h.b16 %v2953
  %v3549 = vunpack.c.l.b16 %v2954
  %v3550 = vunpack.c.h.b16 %v2954
  %v3551 = vunpack.c.l.b16 %v2955
  %v3552 = vunpack.c.h.b16 %v2955
  %v3553 = vunpack.c.l.b16 %v2956
  %v3554 = vunpack.c.h.b16 %v2956
  %v3555 = vunpack.c.l.b16 %v2957
  %v3556 = vunpack.c.h.b16 %v2957
  %v3557 = vunpack.c.l.b16 %v2958
  %v3558 = vunpack.c.h.b16 %v2958
  %v3559 = vunpack.c.l.b16 %v2959
  %v3560 = vunpack.c.h.b16 %v2959
  %v3561 = vunpack.c.l.b16 %v2960
  %v3562 = vunpack.c.h.b16 %v2960
  %v3563 = vunpack.c.l.b16 %v2961
  %v3564 = vunpack.c.h.b16 %v2961
  %v3565 = vunpack.c.l.b16 %v2962
  %v3566 = vunpack.c.h.b16 %v2962
  %v3567 = vunpack.c.l.b16 %v2963
  %v3568 = vunpack.c.h.b16 %v2963
  %v3569 = vunpack.c.l.b16 %v2964
  %v3570 = vunpack.c.h.b16 %v2964
  %v3571 = vunpack.c.l.b16 %v2965
  %v3572 = vunpack.c.h.b16 %v2965
  %v3573 = vunpack.c.l.b16 %v2966
  %v3574 = vunpack.c.h.b16 %v2966
  %v3575 = vunpack.c.l.b16 %v2967
  %v3576 = vunpack.c.h.b16 %v2967
  %v3577 = vunpack.c.l.b16 %v2968
  %v3578 = vunpack.c.h.b16 %v2968
  %v3579 = vunpack.c.l.b16 %v2969
  %v3580 = vunpack.c.h.b16 %v2969
  %v3581 = vunpack.c.l.b16 %v2970
  %v3582 = vunpack.c.h.b16 %v2970
  %v3583 = vunpack.c.l.b16 %v2971
  %v3584 = vunpack.c.h.b16 %v2971
  %v3585 = vunpack.c.l.b16 %v2972
  %v3586 = vunpack.c.h.b16 %v2972
  %v3587 = vunpack.c.l.b16 %v2973
  %v3588 = vunpack.c.h.b16 %v2973
  %v3589 = vunpack.c.l.b16 %v2974
  %v3590 = vunpack.c.h.b16 %v2974
  %v3591 = vunpack.c.l.b16 %v2975
  %v3592 = vunpack.c.h.b16 %v2975
  %v3593 = vunpack.c.l.b16 %v2976
  %v3594 = vunpack.c.h.b16 %v2976
  %v3595 = vunpack.c.l.b16 %v2977
  %v3596 = vunpack.c.h.b16 %v2977
  %v3597 = vunpack.c.l.b16 %v2978
  %v3598 = vunpack.c.h.b16 %v2978
  %v3599 = vunpack.c.l.b16 %v2979
  %v3600 = vunpack.c.h.b16 %v2979
  %v3601 = vunpack.c.l.b16 %v2980
  %v3602 = vunpack.c.h.b16 %v2980
  %v3603 = vunpack.c.l.b16 %v2981
  %v3604 = vunpack.c.h.b16 %v2981
  %v3605 = vunpack.c.l.b16 %v2982
  %v3606 = vunpack.c.h.b16 %v2982
  %v3607 = vunpack.c.l.b16 %v2983
  %v3608 = vunpack.c.h.b16 %v2983
  %v3609 = vunpack.c.l.b16 %v2984
  %v3610 = vunpack.c.h.b16 %v2984
  %v3611 = vunpack.c.l.b16 %v2985
  %v3612 = vunpack.c.h.b16 %v2985
  %v3613 = vunpack.c.l.b16 %v2986
  %v3614 = vunpack.c.h.b16 %v2986
  %v3615 = vunpack.c.l.b16 %v2987
  %v3616 = vunpack.c.h.b16 %v2987
  %v3617 = vunpack.c.l.b16 %v2988
  %v3618 = vunpack.c.h.b16 %v2988
  %v3619 = vunpack.c.l.b16 %v2989
  %v3620 = vunpack.c.h.b16 %v2989
  %v3621 = vunpack.c.l.b16 %v2990
  %v3622 = vunpack.c.h.b16 %v2990
  %v3623 = vunpack.c.l.b16 %v2991
  %v3624 = vunpack.c.h.b16 %v2991
  %v3625 = vunpack.c.l.b16 %v2992
  %v3626 = vunpack.c.h.b16 %v2992
  %v3627 = vunpack.c.l.b16 %v2993
  %v3628 = vunpack.c.h.b16 %v2993
  %v3629 = vunpack.c.l.b16 %v2994
  %v3630 = vunpack.c.h.b16 %v2994
  %v3631 = vunpack.c.l.b16 %v2995
  %v3632 = vunpack.c.h.b16 %v2995
  %v3633 = vunpack.c.l.b16 %v2996
  %v3634 = vunpack.c.h.b16 %v2996
  %v3635 = vunpack.c.l.b16 %v2997
  %v3636 = vunpack.c.h.b16 %v2997
  %v3637 = vunpack.c.l.b16 %v2998
  %v3638 = vunpack.c.h.b16 %v2998
  %v3639 = vunpack.c.l.b16 %v2999
  %v3640 = vunpack.c.h.b16 %v2999
  %v3641 = vunpack.c.l.b16 %v3000
  %v3642 = vunpack.c.h.b16 %v3000
  %v3643 = vunpack.c.l.b16 %v3001
  %v3644 = vunpack.c.h.b16 %v3001
  %v3645 = vunpack.c.l.b16 %v3002
  %v3646 = vunpack.c.h.b16 %v3002
  %v3647 = vunpack.c.l.b16 %v3003
  %v3648 = vunpack.c.h.b16 %v3003
  %v3649 = vunpack.c.l.b16 %v3004
  %v3650 = vunpack.c.h.b16 %v3004
  %v3651 = vunpack.c.l.b16 %v3005
  %v3652 = vunpack.c.h.b16 %v3005
  %v3653 = vunpack.c.l.b16 %v3006
  %v3654 = vunpack.c.h.b16 %v3006
  %v3655 = vunpack.c.l.b16 %v3007
  %v3656 = vunpack.c.h.b16 %v3007
  %v3657 = vunpack.c.l.b16 %v3008
  %v3658 = vunpack.c.h.b16 %v3008
  %v3659 = vunpack.c.l.b16 %v3009
  %v3660 = vunpack.c.h.b16 %v3009
  %v3661 = vunpack.c.l.b16 %v3010
  %v3662 = vunpack.c.h.b16 %v3010
  %v3663 = vunpack.c.l.b16 %v3011
  %v3664 = vunpack.c.h.b16 %v3011
  %v3665 = vunpack.c.l.b16 %v3012
  %v3666 = vunpack.c.h.b16 %v3012
  %v3667 = vunpack.c.l.b16 %v3013
  %v3668 = vunpack.c.h.b16 %v3013
  %v3669 = vunpack.c.l.b16 %v3014
  %v3670 = vunpack.c.h.b16 %v3014
  %v3671 = vunpack.c.l.b16 %v3015
  %v3672 = vunpack.c.h.b16 %v3015
  %v3673 = vunpack.c.l.b16 %v3016
  %v3674 = vunpack.c.h.b16 %v3016
  %v3675 = vunpack.c.l.b16 %v3017
  %v3676 = vunpack.c.h.b16 %v3017
  %v3677 = vunpack.c.l.b16 %v3018
  %v3678 = vunpack.c.h.b16 %v3018
  %v3679 = vunpack.c.l.b16 %v3019
  %v3680 = vunpack.c.h.b16 %v3019
  %v3681 = vunpack.c.l.b16 %v3020
  %v3682 = vunpack.c.h.b16 %v3020
  %v3683 = vunpack.c.l.b16 %v3021
  %v3684 = vunpack.c.h.b16 %v3021
  %v3685 = vunpack.c.l.b16 %v3022
  %v3686 = vunpack.c.h.b16 %v3022
  %v3687 = vunpack.c.l.b16 %v3023
  %v3688 = vunpack.c.h.b16 %v3023
  %v3689 = vunpack.c.l.b16 %v3024
  %v3690 = vunpack.c.h.b16 %v3024
  %v3691 = vunpack.c.l.b16 %v3025
  %v3692 = vunpack.c.h.b16 %v3025
  %v3693 = vunpack.c.l.b16 %v3026
  %v3694 = vunpack.c.h.b16 %v3026
  %v3695 = vunpack.c.l.b16 %v3027
  %v3696 = vunpack.c.h.b16 %v3027
  %v3697 = vunpack.c.l.b16 %v3028
  %v3698 = vunpack.c.h.b16 %v3028
  %v3699 = vunpack.c.l.b16 %v3029
  %v3700 = vunpack.c.h.b16 %v3029
  %v3701 = vunpack.c.l.b16 %v3030
  %v3702 = vunpack.c.h.b16 %v3030
  %v3703 = vunpack.c.l.b16 %v3031
  %v3704 = vunpack.c.h.b16 %v3031
  %v3705 = vunpack.c.l.b16 %v3032
  %v3706 = vunpack.c.h.b16 %v3032
  %v3707 = vunpack.c.l.b16 %v3033
  %v3708 = vunpack.c.h.b16 %v3033
  %v3709 = vunpack.c.l.b16 %v3034
  %v3710 = vunpack.c.h.b16 %v3034
  %v3711 = vunpack.c.l.b16 %v3035
  %v3712 = vunpack.c.h.b16 %v3035
  %v3713 = vunpack.c.l.b16 %v3036
  %v3714 = vunpack.c.h.b16 %v3036
  %v3715 = vunpack.c.l.b16 %v3037
  %v3716 = vunpack.c.h.b16 %v3037
  %v3717 = vunpack.c.l.b16 %v3038
  %v3718 = vunpack.c.h.b16 %v3038
  %v3719 = vunpack.c.l.b16 %v3039
  %v3720 = vunpack.c.h.b16 %v3039
  %v3721 = vunpack.c.l.b16 %v3040
  %v3722 = vunpack.c.h.b16 %v3040
  %v3723 = vunpack.c.l.b16 %v3041
  %v3724 = vunpack.c.h.b16 %v3041
  %v3725 = vunpack.c.l.b16 %v3042
  %v3726 = vunpack.c.h.b16 %v3042
  %v3727 = vunpack.c.l.b16 %v3043
  %v3728 = vunpack.c.h.b16 %v3043
  %v3729 = vunpack.c.l.b16 %v3044
  %v3730 = vunpack.c.h.b16 %v3044
  %v3731 = vunpack.c.l.b16 %v3045
  %v3732 = vunpack.c.h.b16 %v3045
  %v3733 = vunpack.c.l.b16 %v3046
  %v3734 = vunpack.c.h.b16 %v3046
  %v3735 = vunpack.c.l.b16 %v3047
  %v3736 = vunpack.c.h.b16 %v3047
  %v3737 = vunpack.c.l.b16 %v3048
  %v3738 = vunpack.c.h.b16 %v3048
  %v3739 = vunpack.c.l.b16 %v3049
  %v3740 = vunpack.c.h.b16 %v3049
  %v3741 = vunpack.c.l.b16 %v3050
  %v3742 = vunpack.c.h.b16 %v3050
  %v3743 = vunpack.c.l.b16 %v3051
  %v3744 = vunpack.c.h.b16 %v3051
  %v3745 = vunpack.c.l.b16 %v3052
  %v3746 = vunpack.c.h.b16 %v3052
  %v3747 = vunpack.c.l.b16 %v3053
  %v3748 = vunpack.c.h.b16 %v3053
  %v3749 = vunpack.c.l.b16 %v3054
  %v3750 = vunpack.c.h.b16 %v3054
  %v3751 = vunpack.c.l.b16 %v3055
  %v3752 = vunpack.c.h.b16 %v3055
  %v3753 = vunpack.c.l.b16 %v3056
  %v3754 = vunpack.c.h.b16 %v3056
  %v3755 = vunpack.c.l.b16 %v3057
  %v3756 = vunpack.c.h.b16 %v3057
  %v3757 = vunpack.c.l.b16 %v3058
  %v3758 = vunpack.c.h.b16 %v3058
  %v3759 = vunpack.c.l.b16 %v3059
  %v3760 = vunpack.c.h.b16 %v3059
  %v3761 = vunpack.c.l.b16 %v3060
  %v3762 = vunpack.c.h.b16 %v3060
  %v3763 = vunpack.c.l.b16 %v3061
  %v3764 = vunpack.c.h.b16 %v3061
  %v3765 = vunpack.c.l.b16 %v3062
  %v3766 = vunpack.c.h.b16 %v3062
  %v3767 = vunpack.c.l.b16 %v3063
  %v3768 = vunpack.c.h.b16 %v3063
  %v3769 = vunpack.c.l.b16 %v3064
  %v3770 = vunpack.c.h.b16 %v3064
  %v3771 = vunpack.c.l.b16 %v3065
  %v3772 = vunpack.c.h.b16 %v3065
  %v3773 = vunpack.c.l.b16 %v3066
  %v3774 = vunpack.c.h.b16 %v3066
  %v3775 = vunpack.c.l.b16 %v3067
  %v3776 = vunpack.c.h.b16 %v3067
  %v3777 = vunpack.c.l.b16 %v3068
  %v3778 = vunpack.c.h.b16 %v3068
  %v3779 = vunpack.c.l.b16 %v3069
  %v3780 = vunpack.c.h.b16 %v3069
  %v3781 = vunpack.c.l.b16 %v3070
  %v3782 = vunpack.c.h.b16 %v3070
  %v3783 = vunpack.c.l.b16 %v3071
  %v3784 = vunpack.c.h.b16 %v3071
  %v3785 = vunpack.c.l.b16 %v3072
  %v3786 = vunpack.c.h.b16 %v3072
  %v3787 = vunpack.c.l.b16 %v3073
  %v3788 = vunpack.c.h.b16 %v3073
  %v3789 = vunpack.c.l.b16 %v3074
  %v3790 = vunpack.c.h.b16 %v3074
  %v3791 = vunpack.c.l.b16 %v3075
  %v3792 = vunpack.c.h.b16 %v3075
  %v3793 = vunpack.c.l.b16 %v3076
  %v3794 = vunpack.c.h.b16 %v3076
  %v3795 = vunpack.c.l.b16 %v3077
  %v3796 = vunpack.c.h.b16 %v3077
  %v3797 = vunpack.c.l.b16 %v3078
  %v3798 = vunpack.c.h.b16 %v3078
  %v3799 = vunpack.c.l.b16 %v3079
  %v3800 = vunpack.c.h.b16 %v3079
  %v3801 = vunpack.c.l.b16 %v3080
  %v3802 = vunpack.c.h.b16 %v3080
  %v3803 = vunpack.c.l.b16 %v3081
  %v3804 = vunpack.c.h.b16 %v3081
  %v3805 = vunpack.c.l.b16 %v3082
  %v3806 = vunpack.c.h.b16 %v3082
  %v3807 = vunpack.c.l.b16 %v3083
  %v3808 = vunpack.c.h.b16 %v3083
  %v3809 = vunpack.c.l.b16 %v3084
  %v3810 = vunpack.c.h.b16 %v3084
  %v3811 = vunpack.c.l.b16 %v3085
  %v3812 = vunpack.c.h.b16 %v3085
  %v3813 = vunpack.c.l.b16 %v3086
  %v3814 = vunpack.c.h.b16 %v3086
  %v3815 = vunpack.c.l.b16 %v3087
  %v3816 = vunpack.c.h.b16 %v3087
  %v3817 = vunpack.c.l.b16 %v3088
  %v3818 = vunpack.c.h.b16 %v3088
  %v3819 = vunpack.c.l.b16 %v3089
  %v3820 = vunpack.c.h.b16 %v3089
  %v3821 = vunpack.c.l.b16 %v3090
  %v3822 = vunpack.c.h.b16 %v3090
  %v3823 = vunpack.c.l.b16 %v3091
  %v3824 = vunpack.c.h.b16 %v3091
  %v3825 = vunpack.c.l.b16 %v3092
  %v3826 = vunpack.c.h.b16 %v3092
  %v3827 = vunpack.c.l.b16 %v3093
  %v3828 = vunpack.c.h.b16 %v3093
  %v3829 = vunpack.c.l.b16 %v3094
  %v3830 = vunpack.c.h.b16 %v3094
  %v3831 = vunpack.c.l.b16 %v3095
  %v3832 = vunpack.c.h.b16 %v3095
  %v3833 = vunpack.c.l.b16 %v3096
  %v3834 = vunpack.c.h.b16 %v3096
  %v3835 = vunpack.c.l.b16 %v3097
  %v3836 = vunpack.c.h.b16 %v3097
  %v3837 = vunpack.c.l.b16 %v3098
  %v3838 = vunpack.c.h.b16 %v3098
  %v3839 = vunpack.c.l.b16 %v3099
  %v3840 = vunpack.c.h.b16 %v3099
  %v3841 = vunpack.c.l.b16 %v3100
  %v3842 = vunpack.c.h.b16 %v3100
  %v3843 = vunpack.c.l.b16 %v3101
  %v3844 = vunpack.c.h.b16 %v3101
  %v3845 = vunpack.c.l.b16 %v3102
  %v3846 = vunpack.c.h.b16 %v3102
  %v3847 = vunpack.c.l.b16 %v3103
  %v3848 = vunpack.c.h.b16 %v3103
  %v3849 = vunpack.c.l.b16 %v3104
  %v3850 = vunpack.c.h.b16 %v3104
  %v3851 = vunpack.c.l.b16 %v3105
  %v3852 = vunpack.c.h.b16 %v3105
  %v3853 = vunpack.c.l.b16 %v3106
  %v3854 = vunpack.c.h.b16 %v3106
  %v3855 = vunpack.c.l.b16 %v3107
  %v3856 = vunpack.c.h.b16 %v3107
  %v3857 = vunpack.c.l.b16 %v3108
  %v3858 = vunpack.c.h.b16 %v3108
  %v3859 = vunpack.c.l.b16 %v3109
  %v3860 = vunpack.c.h.b16 %v3109
  %v3861 = vunpack.c.l.b16 %v3110
  %v3862 = vunpack.c.h.b16 %v3110
  %v3863 = vunpack.c.l.b16 %v3111
  %v3864 = vunpack.c.h.b16 %v3111
  %v3865 = vunpack.c.l.b16 %v3112
  %v3866 = vunpack.c.h.b16 %v3112
  %v3867 = vunpack.c.l.b16 %v3113
  %v3868 = vunpack.c.h.b16 %v3113
  %v3869 = vunpack.c.l.b16 %v3114
  %v3870 = vunpack.c.h.b16 %v3114
  %v3871 = vunpack.c.l.b16 %v3115
  %v3872 = vunpack.c.h.b16 %v3115
  %v3873 = vunpack.c.l.b16 %v3116
  %v3874 = vunpack.c.h.b16 %v3116
  %v3875 = vunpack.c.l.b16 %v3117
  %v3876 = vunpack.c.h.b16 %v3117
  %v3877 = vunpack.c.l.b16 %v3118
  %v3878 = vunpack.c.h.b16 %v3118
  %v3879 = vunpack.c.l.b16 %v3119
  %v3880 = vunpack.c.h.b16 %v3119
  %v3881 = vunpack.c.l.b16 %v3120
  %v3882 = vunpack.c.h.b16 %v3120
  %v3883 = vunpack.c.l.b16 %v3121
  %v3884 = vunpack.c.h.b16 %v3121
  %v3885 = vunpack.c.l.b16 %v3122
  %v3886 = vunpack.c.h.b16 %v3122
  %v3887 = vunpack.c.l.b16 %v3123
  %v3888 = vunpack.c.h.b16 %v3123
  %v3889 = vunpack.c.l.b16 %v3124
  %v3890 = vunpack.c.h.b16 %v3124
  %v3891 = vunpack.c.l.b16 %v3125
  %v3892 = vunpack.c.h.b16 %v3125
  %v3893 = vunpack.c.l.b16 %v3126
  %v3894 = vunpack.c.h.b16 %v3126
  %v3895 = vpack.c.b16 %v3387, %v3383
  %v3896 = vpack.c.b16 %v3388, %v3384
  %v3897 = vpack.c.b16 %v3389, %v3385
  %v3898 = vpack.c.b16 %v3390, %v3386
  %v3899 = vpack.c.b16 %v3395, %v3391
  %v3900 = vpack.c.b16 %v3396, %v3392
  %v3901 = vpack.c.b16 %v3397, %v3393
  %v3902 = vpack.c.b16 %v3398, %v3394
  %v3903 = vpack.c.b16 %v3403, %v3399
  %v3904 = vpack.c.b16 %v3404, %v3400
  %v3905 = vpack.c.b16 %v3405, %v3401
  %v3906 = vpack.c.b16 %v3406, %v3402
  %v3907 = vpack.c.b16 %v3411, %v3407
  %v3908 = vpack.c.b16 %v3412, %v3408
  %v3909 = vpack.c.b16 %v3413, %v3409
  %v3910 = vpack.c.b16 %v3414, %v3410
  %v3911 = vpack.c.b16 %v3419, %v3415
  %v3912 = vpack.c.b16 %v3420, %v3416
  %v3913 = vpack.c.b16 %v3421, %v3417
  %v3914 = vpack.c.b16 %v3422, %v3418
  %v3915 = vpack.c.b16 %v3427, %v3423
  %v3916 = vpack.c.b16 %v3428, %v3424
  %v3917 = vpack.c.b16 %v3429, %v3425
  %v3918 = vpack.c.b16 %v3430, %v3426
  %v3919 = vpack.c.b16 %v3435, %v3431
  %v3920 = vpack.c.b16 %v3436, %v3432
  %v3921 = vpack.c.b16 %v3437, %v3433
  %v3922 = vpack.c.b16 %v3438, %v3434
  %v3923 = vpack.c.b16 %v3443, %v3439
  %v3924 = vpack.c.b16 %v3444, %v3440
  %v3925 = vpack.c.b16 %v3445, %v3441
  %v3926 = vpack.c.b16 %v3446, %v3442
  %v3927 = vpack.c.b16 %v3451, %v3447
  %v3928 = vpack.c.b16 %v3452, %v3448
  %v3929 = vpack.c.b16 %v3453, %v3449
  %v3930 = vpack.c.b16 %v3454, %v3450
  %v3931 = vpack.c.b16 %v3459, %v3455
  %v3932 = vpack.c.b16 %v3460, %v3456
  %v3933 = vpack.c.b16 %v3461, %v3457
  %v3934 = vpack.c.b16 %v3462, %v3458
  %v3935 = vpack.c.b16 %v3467, %v3463
  %v3936 = vpack.c.b16 %v3468, %v3464
  %v3937 = vpack.c.b16 %v3469, %v3465
  %v3938 = vpack.c.b16 %v3470, %v3466
  %v3939 = vpack.c.b16 %v3475, %v3471
  %v3940 = vpack.c.b16 %v3476, %v3472
  %v3941 = vpack.c.b16 %v3477, %v3473
  %v3942 = vpack.c.b16 %v3478, %v3474
  %v3943 = vpack.c.b16 %v3483, %v3479
  %v3944 = vpack.c.b16 %v3484, %v3480
  %v3945 = vpack.c.b16 %v3485, %v3481
  %v3946 = vpack.c.b16 %v3486, %v3482
  %v3947 = vpack.c.b16 %v3491, %v3487
  %v3948 = vpack.c.b16 %v3492, %v3488
  %v3949 = vpack.c.b16 %v3493, %v3489
  %v3950 = vpack.c.b16 %v3494, %v3490
  %v3951 = vpack.c.b16 %v3499, %v3495
  %v3952 = vpack.c.b16 %v3500, %v3496
  %v3953 = vpack.c.b16 %v3501, %v3497
  %v3954 = vpack.c.b16 %v3502, %v3498
  %v3955 = vpack.c.b16 %v3507, %v3503
  %v3956 = vpack.c.b16 %v3508, %v3504
  %v3957 = vpack.c.b16 %v3509, %v3505
  %v3958 = vpack.c.b16 %v3510, %v3506
  %v3959 = vpack.c.b16 %v3515, %v3511
  %v3960 = vpack.c.b16 %v3516, %v3512
  %v3961 = vpack.c.b16 %v3517, %v3513
  %v3962 = vpack.c.b16 %v3518, %v3514
  %v3963 = vpack.c.b16 %v3523, %v3519
  %v3964 = vpack.c.b16 %v3524, %v3520
  %v3965 = vpack.c.b16 %v3525, %v3521
  %v3966 = vpack.c.b16 %v3526, %v3522
  %v3967 = vpack.c.b16 %v3531, %v3527
  %v3968 = vpack.c.b16 %v3532, %v3528
  %v3969 = vpack.c.b16 %v3533, %v3529
  %v3970 = vpack.c.b16 %v3534, %v3530
  %v3971 = vpack.c.b16 %v3539, %v3535
  %v3972 = vpack.c.b16 %v3540, %v3536
  %v3973 = vpack.c.b16 %v3541, %v3537
  %v3974 = vpack.c.b16 %v3542, %v3538
  %v3975 = vpack.c.b16 %v3547, %v3543
  %v3976 = vpack.c.b16 %v3548, %v3544
  %v3977 = vpack.c.b16 %v3549, %v3545
  %v3978 = vpack.c.b16 %v3550, %v3546
  %v3979 = vpack.c.b16 %v3555, %v3551
  %v3980 = vpack.c.b16 %v3556, %v3552
  %v3981 = vpack.c.b16 %v3557, %v3553
  %v3982 = vpack.c.b16 %v3558, %v3554
  %v3983 = vpack.c.b16 %v3563, %v3559
  %v3984 = vpack.c.b16 %v3564, %v3560
  %v3985 = vpack.c.b16 %v3565, %v3561
  %v3986 = vpack.c.b16 %v3566, %v3562
  %v3987 = vpack.c.b16 %v3571, %v3567
  %v3988 = vpack.c.b16 %v3572, %v3568
  %v3989 = vpack.c.b16 %v3573, %v3569
  %v3990 = vpack.c.b16 %v3574, %v3570
  %v3991 = vpack.c.b16 %v3579, %v3575
  %v3992 = vpack.c.b16 %v3580, %v3576
  %v3993 = vpack.c.b16 %v3581, %v3577
  %v3994 = vpack.c.b16 %v3582, %v3578
  %v3995 = vpack.c.b16 %v3587, %v3583
  %v3996 = vpack.c.b16 %v3588, %v3584
  %v3997 = vpack.c.b16 %v3589, %v3585
  %v3998 = vpack.c.b16 %v3590, %v3586
  %v3999 = vpack.c.b16 %v3595, %v3591
  %v4000 = vpack.c.b16 %v3596, %v3592
  %v4001 = vpack.c.b16 %v3597, %v3593
  %v4002 = vpack.c.b16 %v3598, %v3594
  %v4003 = vpack.c.b16 %v3603, %v3599
  %v4004 = vpack.c.b16 %v3604, %v3600
  %v4005 = vpack.c.b16 %v3605, %v3601
  %v4006 = vpack.c.b16 %v3606, %v3602
  %v4007 = vpack.c.b16 %v3611, %v3607
  %v4008 = vpack.c.b16 %v3612, %v3608
  %v4009 = vpack.c.b16 %v3613, %v3609
  %v4010 = vpack.c.b16 %v3614, %v3610
  %v4011 = vpack.c.b16 %v3619, %v3615
  %v4012 = vpack.c.b16 %v3620, %v3616
  %v4013 = vpack.c.b16 %v3621, %v3617
  %v4014 = vpack.c.b16 %v3622, %v3618
  %v4015 = vpack.c.b16 %v3627, %v3623
  %v4016 = vpack.c.b16 %v3628, %v3624
  %v4017 = vpack.c.b16 %v3629, %v3625
  %v4018 = vpack.c.b16 %v3630, %v3626
  %v4019 = vpack.c.b16 %v3635, %v3631
  %v4020 = vpack.c.b16 %v3636, %v3632
  %v4021 = vpack.c.b16 %v3637, %v3633
  %v4022 = vpack.c.b16 %v3638, %v3634
  %v4023 = vpack.c.b16 %v3643, %v3639
  %v4024 = vpack.c.b16 %v3644, %v3640
  %v4025 = vpack.c.b16 %v3645, %v3641
  %v4026 = vpack.c.b16 %v3646, %v3642
  %v4027 = vpack.c.b16 %v3651, %v3647
  %v4028 = vpack.c.b16 %v3652, %v3648
  %v4029 = vpack.c.b16 %v3653, %v3649
  %v4030 = vpack.c.b16 %v3654, %v3650
  %v4031 = vpack.c.b16 %v3659, %v3655
  %v4032 = vpack.c.b16 %v3660, %v3656
  %v4033 = vpack.c.b16 %v3661, %v3657
  %v4034 = vpack.c.b16 %v3662, %v3658
  %v4035 = vpack.c.b16 %v3667, %v3663
  %v4036 = vpack.c.b16 %v3668, %v3664
  %v4037 = vpack.c.b16 %v3669, %v3665
  %v4038 = vpack.c.b16 %v3670, %v3666
  %v4039 = vpack.c.b16 %v3675, %v3671
  %v4040 = vpack.c.b16 %v3676, %v3672
  %v4041 = vpack.c.b16 %v3677, %v3673
  %v4042 = vpack.c.b16 %v3678, %v3674
  %v4043 = vpack.c.b16 %v3683, %v3679
  %v4044 = vpack.c.b16 %v3684, %v3680
  %v4045 = vpack.c.b16 %v3685, %v3681
  %v4046 = vpack.c.b16 %v3686, %v3682
  %v4047 = vpack.c.b16 %v3691, %v3687
  %v4048 = vpack.c.b16 %v3692, %v3688
  %v4049 = vpack.c.b16 %v3693, %v3689
  %v4050 = vpack.c.b16 %v3694, %v3690
  %v4051 = vpack.c.b16 %v3699, %v3695
  %v4052 = vpack.c.b16 %v3700, %v3696
  %v4053 = vpack.c.b16 %v3701, %v3697
  %v4054 = vpack.c.b16 %v3702, %v3698
  %v4055 = vpack.c.b16 %v3707, %v3703
  %v4056 = vpack.c.b16 %v3708, %v3704
  %v4057 = vpack.c.b16 %v3709, %v3705
  %v4058 = vpack.c.b16 %v3710, %v3706
  %v4059 = vpack.c.b16 %v3715, %v3711
  %v4060 = vpack.c.b16 %v3716, %v3712
  %v4061 = vpack.c.b16 %v3717, %v3713
  %v4062 = vpack.c.b16 %v3718, %v3714
  %v4063 = vpack.c.b16 %v3723, %v3719
  %v4064 = vpack.c.b16 %v3724, %v3720
  %v4065 = vpack.c.b16 %v3725, %v3721
  %v4066 = vpack.c.b16 %v3726, %v3722
  %v4067 = vpack.c.b16 %v3731, %v3727
  %v4068 = vpack.c.b16 %v3732, %v3728
  %v4069 = vpack.c.b16 %v3733, %v3729
  %v4070 = vpack.c.b16 %v3734, %v3730
  %v4071 = vpack.c.b16 %v3739, %v3735
  %v4072 = vpack.c.b16 %v3740, %v3736
  %v4073 = vpack.c.b16 %v3741, %v3737
  %v4074 = vpack.c.b16 %v3742, %v3738
  %v4075 = vpack.c.b16 %v3747, %v3743
  %v4076 = vpack.c.b16 %v3748, %v3744
  %v4077 = vpack.c.b16 %v3749, %v3745
  %v4078 = vpack.c.b16 %v3750, %v3746
  %v4079 = vpack.c.b16 %v3755, %v3751
  %v4080 = vpack.c.b16 %v3756, %v3752
  %v4081 = vpack.c.b16 %v3757, %v3753
  %v4082 = vpack.c.b16 %v3758, %v3754
  %v4083 = vpack.c.b16 %v3763, %v3759
  %v4084 = vpack.c.b16 %v3764, %v3760
  %v4085 = vpack.c.b16 %v3765, %v3761
  %v4086 = vpack.c.b16 %v3766, %v3762
  %v4087 = vpack.c.b16 %v3771, %v3767
  %v4088 = vpack.c.b16 %v3772, %v3768
  %v4089 = vpack.c.b16 %v3773, %v3769
  %v4090 = vpack.c.b16 %v3774, %v3770
  %v4091 = vpack.c.b16 %v3779, %v3775
  %v4092 = vpack.c.b16 %v3780, %v3776
  %v4093 = vpack.c.b16 %v3781, %v3777
  %v4094 = vpack.c.b16 %v3782, %v3778
  %v4095 = vpack.c.b16 %v3787, %v3783
  %v4096 = vpack.c.b16 %v3788, %v3784
  %v4097 = vpack.c.b16 %v3789, %v3785
  %v4098 = vpack.c.b16 %v3790, %v3786
  %v4099 = vpack.c.b16 %v3795, %v3791
  %v4100 = vpack.c.b16 %v3796, %v3792
  %v4101 = vpack.c.b16 %v3797, %v3793
  %v4102 = vpack.c.b16 %v3798, %v3794
  %v4103 = vpack.c.b16 %v3803, %v3799
  %v4104 = vpack.c.b16 %v3804, %v3800
  %v4105 = vpack.c.b16 %v3805, %v3801
  %v4106 = vpack.c.b16 %v3806, %v3802
  %v4107 = vpack.c.b16 %v3811, %v3807
  %v4108 = vpack.c.b16 %v3812, %v3808
  %v4109 = vpack.c.b16 %v3813, %v3809
  %v4110 = vpack.c.b16 %v3814, %v3810
  %v4111 = vpack.c.b16 %v3819, %v3815
  %v4112 = vpack.c.b16 %v3820, %v3816
  %v4113 = vpack.c.b16 %v3821, %v3817
  %v4114 = vpack.c.b16 %v3822, %v3818
  %v4115 = vpack.c.b16 %v3827, %v3823
  %v4116 = vpack.c.b16 %v3828, %v3824
  %v4117 = vpack.c.b16 %v3829, %v3825
  %v4118 = vpack.c.b16 %v3830, %v3826
  %v4119 = vpack.c.b16 %v3835, %v3831
  %v4120 = vpack.c.b16 %v3836, %v3832
  %v4121 = vpack.c.b16 %v3837, %v3833
  %v4122 = vpack.c.b16 %v3838, %v3834
  %v4123 = vpack.c.b16 %v3843, %v3839
  %v4124 = vpack.c.b16 %v3844, %v3840
  %v4125 = vpack.c.b16 %v3845, %v3841
  %v4126 = vpack.c.b16 %v3846, %v3842
  %v4127 = vpack.c.b16 %v3851, %v3847
  %v4128 = vpack.c.b16 %v3852, %v3848
  %v4129 = vpack.c.b16 %v3853, %v3849
  %v4130 = vpack.c.b16 %v3854, %v3850
  %v4131 = vpack.c.b16 %v3859, %v3855
  %v4132 = vpack.c.b16 %v3860, %v3856
  %v4133 = vpack.c.b16 %v3861, %v3857
  %v4134 = vpack.c.b16 %v3862, %v3858
  %v4135 = vpack.c.b16 %v3867, %v3863
  %v4136 = vpack.c.b16 %v3868, %v3864
  %v4137 = vpack.c.b16 %v3869, %v3865
  %v4138 = vpack.c.b16 %v3870, %v3866
  %v4139 = vpack.c.b16 %v3875, %v3871
  %v4140 = vpack.c.b16 %v3876, %v3872
  %v4141 = vpack.c.b16 %v3877, %v3873
  %v4142 = vpack.c.b16 %v3878, %v3874
  %v4143 = vpack.c.b16 %v3883, %v3879
  %v4144 = vpack.c.b16 %v3884, %v3880
  %v4145 = vpack.c.b16 %v3885, %v3881
  %v4146 = vpack.c.b16 %v3886, %v3882
  %v4147 = vpack.c.b16 %v3891, %v3887
  %v4148 = vpack.c.b16 %v3892, %v3888
  %v4149 = vpack.c.b16 %v3893, %v3889
  %v4150 = vpack.c.b16 %v3894, %v3890
  %4407 = vmatprep.subr.bf16.mxu0 %v3924
  %4408 = vmatpush1.bf16.msra.mxu0 %v3923
  %4409 = vmatprep.subr.bf16.mxu0 %v3920
  %4410 = vmatpush1.bf16.msra.mxu0 %v3919
  %4411 = vmatprep.subr.bf16.mxu0 %v3916
  %4412 = vmatpush1.bf16.msra.mxu0 %v3915
  %4413 = vmatprep.subr.bf16.mxu0 %v3912
  %4414 = vmatpush1.bf16.msra.mxu0 %v3911
  %4415 = vmatprep.subr.bf16.mxu0 %v3908
  %4416 = vmatpush1.bf16.msra.mxu0 %v3907
  %4417 = vmatprep.subr.bf16.mxu0 %v3904
  %4418 = vmatpush1.bf16.msra.mxu0 %v3903
  %4419 = vmatprep.subr.bf16.mxu0 %v3900
  %4420 = vmatpush1.bf16.msra.mxu0 %v3899
  %4421 = vmatprep.subr.bf16.mxu0 %v3896
  %4422 = vmatpush1.bf16.msra.mxu0 %v3895
  %4423 = vmatprep.subr.bf16.mxu0 %v3956
  %4424 = vmatpush2.bf16.msra.mxu0 %v3955
  %4425 = vmatprep.subr.bf16.mxu0 %v3952
  %4426 = vmatpush2.bf16.msra.mxu0 %v3951
  %4427 = vmatprep.subr.bf16.mxu0 %v3948
  %4428 = vmatpush2.bf16.msra.mxu0 %v3947
  %4429 = vmatprep.subr.bf16.mxu0 %v3944
  %4430 = vmatpush2.bf16.msra.mxu0 %v3943
  %4431 = vmatprep.subr.bf16.mxu0 %v3940
  %4432 = vmatpush2.bf16.msra.mxu0 %v3939
  %4433 = vmatprep.subr.bf16.mxu0 %v3936
  %4434 = vmatpush2.bf16.msra.mxu0 %v3935
  %4435 = vmatprep.subr.bf16.mxu0 %v3932
  %4436 = vmatpush2.bf16.msra.mxu0 %v3931
  %4437 = vmatprep.subr.bf16.mxu0 %v3928
  %4438 = vmatpush2.bf16.msra.mxu0 %v3927
  %4439 = vmatprep.mubr.bf16.mxu0 %v2864
  %4440 = vmatmul.mubr.bf16.gmra.mxu0 %v2863
  %v4441 = vpop.f32.mrf.mxu0
  %v4442 = vadd.f32 0.0, %v4441
  %v4443 = vpop.f32.mrf.mxu0
  %v4444 = vadd.f32 0.0, %v4443
  %v4445 = vpop.f32.mrf.mxu0
  %v4446 = vpop.f32.mrf.mxu0
  %4447 = vdwg.mxu0
  %4448 = vmatprep.subr.bf16.mxu0 %v3988
  %4449 = vmatpush1.bf16.msra.mxu0 %v3987
  %4450 = vmatprep.subr.bf16.mxu0 %v3984
  %4451 = vmatpush1.bf16.msra.mxu0 %v3983
  %4452 = vmatprep.subr.bf16.mxu0 %v3980
  %4453 = vmatpush1.bf16.msra.mxu0 %v3979
  %4454 = vmatprep.subr.bf16.mxu0 %v3976
  %4455 = vmatpush1.bf16.msra.mxu0 %v3975
  %4456 = vmatprep.subr.bf16.mxu0 %v3972
  %4457 = vmatpush1.bf16.msra.mxu0 %v3971
  %4458 = vmatprep.subr.bf16.mxu0 %v3968
  %4459 = vmatpush1.bf16.msra.mxu0 %v3967
  %4460 = vmatprep.subr.bf16.mxu0 %v3964
  %4461 = vmatpush1.bf16.msra.mxu0 %v3963
  %4462 = vmatprep.subr.bf16.mxu0 %v3960
  %4463 = vmatpush1.bf16.msra.mxu0 %v3959
  %4464 = vmatprep.subr.bf16.mxu0 %v4020
  %4465 = vmatpush2.bf16.msra.mxu0 %v4019
  %4466 = vmatprep.subr.bf16.mxu0 %v4016
  %4467 = vmatpush2.bf16.msra.mxu0 %v4015
  %4468 = vmatprep.subr.bf16.mxu0 %v4012
  %4469 = vmatpush2.bf16.msra.mxu0 %v4011
  %4470 = vmatprep.subr.bf16.mxu0 %v4008
  %4471 = vmatpush2.bf16.msra.mxu0 %v4007
  %4472 = vmatprep.subr.bf16.mxu0 %v4004
  %4473 = vmatpush2.bf16.msra.mxu0 %v4003
  %4474 = vmatprep.subr.bf16.mxu0 %v4000
  %4475 = vmatpush2.bf16.msra.mxu0 %v3999
  %4476 = vmatprep.subr.bf16.mxu0 %v3996
  %4477 = vmatpush2.bf16.msra.mxu0 %v3995
  %4478 = vmatprep.subr.bf16.mxu0 %v3992
  %4479 = vmatpush2.bf16.msra.mxu0 %v3991
  %4480 = vmatprep.mubr.bf16.mxu0 %v2866
  %4481 = vmatmul.mubr.bf16.gmra.mxu0 %v2865
  %v4482 = vpop.f32.mrf.mxu0
  %v4483 = vadd.f32 %v4442, %v4482
  %v4484 = vpop.f32.mrf.mxu0
  %v4485 = vadd.f32 %v4444, %v4484
  %v4486 = vpop.f32.mrf.mxu0
  %v4487 = vpop.f32.mrf.mxu0
  %4488 = vdwg.mxu0
  %4489 = vmatprep.subr.bf16.mxu0 %v4052
  %4490 = vmatpush1.bf16.msra.mxu0 %v4051
  %4491 = vmatprep.subr.bf16.mxu0 %v4048
  %4492 = vmatpush1.bf16.msra.mxu0 %v4047
  %4493 = vmatprep.subr.bf16.mxu0 %v4044
  %4494 = vmatpush1.bf16.msra.mxu0 %v4043
  %4495 = vmatprep.subr.bf16.mxu0 %v4040
  %4496 = vmatpush1.bf16.msra.mxu0 %v4039
  %4497 = vmatprep.subr.bf16.mxu0 %v4036
  %4498 = vmatpush1.bf16.msra.mxu0 %v4035
  %4499 = vmatprep.subr.bf16.mxu0 %v4032
  %4500 = vmatpush1.bf16.msra.mxu0 %v4031
  %4501 = vmatprep.subr.bf16.mxu0 %v4028
  %4502 = vmatpush1.bf16.msra.mxu0 %v4027
  %4503 = vmatprep.subr.bf16.mxu0 %v4024
  %4504 = vmatpush1.bf16.msra.mxu0 %v4023
  %4505 = vmatprep.subr.bf16.mxu0 %v4084
  %4506 = vmatpush2.bf16.msra.mxu0 %v4083
  %4507 = vmatprep.subr.bf16.mxu0 %v4080
  %4508 = vmatpush2.bf16.msra.mxu0 %v4079
  %4509 = vmatprep.subr.bf16.mxu0 %v4076
  %4510 = vmatpush2.bf16.msra.mxu0 %v4075
  %4511 = vmatprep.subr.bf16.mxu0 %v4072
  %4512 = vmatpush2.bf16.msra.mxu0 %v4071
  %4513 = vmatprep.subr.bf16.mxu0 %v4068
  %4514 = vmatpush2.bf16.msra.mxu0 %v4067
  %4515 = vmatprep.subr.bf16.mxu0 %v4064
  %4516 = vmatpush2.bf16.msra.mxu0 %v4063
  %4517 = vmatprep.subr.bf16.mxu0 %v4060
  %4518 = vmatpush2.bf16.msra.mxu0 %v4059
  %4519 = vmatprep.subr.bf16.mxu0 %v4056
  %4520 = vmatpush2.bf16.msra.mxu0 %v4055
  %4521 = vmatprep.mubr.bf16.mxu0 %v2868
  %4522 = vmatmul.mubr.bf16.gmra.mxu0 %v2867
  %v4523 = vpop.f32.mrf.mxu0
  %v4524 = vadd.f32 %v4483, %v4523
  %v4525 = vpop.f32.mrf.mxu0
  %v4526 = vadd.f32 %v4485, %v4525
  %v4527 = vpop.f32.mrf.mxu0
  %v4528 = vpop.f32.mrf.mxu0
  %4529 = vdwg.mxu0
  %4530 = vmatprep.subr.bf16.mxu0 %v4116
  %4531 = vmatpush1.bf16.msra.mxu0 %v4115
  %4532 = vmatprep.subr.bf16.mxu0 %v4112
  %4533 = vmatpush1.bf16.msra.mxu0 %v4111
  %4534 = vmatprep.subr.bf16.mxu0 %v4108
  %4535 = vmatpush1.bf16.msra.mxu0 %v4107
  %4536 = vmatprep.subr.bf16.mxu0 %v4104
  %4537 = vmatpush1.bf16.msra.mxu0 %v4103
  %4538 = vmatprep.subr.bf16.mxu0 %v4100
  %4539 = vmatpush1.bf16.msra.mxu0 %v4099
  %4540 = vmatprep.subr.bf16.mxu0 %v4096
  %4541 = vmatpush1.bf16.msra.mxu0 %v4095
  %4542 = vmatprep.subr.bf16.mxu0 %v4092
  %4543 = vmatpush1.bf16.msra.mxu0 %v4091
  %4544 = vmatprep.subr.bf16.mxu0 %v4088
  %4545 = vmatpush1.bf16.msra.mxu0 %v4087
  %4546 = vmatprep.subr.bf16.mxu0 %v4148
  %4547 = vmatpush2.bf16.msra.mxu0 %v4147
  %4548 = vmatprep.subr.bf16.mxu0 %v4144
  %4549 = vmatpush2.bf16.msra.mxu0 %v4143
  %4550 = vmatprep.subr.bf16.mxu0 %v4140
  %4551 = vmatpush2.bf16.msra.mxu0 %v4139
  %4552 = vmatprep.subr.bf16.mxu0 %v4136
  %4553 = vmatpush2.bf16.msra.mxu0 %v4135
  %4554 = vmatprep.subr.bf16.mxu0 %v4132
  %4555 = vmatpush2.bf16.msra.mxu0 %v4131
  %4556 = vmatprep.subr.bf16.mxu0 %v4128
  %4557 = vmatpush2.bf16.msra.mxu0 %v4127
  %4558 = vmatprep.subr.bf16.mxu0 %v4124
  %4559 = vmatpush2.bf16.msra.mxu0 %v4123
  %4560 = vmatprep.subr.bf16.mxu0 %v4120
  %4561 = vmatpush2.bf16.msra.mxu0 %v4119
  %4562 = vmatprep.mubr.bf16.mxu0 %v2870
  %4563 = vmatmul.mubr.bf16.gmra.mxu0 %v2869
  %v4564 = vpop.f32.mrf.mxu0
  %v4565 = vadd.f32 %v4524, %v4564
  %v4566 = vpop.f32.mrf.mxu0
  %v4567 = vadd.f32 %v4526, %v4566
  %v4568 = vpop.f32.mrf.mxu0
  %v4569 = vpop.f32.mrf.mxu0
  %4570 = vdwg.mxu0
  %4571 = vmatprep.subr.bf16.mxu0 %v3926
  %4572 = vmatpush1.bf16.msra.mxu0 %v3925
  %4573 = vmatprep.subr.bf16.mxu0 %v3922
  %4574 = vmatpush1.bf16.msra.mxu0 %v3921
  %4575 = vmatprep.subr.bf16.mxu0 %v3918
  %4576 = vmatpush1.bf16.msra.mxu0 %v3917
  %4577 = vmatprep.subr.bf16.mxu0 %v3914
  %4578 = vmatpush1.bf16.msra.mxu0 %v3913
  %4579 = vmatprep.subr.bf16.mxu0 %v3910
  %4580 = vmatpush1.bf16.msra.mxu0 %v3909
  %4581 = vmatprep.subr.bf16.mxu0 %v3906
  %4582 = vmatpush1.bf16.msra.mxu0 %v3905
  %4583 = vmatprep.subr.bf16.mxu0 %v3902
  %4584 = vmatpush1.bf16.msra.mxu0 %v3901
  %4585 = vmatprep.subr.bf16.mxu0 %v3898
  %4586 = vmatpush1.bf16.msra.mxu0 %v3897
  %4587 = vmatprep.subr.bf16.mxu0 %v3958
  %4588 = vmatpush2.bf16.msra.mxu0 %v3957
  %4589 = vmatprep.subr.bf16.mxu0 %v3954
  %4590 = vmatpush2.bf16.msra.mxu0 %v3953
  %4591 = vmatprep.subr.bf16.mxu0 %v3950
  %4592 = vmatpush2.bf16.msra.mxu0 %v3949
  %4593 = vmatprep.subr.bf16.mxu0 %v3946
  %4594 = vmatpush2.bf16.msra.mxu0 %v3945
  %4595 = vmatprep.subr.bf16.mxu0 %v3942
  %4596 = vmatpush2.bf16.msra.mxu0 %v3941
  %4597 = vmatprep.subr.bf16.mxu0 %v3938
  %4598 = vmatpush2.bf16.msra.mxu0 %v3937
  %4599 = vmatprep.subr.bf16.mxu0 %v3934
  %4600 = vmatpush2.bf16.msra.mxu0 %v3933
  %4601 = vmatprep.subr.bf16.mxu0 %v3930
  %4602 = vmatpush2.bf16.msra.mxu0 %v3929
  %4603 = vmatprep.mubr.bf16.mxu0 %v2864
  %4604 = vmatmul.mubr.bf16.gmra.mxu0 %v2863
  %v4605 = vpop.f32.mrf.mxu0
  %v4606 = vadd.f32 0.0, %v4605
  %v4607 = vpop.f32.mrf.mxu0
  %v4608 = vadd.f32 0.0, %v4607
  %v4609 = vpop.f32.mrf.mxu0
  %v4610 = vpop.f32.mrf.mxu0
  %4611 = vdwg.mxu0
  %4612 = vmatprep.subr.bf16.mxu0 %v3990
  %4613 = vmatpush1.bf16.msra.mxu0 %v3989
  %4614 = vmatprep.subr.bf16.mxu0 %v3986
  %4615 = vmatpush1.bf16.msra.mxu0 %v3985
  %4616 = vmatprep.subr.bf16.mxu0 %v3982
  %4617 = vmatpush1.bf16.msra.mxu0 %v3981
  %4618 = vmatprep.subr.bf16.mxu0 %v3978
  %4619 = vmatpush1.bf16.msra.mxu0 %v3977
  %4620 = vmatprep.subr.bf16.mxu0 %v3974
  %4621 = vmatpush1.bf16.msra.mxu0 %v3973
  %4622 = vmatprep.subr.bf16.mxu0 %v3970
  %4623 = vmatpush1.bf16.msra.mxu0 %v3969
  %4624 = vmatprep.subr.bf16.mxu0 %v3966
  %4625 = vmatpush1.bf16.msra.mxu0 %v3965
  %4626 = vmatprep.subr.bf16.mxu0 %v3962
  %4627 = vmatpush1.bf16.msra.mxu0 %v3961
  %4628 = vmatprep.subr.bf16.mxu0 %v4022
  %4629 = vmatpush2.bf16.msra.mxu0 %v4021
  %4630 = vmatprep.subr.bf16.mxu0 %v4018
  %4631 = vmatpush2.bf16.msra.mxu0 %v4017
  %4632 = vmatprep.subr.bf16.mxu0 %v4014
  %4633 = vmatpush2.bf16.msra.mxu0 %v4013
  %4634 = vmatprep.subr.bf16.mxu0 %v4010
  %4635 = vmatpush2.bf16.msra.mxu0 %v4009
  %4636 = vmatprep.subr.bf16.mxu0 %v4006
  %4637 = vmatpush2.bf16.msra.mxu0 %v4005
  %4638 = vmatprep.subr.bf16.mxu0 %v4002
  %4639 = vmatpush2.bf16.msra.mxu0 %v4001
  %4640 = vmatprep.subr.bf16.mxu0 %v3998
  %4641 = vmatpush2.bf16.msra.mxu0 %v3997
  %4642 = vmatprep.subr.bf16.mxu0 %v3994
  %4643 = vmatpush2.bf16.msra.mxu0 %v3993
  %4644 = vmatprep.mubr.bf16.mxu0 %v2866
  %4645 = vmatmul.mubr.bf16.gmra.mxu0 %v2865
  %v4646 = vpop.f32.mrf.mxu0
  %v4647 = vadd.f32 %v4606, %v4646
  %v4648 = vpop.f32.mrf.mxu0
  %v4649 = vadd.f32 %v4608, %v4648
  %v4650 = vpop.f32.mrf.mxu0
  %v4651 = vpop.f32.mrf.mxu0
  %4652 = vdwg.mxu0
  %4653 = vmatprep.subr.bf16.mxu0 %v4054
  %4654 = vmatpush1.bf16.msra.mxu0 %v4053
  %4655 = vmatprep.subr.bf16.mxu0 %v4050
  %4656 = vmatpush1.bf16.msra.mxu0 %v4049
  %4657 = vmatprep.subr.bf16.mxu0 %v4046
  %4658 = vmatpush1.bf16.msra.mxu0 %v4045
  %4659 = vmatprep.subr.bf16.mxu0 %v4042
  %4660 = vmatpush1.bf16.msra.mxu0 %v4041
  %4661 = vmatprep.subr.bf16.mxu0 %v4038
  %4662 = vmatpush1.bf16.msra.mxu0 %v4037
  %4663 = vmatprep.subr.bf16.mxu0 %v4034
  %4664 = vmatpush1.bf16.msra.mxu0 %v4033
  %4665 = vmatprep.subr.bf16.mxu0 %v4030
  %4666 = vmatpush1.bf16.msra.mxu0 %v4029
  %4667 = vmatprep.subr.bf16.mxu0 %v4026
  %4668 = vmatpush1.bf16.msra.mxu0 %v4025
  %4669 = vmatprep.subr.bf16.mxu0 %v4086
  %4670 = vmatpush2.bf16.msra.mxu0 %v4085
  %4671 = vmatprep.subr.bf16.mxu0 %v4082
  %4672 = vmatpush2.bf16.msra.mxu0 %v4081
  %4673 = vmatprep.subr.bf16.mxu0 %v4078
  %4674 = vmatpush2.bf16.msra.mxu0 %v4077
  %4675 = vmatprep.subr.bf16.mxu0 %v4074
  %4676 = vmatpush2.bf16.msra.mxu0 %v4073
  %4677 = vmatprep.subr.bf16.mxu0 %v4070
  %4678 = vmatpush2.bf16.msra.mxu0 %v4069
  %4679 = vmatprep.subr.bf16.mxu0 %v4066
  %4680 = vmatpush2.bf16.msra.mxu0 %v4065
  %4681 = vmatprep.subr.bf16.mxu0 %v4062
  %4682 = vmatpush2.bf16.msra.mxu0 %v4061
  %4683 = vmatprep.subr.bf16.mxu0 %v4058
  %4684 = vmatpush2.bf16.msra.mxu0 %v4057
  %4685 = vmatprep.mubr.bf16.mxu0 %v2868
  %4686 = vmatmul.mubr.bf16.gmra.mxu0 %v2867
  %v4687 = vpop.f32.mrf.mxu0
  %v4688 = vadd.f32 %v4647, %v4687
  %v4689 = vpop.f32.mrf.mxu0
  %v4690 = vadd.f32 %v4649, %v4689
  %v4691 = vpop.f32.mrf.mxu0
  %v4692 = vpop.f32.mrf.mxu0
  %4693 = vdwg.mxu0
  %4694 = vmatprep.subr.bf16.mxu0 %v4118
  %4695 = vmatpush1.bf16.msra.mxu0 %v4117
  %4696 = vmatprep.subr.bf16.mxu0 %v4114
  %4697 = vmatpush1.bf16.msra.mxu0 %v4113
  %4698 = vmatprep.subr.bf16.mxu0 %v4110
  %4699 = vmatpush1.bf16.msra.mxu0 %v4109
  %4700 = vmatprep.subr.bf16.mxu0 %v4106
  %4701 = vmatpush1.bf16.msra.mxu0 %v4105
  %4702 = vmatprep.subr.bf16.mxu0 %v4102
  %4703 = vmatpush1.bf16.msra.mxu0 %v4101
  %4704 = vmatprep.subr.bf16.mxu0 %v4098
  %4705 = vmatpush1.bf16.msra.mxu0 %v4097
  %4706 = vmatprep.subr.bf16.mxu0 %v4094
  %4707 = vmatpush1.bf16.msra.mxu0 %v4093
  %4708 = vmatprep.subr.bf16.mxu0 %v4090
  %4709 = vmatpush1.bf16.msra.mxu0 %v4089
  %4710 = vmatprep.subr.bf16.mxu0 %v4150
  %4711 = vmatpush2.bf16.msra.mxu0 %v4149
  %4712 = vmatprep.subr.bf16.mxu0 %v4146
  %4713 = vmatpush2.bf16.msra.mxu0 %v4145
  %4714 = vmatprep.subr.bf16.mxu0 %v4142
  %4715 = vmatpush2.bf16.msra.mxu0 %v4141
  %4716 = vmatprep.subr.bf16.mxu0 %v4138
  %4717 = vmatpush2.bf16.msra.mxu0 %v4137
  %4718 = vmatprep.subr.bf16.mxu0 %v4134
  %4719 = vmatpush2.bf16.msra.mxu0 %v4133
  %4720 = vmatprep.subr.bf16.mxu0 %v4130
  %4721 = vmatpush2.bf16.msra.mxu0 %v4129
  %4722 = vmatprep.subr.bf16.mxu0 %v4126
  %4723 = vmatpush2.bf16.msra.mxu0 %v4125
  %4724 = vmatprep.subr.bf16.mxu0 %v4122
  %4725 = vmatpush2.bf16.msra.mxu0 %v4121
  %4726 = vmatprep.mubr.bf16.mxu0 %v2870
  %4727 = vmatmul.mubr.bf16.gmra.mxu0 %v2869
  %v4728 = vpop.f32.mrf.mxu0
  %v4729 = vadd.f32 %v4688, %v4728
  %v4730 = vpop.f32.mrf.mxu0
  %v4731 = vadd.f32 %v4690, %v4730
  %v4732 = vpop.f32.mrf.mxu0
  %v4733 = vpop.f32.mrf.mxu0
  %4734 = vdwg.mxu0
  %4735 = vst [vmem:[%s4] sm:$0xff] %v4565
  %4736 = vst [vmem:[%s4 + $0x8] sm:$0xff] %v4567
  %4737 = vst [vmem:[%s4 + $0x10] sm:$0xff] %v4729
  %4738 = vst [vmem:[%s4 + $0x18] sm:$0xff] %v4731
  %v4739 = vmul.f32 %v4565, %v4565
  %v4740 = vmul.f32 %v4567, %v4567
  %v4741 = vmul.f32 %v4729, %v4729
  %v4742 = vmul.f32 %v4731, %v4731
  %v4743 = vadd.f32 %v4739, %v4740
  %v4744 = vadd.f32 %v4743, %v4741
  %v4745 = vadd.f32 %v4744, %v4742
  %4746 = vadd.xlane.f32.xlu0 %v4745
  %v4747 = vpop.xlane.xlu0 %4746
  %v4748 = vadd.f32 %v4747, 1e-24
  %v4749 = vrsqrt.pop %v4748
  %v4750 = vmul.f32 %v4565, %v4749
  %v4751 = vmul.f32 %v4567, %v4749
  %v4752 = vmul.f32 %v4729, %v4749
  %v4753 = vmul.f32 %v4731, %v4749
  %v4754 = vld [vmem:[%s3] sm:$0xff]
  %v4755 = vld [vmem:[%s3 + $0x8] sm:$0xff]
  %v4756 = vld [vmem:[%s3 + $0x10] sm:$0xff]
  %v4757 = vld [vmem:[%s3 + $0x18] sm:$0xff]
  %v4758 = vld [vmem:[%s3 + $0x20] sm:$0xff]
  %v4759 = vld [vmem:[%s3 + $0x28] sm:$0xff]
  %v4760 = vld [vmem:[%s3 + $0x30] sm:$0xff]
  %v4761 = vld [vmem:[%s3 + $0x38] sm:$0xff]
  %v4762 = vld [vmem:[%s3 + $0x40] sm:$0xff]
  %v4763 = vld [vmem:[%s3 + $0x48] sm:$0xff]
  %v4764 = vld [vmem:[%s3 + $0x50] sm:$0xff]
  %v4765 = vld [vmem:[%s3 + $0x58] sm:$0xff]
  %v4766 = vld [vmem:[%s3 + $0x60] sm:$0xff]
  %v4767 = vld [vmem:[%s3 + $0x68] sm:$0xff]
  %v4768 = vld [vmem:[%s3 + $0x70] sm:$0xff]
  %v4769 = vld [vmem:[%s3 + $0x78] sm:$0xff]
  %v4770 = vld [vmem:[%s3 + $0x80] sm:$0xff]
  %v4771 = vld [vmem:[%s3 + $0x88] sm:$0xff]
  %v4772 = vld [vmem:[%s3 + $0x90] sm:$0xff]
  %v4773 = vld [vmem:[%s3 + $0x98] sm:$0xff]
  %v4774 = vld [vmem:[%s3 + $0xa0] sm:$0xff]
  %v4775 = vld [vmem:[%s3 + $0xa8] sm:$0xff]
  %v4776 = vld [vmem:[%s3 + $0xb0] sm:$0xff]
  %v4777 = vld [vmem:[%s3 + $0xb8] sm:$0xff]
  %v4778 = vld [vmem:[%s3 + $0xc0] sm:$0xff]
  %v4779 = vld [vmem:[%s3 + $0xc8] sm:$0xff]
  %v4780 = vld [vmem:[%s3 + $0xd0] sm:$0xff]
  %v4781 = vld [vmem:[%s3 + $0xd8] sm:$0xff]
  %v4782 = vld [vmem:[%s3 + $0xe0] sm:$0xff]
  %v4783 = vld [vmem:[%s3 + $0xe8] sm:$0xff]
  %v4784 = vld [vmem:[%s3 + $0xf0] sm:$0xff]
  %v4785 = vld [vmem:[%s3 + $0xf8] sm:$0xff]
  %v4786 = vld [vmem:[%s3 + $0x100] sm:$0xff]
  %v4787 = vld [vmem:[%s3 + $0x108] sm:$0xff]
  %v4788 = vld [vmem:[%s3 + $0x110] sm:$0xff]
  %v4789 = vld [vmem:[%s3 + $0x118] sm:$0xff]
  %v4790 = vld [vmem:[%s3 + $0x120] sm:$0xff]
  %v4791 = vld [vmem:[%s3 + $0x128] sm:$0xff]
  %v4792 = vld [vmem:[%s3 + $0x130] sm:$0xff]
  %v4793 = vld [vmem:[%s3 + $0x138] sm:$0xff]
  %v4794 = vld [vmem:[%s3 + $0x140] sm:$0xff]
  %v4795 = vld [vmem:[%s3 + $0x148] sm:$0xff]
  %v4796 = vld [vmem:[%s3 + $0x150] sm:$0xff]
  %v4797 = vld [vmem:[%s3 + $0x158] sm:$0xff]
  %v4798 = vld [vmem:[%s3 + $0x160] sm:$0xff]
  %v4799 = vld [vmem:[%s3 + $0x168] sm:$0xff]
  %v4800 = vld [vmem:[%s3 + $0x170] sm:$0xff]
  %v4801 = vld [vmem:[%s3 + $0x178] sm:$0xff]
  %v4802 = vld [vmem:[%s3 + $0x180] sm:$0xff]
  %v4803 = vld [vmem:[%s3 + $0x188] sm:$0xff]
  %v4804 = vld [vmem:[%s3 + $0x190] sm:$0xff]
  %v4805 = vld [vmem:[%s3 + $0x198] sm:$0xff]
  %v4806 = vld [vmem:[%s3 + $0x1a0] sm:$0xff]
  %v4807 = vld [vmem:[%s3 + $0x1a8] sm:$0xff]
  %v4808 = vld [vmem:[%s3 + $0x1b0] sm:$0xff]
  %v4809 = vld [vmem:[%s3 + $0x1b8] sm:$0xff]
  %v4810 = vld [vmem:[%s3 + $0x1c0] sm:$0xff]
  %v4811 = vld [vmem:[%s3 + $0x1c8] sm:$0xff]
  %v4812 = vld [vmem:[%s3 + $0x1d0] sm:$0xff]
  %v4813 = vld [vmem:[%s3 + $0x1d8] sm:$0xff]
  %v4814 = vld [vmem:[%s3 + $0x1e0] sm:$0xff]
  %v4815 = vld [vmem:[%s3 + $0x1e8] sm:$0xff]
  %v4816 = vld [vmem:[%s3 + $0x1f0] sm:$0xff]
  %v4817 = vld [vmem:[%s3 + $0x1f8] sm:$0xff]
  %v4818 = vmul.f32 %v4754, %v4754
  %v4819 = vmul.f32 %v4755, %v4755
  %v4820 = vmul.f32 %v4756, %v4756
  %v4821 = vmul.f32 %v4757, %v4757
  %v4822 = vmul.f32 %v4758, %v4758
  %v4823 = vmul.f32 %v4759, %v4759
  %v4824 = vmul.f32 %v4760, %v4760
  %v4825 = vmul.f32 %v4761, %v4761
  %v4826 = vmul.f32 %v4762, %v4762
  %v4827 = vmul.f32 %v4763, %v4763
  %v4828 = vmul.f32 %v4764, %v4764
  %v4829 = vmul.f32 %v4765, %v4765
  %v4830 = vmul.f32 %v4766, %v4766
  %v4831 = vmul.f32 %v4767, %v4767
  %v4832 = vmul.f32 %v4768, %v4768
  %v4833 = vmul.f32 %v4769, %v4769
  %v4834 = vmul.f32 %v4770, %v4770
  %v4835 = vmul.f32 %v4771, %v4771
  %v4836 = vmul.f32 %v4772, %v4772
  %v4837 = vmul.f32 %v4773, %v4773
  %v4838 = vmul.f32 %v4774, %v4774
  %v4839 = vmul.f32 %v4775, %v4775
  %v4840 = vmul.f32 %v4776, %v4776
  %v4841 = vmul.f32 %v4777, %v4777
  %v4842 = vmul.f32 %v4778, %v4778
  %v4843 = vmul.f32 %v4779, %v4779
  %v4844 = vmul.f32 %v4780, %v4780
  %v4845 = vmul.f32 %v4781, %v4781
  %v4846 = vmul.f32 %v4782, %v4782
  %v4847 = vmul.f32 %v4783, %v4783
  %v4848 = vmul.f32 %v4784, %v4784
  %v4849 = vmul.f32 %v4785, %v4785
  %v4850 = vmul.f32 %v4786, %v4786
  %v4851 = vmul.f32 %v4787, %v4787
  %v4852 = vmul.f32 %v4788, %v4788
  %v4853 = vmul.f32 %v4789, %v4789
  %v4854 = vmul.f32 %v4790, %v4790
  %v4855 = vmul.f32 %v4791, %v4791
  %v4856 = vmul.f32 %v4792, %v4792
  %v4857 = vmul.f32 %v4793, %v4793
  %v4858 = vmul.f32 %v4794, %v4794
  %v4859 = vmul.f32 %v4795, %v4795
  %v4860 = vmul.f32 %v4796, %v4796
  %v4861 = vmul.f32 %v4797, %v4797
  %v4862 = vmul.f32 %v4798, %v4798
  %v4863 = vmul.f32 %v4799, %v4799
  %v4864 = vmul.f32 %v4800, %v4800
  %v4865 = vmul.f32 %v4801, %v4801
  %v4866 = vmul.f32 %v4802, %v4802
  %v4867 = vmul.f32 %v4803, %v4803
  %v4868 = vmul.f32 %v4804, %v4804
  %v4869 = vmul.f32 %v4805, %v4805
  %v4870 = vmul.f32 %v4806, %v4806
  %v4871 = vmul.f32 %v4807, %v4807
  %v4872 = vmul.f32 %v4808, %v4808
  %v4873 = vmul.f32 %v4809, %v4809
  %v4874 = vmul.f32 %v4810, %v4810
  %v4875 = vmul.f32 %v4811, %v4811
  %v4876 = vmul.f32 %v4812, %v4812
  %v4877 = vmul.f32 %v4813, %v4813
  %v4878 = vmul.f32 %v4814, %v4814
  %v4879 = vmul.f32 %v4815, %v4815
  %v4880 = vmul.f32 %v4816, %v4816
  %v4881 = vmul.f32 %v4817, %v4817
  %v4882 = vadd.f32 %v4818, %v4819
  %v4883 = vadd.f32 %v4882, %v4820
  %v4884 = vadd.f32 %v4883, %v4821
  %v4885 = vadd.f32 %v4884, %v4822
  %v4886 = vadd.f32 %v4885, %v4823
  %v4887 = vadd.f32 %v4886, %v4824
  %v4888 = vadd.f32 %v4887, %v4825
  %v4889 = vadd.f32 %v4888, %v4826
  %v4890 = vadd.f32 %v4889, %v4827
  %v4891 = vadd.f32 %v4890, %v4828
  %v4892 = vadd.f32 %v4891, %v4829
  %v4893 = vadd.f32 %v4892, %v4830
  %v4894 = vadd.f32 %v4893, %v4831
  %v4895 = vadd.f32 %v4894, %v4832
  %v4896 = vadd.f32 %v4895, %v4833
  %v4897 = vadd.f32 %v4896, %v4834
  %v4898 = vadd.f32 %v4897, %v4835
  %v4899 = vadd.f32 %v4898, %v4836
  %v4900 = vadd.f32 %v4899, %v4837
  %v4901 = vadd.f32 %v4900, %v4838
  %v4902 = vadd.f32 %v4901, %v4839
  %v4903 = vadd.f32 %v4902, %v4840
  %v4904 = vadd.f32 %v4903, %v4841
  %v4905 = vadd.f32 %v4904, %v4842
  %v4906 = vadd.f32 %v4905, %v4843
  %v4907 = vadd.f32 %v4906, %v4844
  %v4908 = vadd.f32 %v4907, %v4845
  %v4909 = vadd.f32 %v4908, %v4846
  %v4910 = vadd.f32 %v4909, %v4847
  %v4911 = vadd.f32 %v4910, %v4848
  %v4912 = vadd.f32 %v4911, %v4849
  %v4913 = vadd.f32 %v4912, %v4850
  %v4914 = vadd.f32 %v4913, %v4851
  %v4915 = vadd.f32 %v4914, %v4852
  %v4916 = vadd.f32 %v4915, %v4853
  %v4917 = vadd.f32 %v4916, %v4854
  %v4918 = vadd.f32 %v4917, %v4855
  %v4919 = vadd.f32 %v4918, %v4856
  %v4920 = vadd.f32 %v4919, %v4857
  %v4921 = vadd.f32 %v4920, %v4858
  %v4922 = vadd.f32 %v4921, %v4859
  %v4923 = vadd.f32 %v4922, %v4860
  %v4924 = vadd.f32 %v4923, %v4861
  %v4925 = vadd.f32 %v4924, %v4862
  %v4926 = vadd.f32 %v4925, %v4863
  %v4927 = vadd.f32 %v4926, %v4864
  %v4928 = vadd.f32 %v4927, %v4865
  %v4929 = vadd.f32 %v4928, %v4866
  %v4930 = vadd.f32 %v4929, %v4867
  %v4931 = vadd.f32 %v4930, %v4868
  %v4932 = vadd.f32 %v4931, %v4869
  %v4933 = vadd.f32 %v4932, %v4870
  %v4934 = vadd.f32 %v4933, %v4871
  %v4935 = vadd.f32 %v4934, %v4872
  %v4936 = vadd.f32 %v4935, %v4873
  %v4937 = vadd.f32 %v4936, %v4874
  %v4938 = vadd.f32 %v4937, %v4875
  %v4939 = vadd.f32 %v4938, %v4876
  %v4940 = vadd.f32 %v4939, %v4877
  %v4941 = vadd.f32 %v4940, %v4878
  %v4942 = vadd.f32 %v4941, %v4879
  %v4943 = vadd.f32 %v4942, %v4880
  %v4944 = vadd.f32 %v4943, %v4881
  %v4945 = vrot.slane %v4944, 4
  %v4946 = vadd.f32 %v4944, %v4945
  %v4947 = vrot.slane %v4946, 2
  %v4948 = vadd.f32 %v4946, %v4947
  %v4949 = vrot.slane %v4948, 1
  %v4950 = vadd.f32 %v4948, %v4949
  %v4951 = vadd.f32 %v4950, 1e-24
  %v4952 = vrsqrt.pop %v4951
  %v4953 = vmul.f32 %v4754, %v4952
  %v4954 = vmul.f32 %v4755, %v4952
  %v4955 = vmul.f32 %v4756, %v4952
  %v4956 = vmul.f32 %v4757, %v4952
  %v4957 = vmul.f32 %v4758, %v4952
  %v4958 = vmul.f32 %v4759, %v4952
  %v4959 = vmul.f32 %v4760, %v4952
  %v4960 = vmul.f32 %v4761, %v4952
  %v4961 = vmul.f32 %v4762, %v4952
  %v4962 = vmul.f32 %v4763, %v4952
  %v4963 = vmul.f32 %v4764, %v4952
  %v4964 = vmul.f32 %v4765, %v4952
  %v4965 = vmul.f32 %v4766, %v4952
  %v4966 = vmul.f32 %v4767, %v4952
  %v4967 = vmul.f32 %v4768, %v4952
  %v4968 = vmul.f32 %v4769, %v4952
  %v4969 = vmul.f32 %v4770, %v4952
  %v4970 = vmul.f32 %v4771, %v4952
  %v4971 = vmul.f32 %v4772, %v4952
  %v4972 = vmul.f32 %v4773, %v4952
  %v4973 = vmul.f32 %v4774, %v4952
  %v4974 = vmul.f32 %v4775, %v4952
  %v4975 = vmul.f32 %v4776, %v4952
  %v4976 = vmul.f32 %v4777, %v4952
  %v4977 = vmul.f32 %v4778, %v4952
  %v4978 = vmul.f32 %v4779, %v4952
  %v4979 = vmul.f32 %v4780, %v4952
  %v4980 = vmul.f32 %v4781, %v4952
  %v4981 = vmul.f32 %v4782, %v4952
  %v4982 = vmul.f32 %v4783, %v4952
  %v4983 = vmul.f32 %v4784, %v4952
  %v4984 = vmul.f32 %v4785, %v4952
  %v4985 = vmul.f32 %v4786, %v4952
  %v4986 = vmul.f32 %v4787, %v4952
  %v4987 = vmul.f32 %v4788, %v4952
  %v4988 = vmul.f32 %v4789, %v4952
  %v4989 = vmul.f32 %v4790, %v4952
  %v4990 = vmul.f32 %v4791, %v4952
  %v4991 = vmul.f32 %v4792, %v4952
  %v4992 = vmul.f32 %v4793, %v4952
  %v4993 = vmul.f32 %v4794, %v4952
  %v4994 = vmul.f32 %v4795, %v4952
  %v4995 = vmul.f32 %v4796, %v4952
  %v4996 = vmul.f32 %v4797, %v4952
  %v4997 = vmul.f32 %v4798, %v4952
  %v4998 = vmul.f32 %v4799, %v4952
  %v4999 = vmul.f32 %v4800, %v4952
  %v5000 = vmul.f32 %v4801, %v4952
  %v5001 = vmul.f32 %v4802, %v4952
  %v5002 = vmul.f32 %v4803, %v4952
  %v5003 = vmul.f32 %v4804, %v4952
  %v5004 = vmul.f32 %v4805, %v4952
  %v5005 = vmul.f32 %v4806, %v4952
  %v5006 = vmul.f32 %v4807, %v4952
  %v5007 = vmul.f32 %v4808, %v4952
  %v5008 = vmul.f32 %v4809, %v4952
  %v5009 = vmul.f32 %v4810, %v4952
  %v5010 = vmul.f32 %v4811, %v4952
  %v5011 = vmul.f32 %v4812, %v4952
  %v5012 = vmul.f32 %v4813, %v4952
  %v5013 = vmul.f32 %v4814, %v4952
  %v5014 = vmul.f32 %v4815, %v4952
  %v5015 = vmul.f32 %v4816, %v4952
  %v5016 = vmul.f32 %v4817, %v4952
  %5017 = vmatprep.subr.mxu0 0.0
  %5018 = vmatpush1.msra.mxu0 %v4968
  %5019 = vmatprep.subr.mxu0 0.0
  %5020 = vmatpush1.msra.mxu0 %v4967
  %5021 = vmatprep.subr.mxu0 0.0
  %5022 = vmatpush1.msra.mxu0 %v4966
  %5023 = vmatprep.subr.mxu0 0.0
  %5024 = vmatpush1.msra.mxu0 %v4965
  %5025 = vmatprep.subr.mxu0 0.0
  %5026 = vmatpush1.msra.mxu0 %v4964
  %5027 = vmatprep.subr.mxu0 0.0
  %5028 = vmatpush1.msra.mxu0 %v4963
  %5029 = vmatprep.subr.mxu0 0.0
  %5030 = vmatpush1.msra.mxu0 %v4962
  %5031 = vmatprep.subr.mxu0 0.0
  %5032 = vmatpush1.msra.mxu0 %v4961
  %5033 = vmatprep.subr.mxu0 0.0
  %5034 = vmatpush1.msra.mxu0 %v4960
  %5035 = vmatprep.subr.mxu0 0.0
  %5036 = vmatpush1.msra.mxu0 %v4959
  %5037 = vmatprep.subr.mxu0 0.0
  %5038 = vmatpush1.msra.mxu0 %v4958
  %5039 = vmatprep.subr.mxu0 0.0
  %5040 = vmatpush1.msra.mxu0 %v4957
  %5041 = vmatprep.subr.mxu0 0.0
  %5042 = vmatpush1.msra.mxu0 %v4956
  %5043 = vmatprep.subr.mxu0 0.0
  %5044 = vmatpush1.msra.mxu0 %v4955
  %5045 = vmatprep.subr.mxu0 0.0
  %5046 = vmatpush1.msra.mxu0 %v4954
  %5047 = vmatprep.subr.mxu0 0.0
  %5048 = vmatpush1.msra.mxu0 %v4953
  %5049 = vmatprep.subr.mxu0 0.0
  %5050 = vmatpush2.msra.mxu0 %v4984
  %5051 = vmatprep.subr.mxu0 0.0
  %5052 = vmatpush2.msra.mxu0 %v4983
  %5053 = vmatprep.subr.mxu0 0.0
  %5054 = vmatpush2.msra.mxu0 %v4982
  %5055 = vmatprep.subr.mxu0 0.0
  %5056 = vmatpush2.msra.mxu0 %v4981
  %5057 = vmatprep.subr.mxu0 0.0
  %5058 = vmatpush2.msra.mxu0 %v4980
  %5059 = vmatprep.subr.mxu0 0.0
  %5060 = vmatpush2.msra.mxu0 %v4979
  %5061 = vmatprep.subr.mxu0 0.0
  %5062 = vmatpush2.msra.mxu0 %v4978
  %5063 = vmatprep.subr.mxu0 0.0
  %5064 = vmatpush2.msra.mxu0 %v4977
  %5065 = vmatprep.subr.mxu0 0.0
  %5066 = vmatpush2.msra.mxu0 %v4976
  %5067 = vmatprep.subr.mxu0 0.0
  %5068 = vmatpush2.msra.mxu0 %v4975
  %5069 = vmatprep.subr.mxu0 0.0
  %5070 = vmatpush2.msra.mxu0 %v4974
  %5071 = vmatprep.subr.mxu0 0.0
  %5072 = vmatpush2.msra.mxu0 %v4973
  %5073 = vmatprep.subr.mxu0 0.0
  %5074 = vmatpush2.msra.mxu0 %v4972
  %5075 = vmatprep.subr.mxu0 0.0
  %5076 = vmatpush2.msra.mxu0 %v4971
  %5077 = vmatprep.subr.mxu0 0.0
  %5078 = vmatpush2.msra.mxu0 %v4970
  %5079 = vmatprep.subr.mxu0 0.0
  %5080 = vmatpush2.msra.mxu0 %v4969
  %5081 = vmatprep.mubr.f32.mxu0 %v4751
  %5082 = vmatmul.mubr.f32.gmra.mxu0 %v4750
  %v5083 = vpop.f32.mrf.mxu0
  %v5084 = vadd.f32 0.0, %v5083
  %v5085 = vpop.f32.mrf.mxu0
  %5086 = vdwg.mxu0
  %5087 = vmatprep.subr.mxu0 0.0
  %5088 = vmatpush1.msra.mxu0 %v5000
  %5089 = vmatprep.subr.mxu0 0.0
  %5090 = vmatpush1.msra.mxu0 %v4999
  %5091 = vmatprep.subr.mxu0 0.0
  %5092 = vmatpush1.msra.mxu0 %v4998
  %5093 = vmatprep.subr.mxu0 0.0
  %5094 = vmatpush1.msra.mxu0 %v4997
  %5095 = vmatprep.subr.mxu0 0.0
  %5096 = vmatpush1.msra.mxu0 %v4996
  %5097 = vmatprep.subr.mxu0 0.0
  %5098 = vmatpush1.msra.mxu0 %v4995
  %5099 = vmatprep.subr.mxu0 0.0
  %5100 = vmatpush1.msra.mxu0 %v4994
  %5101 = vmatprep.subr.mxu0 0.0
  %5102 = vmatpush1.msra.mxu0 %v4993
  %5103 = vmatprep.subr.mxu0 0.0
  %5104 = vmatpush1.msra.mxu0 %v4992
  %5105 = vmatprep.subr.mxu0 0.0
  %5106 = vmatpush1.msra.mxu0 %v4991
  %5107 = vmatprep.subr.mxu0 0.0
  %5108 = vmatpush1.msra.mxu0 %v4990
  %5109 = vmatprep.subr.mxu0 0.0
  %5110 = vmatpush1.msra.mxu0 %v4989
  %5111 = vmatprep.subr.mxu0 0.0
  %5112 = vmatpush1.msra.mxu0 %v4988
  %5113 = vmatprep.subr.mxu0 0.0
  %5114 = vmatpush1.msra.mxu0 %v4987
  %5115 = vmatprep.subr.mxu0 0.0
  %5116 = vmatpush1.msra.mxu0 %v4986
  %5117 = vmatprep.subr.mxu0 0.0
  %5118 = vmatpush1.msra.mxu0 %v4985
  %5119 = vmatprep.subr.mxu0 0.0
  %5120 = vmatpush2.msra.mxu0 %v5016
  %5121 = vmatprep.subr.mxu0 0.0
  %5122 = vmatpush2.msra.mxu0 %v5015
  %5123 = vmatprep.subr.mxu0 0.0
  %5124 = vmatpush2.msra.mxu0 %v5014
  %5125 = vmatprep.subr.mxu0 0.0
  %5126 = vmatpush2.msra.mxu0 %v5013
  %5127 = vmatprep.subr.mxu0 0.0
  %5128 = vmatpush2.msra.mxu0 %v5012
  %5129 = vmatprep.subr.mxu0 0.0
  %5130 = vmatpush2.msra.mxu0 %v5011
  %5131 = vmatprep.subr.mxu0 0.0
  %5132 = vmatpush2.msra.mxu0 %v5010
  %5133 = vmatprep.subr.mxu0 0.0
  %5134 = vmatpush2.msra.mxu0 %v5009
  %5135 = vmatprep.subr.mxu0 0.0
  %5136 = vmatpush2.msra.mxu0 %v5008
  %5137 = vmatprep.subr.mxu0 0.0
  %5138 = vmatpush2.msra.mxu0 %v5007
  %5139 = vmatprep.subr.mxu0 0.0
  %5140 = vmatpush2.msra.mxu0 %v5006
  %5141 = vmatprep.subr.mxu0 0.0
  %5142 = vmatpush2.msra.mxu0 %v5005
  %5143 = vmatprep.subr.mxu0 0.0
  %5144 = vmatpush2.msra.mxu0 %v5004
  %5145 = vmatprep.subr.mxu0 0.0
  %5146 = vmatpush2.msra.mxu0 %v5003
  %5147 = vmatprep.subr.mxu0 0.0
  %5148 = vmatpush2.msra.mxu0 %v5002
  %5149 = vmatprep.subr.mxu0 0.0
  %5150 = vmatpush2.msra.mxu0 %v5001
  %5151 = vmatprep.mubr.f32.mxu0 %v4753
  %5152 = vmatmul.mubr.f32.gmra.mxu0 %v4752
  %v5153 = vpop.f32.mrf.mxu0
  %v5154 = vadd.f32 %v5084, %v5153
  %v5155 = vpop.f32.mrf.mxu0
  %5156 = vdwg.mxu0
  %v5157 = vmul.f32 %v5154, 0.1
  %v5158 = vmul.f32 %v5157, %v5157
  %v5159 = vsub.f32 1.0, %v5158
  %v5160 = vmax.f32 %v5159, 0.0
  %v5161 = vrsqrt.pop %v5160
  %v5162 = vmul.f32 %v5160, %v5161
  %vm5163 = vcmp.eq.f32.partialorder %v5160, inf
  %v5164 = vsel %vm5163, %v5160, %v5162
  %vm5165 = vcmp.eq.f32.partialorder %v5160, 0.0
  %v5166 = vand.u32 %v5160, 2147483648
  %v5167 = vsel %vm5165, %v5166, %v5164
  %v5168 = vmul.f32 %v5154, 1.442695
  %v5169 = vpow.pop %v5168
  %v5170 = vmul.f32 %v5154, 0.5403023
  %v5171 = vmul.f32 %v5167, 10.0
  %v5172 = vmul.f32 %v5171, 0.84147096
  %v5173 = vsub.f32 %v5170, %v5172
  %v5174 = vmul.f32 %v5173, 1.442695
  %v5175 = vpow.pop %v5174
  %v5176 = vlaneseq
  %v5177 = vand.u32 %v5176, 127
  %vm5178 = vcmp.lt.s32.totalorder %v5177, 12
  %v5179 = vsel %vm5178, %v5169, 0.0
  %5180 = vadd.xlane.f32.xlu0 %v5179
  %v5181 = vpop.xlane.xlu0 %5180
  %v5182 = vsub.f32 %v5181, %v5169
  %v5183 = vadd.f32 %v5182, %v5175
  %v5184 = vrcp.pop %v5183
  %v5185 = vmul.f32 %v5175, %v5184
  %5186 = vst [vmem:[%s5] sm:$0xff] %v5185
  // Predicated region
  $region18: #{facenet_forward.1} parent=0 // pred_check
    _
  $region19: #{facenet_forward.1} parent=0 // pred_check_branch
    %5188 = sbr.rel (0) target = $region21
  $region20: #{facenet_forward.1} parent=0 // pred_region
    _
  $region21: #{facenet_forward.1} parent=0 // pred_fallthru
    _
  // Predicated region
  $region22: #{facenet_forward.1} parent=0 // pred_check
    _
  $region23: #{facenet_forward.1} parent=0 // pred_check_branch
    %5190 = sbr.rel (0) target = $region25
  $region24: #{facenet_forward.1} parent=0 // pred_region
    _
  $region25: #{facenet_forward.1} parent=0 // pred_fallthru
    _
  // Predicated region
  $region26: #{facenet_forward.1} parent=0 // pred_check
    _
  $region27: #{facenet_forward.1} parent=0 // pred_check_branch
    %5192 = sbr.rel (0) target = $region29
  $region28: #{facenet_forward.1} parent=0 // pred_region
    _
  $region29: #{facenet_forward.1} parent=0 // pred_fallthru
    _
  // Predicated region
  $region30: #{facenet_forward.1} parent=0 // pred_check
    _
  $region31: #{facenet_forward.1} parent=0 // pred_check_branch
    %5194 = sbr.rel (0) target = $region33
  $region32: #{facenet_forward.1} parent=0 // pred_region
    _
  $region33: #{facenet_forward.1} parent=0 // pred_fallthru
    _

</llo_original>
